<compile_context>
chip_gen: v7x
topology: tpu7x:2x2x1
jax: 0.10.0
libtpu: 0.0.40
codegen_flags: <defaults>
</compile_context>

<pallas_src>
import functools

import jax
import jax.numpy as jnp
from jax.experimental import pallas as pl
from jax.experimental.pallas import tpu as pltpu


# ----------------------------- phase bookkeeping ----------------------------

_PHASES = ((0, 0), (0, 1), (1, 0), (1, 1))  # (qy, qx), index = qy*2 + qx


def _phase_maps(q):
    """For output parity q in {0,1}: ordered (effective_shift, contributing_taps)."""
    return ((-1, (-1,)), (0, (0, 1))) if q == 0 else ((0, (-1, 0)), (1, (1,)))


# ------------------------------ kernel helpers ------------------------------


def _silu(v):
    return v * jax.nn.sigmoid(v)


def _shift_plane(plane, ey, ex, em, wimg):
    """Shift a (C, HW) plane (row-major H x W flattened on lanes) by (ey, ex)
    with zero padding at the image border.  em: (4, HW) border-validity masks
    [ey=-1, ey=+1, ex=-1, ex=+1]."""
    hw = plane.shape[1]
    s = ey * wimg + ex
    v = plane if s == 0 else pltpu.roll(plane, shift=(-s) % hw, axis=1)
    m = None
    if ey == -1:
        m = em[0:1, :]
    elif ey == 1:
        m = em[1:2, :]
    if ex == -1:
        m = em[2:3, :] if m is None else m * em[2:3, :]
    elif ex == 1:
        m = em[3:4, :] if m is None else m * em[3:4, :]
    return v if m is None else v * m


def _phase_conv3x3(planes, w_ref, em, wimg):
    """3x3 'same' conv at upsampled resolution on phase-decomposed planes.

    planes: dict {(ry,rx): (Cp, HW)}; w_ref: (Cout_p, 9*Cp) Ref (cols ordered
    (dy, dx, ci)).  Returns dict {(qy,qx): (Cout_p, HW)} (one matmul per phase).
    """
    wmat = w_ref[...]
    cache, out = {}, {}
    for qy, qx in _PHASES:
        rows = []
        for dy in (-1, 0, 1):
            ry, ey = (qy + dy) % 2, (qy + dy) // 2
            for dx in (-1, 0, 1):
                rx, ex = (qx + dx) % 2, (qx + dx) // 2
                key = (ry, rx, ey, ex)
                if key not in cache:
                    cache[key] = _shift_plane(planes[(ry, rx)], ey, ex, em, wimg)
                rows.append(cache[key])
        patches = jnp.concatenate(rows, axis=0)                  # (9*Cp, HW)
        out[(qy, qx)] = jnp.dot(wmat, patches,
                                preferred_element_type=jnp.float32)
    return out


def _group_norm_phases(h, avg, gamma, beta, eps=1e-5):
    """GroupNorm over all 4 phases jointly (i.e. the full upsampled image).

    h: dict of (C, HW) raw planes.  avg: (C, C) group-averaging matrix (includes
    the 1/count factor; zero rows/cols for padded channels).  gamma/beta: (C, 1).
    Two-pass (mean, then squared deviations) for numerical robustness.
    """
    s1 = None
    for q in _PHASES:
        t = jnp.sum(h[q], axis=1, keepdims=True)                 # (C, 1)
        s1 = t if s1 is None else s1 + t
    mean_c = jnp.dot(avg, s1, preferred_element_type=jnp.float32)  # per-channel group mean
    d = {q: h[q] - mean_c for q in _PHASES}
    ssq = None
    for q in _PHASES:
        t = jnp.sum(d[q] * d[q], axis=1, keepdims=True)
        ssq = t if ssq is None else ssq + t
    var_c = jnp.dot(avg, ssq, preferred_element_type=jnp.float32)
    scale = jax.lax.rsqrt(var_c + eps) * gamma
    return {q: d[q] * scale + beta for q in _PHASES}


# ---------------------------------- kernel ----------------------------------


def _upsample_block_kernel(wimg,
                           x_ref,      # (1, Cp, HW)   original-resolution input
                           em_ref,     # (4, HW)       border masks
                           wup_ref,    # (4, Cp, 4*Cp) phase-collapsed upsample conv
                           wskip_ref,  # (Cop, Cp)     1x1 skip conv
                           w1_ref,     # (Cop, 9*Cp)   res conv1 (im2col layout)
                           g1w_ref,    # (Cop, 1)
                           g1b_ref,    # (Cop, 1)
                           w2_ref,     # (Cop, 9*Cop)  res conv2
                           g2w_ref,    # (Cop, 1)
                           g2b_ref,    # (Cop, 1)
                           avg_ref,    # (Cop, Cop)    group-averaging matrix
                           o_ref):     # (1, 4, Cop, HW)
    xt = x_ref[0]                                                  # (Cp, HW)
    em = em_ref[...]                                               # (4, HW)
    wskip = wskip_ref[...]

    # Fused Upsample(nearest 2x) + Conv3x3(in->in) via 4 phase-collapsed 2x2
    # kernels (reads only the original-resolution input), plus the 1x1 skip.
    h0, idn, cache = {}, {}, {}
    for qy, qx in _PHASES:
        rows = []
        for ey, _ in _phase_maps(qy):
            for ex, _ in _phase_maps(qx):
                if (ey, ex) not in cache:
                    cache[(ey, ex)] = _shift_plane(xt, ey, ex, em, wimg)
                rows.append(cache[(ey, ex)])
        patches = jnp.concatenate(rows, axis=0)                    # (4*Cp, HW)
        h0q = jnp.dot(wup_ref[qy * 2 + qx], patches,
                      preferred_element_type=jnp.float32)          # (Cp, HW)
        h0[(qy, qx)] = h0q
        idn[(qy, qx)] = jnp.dot(wskip, h0q,
                                preferred_element_type=jnp.float32)  # (Cop, HW)

    # ResidualBlock: conv1 -> GroupNorm1 -> SiLU
    h1 = _phase_conv3x3(h0, w1_ref, em, wimg)
    h1 = _group_norm_phases(h1, avg_ref[...], g1w_ref[...], g1b_ref[...])
    h1 = {q: _silu(v) for q, v in h1.items()}

    # conv2 -> GroupNorm2 -> (+skip) -> SiLU; lane-dense (Cop, HW) output stores.
    h2 = _phase_conv3x3(h1, w2_ref, em, wimg)
    h2 = _group_norm_phases(h2, avg_ref[...], g2w_ref[...], g2b_ref[...])
    for qy, qx in _PHASES:
        o_ref[0, qy * 2 + qx] = _silu(h2[(qy, qx)] + idn[(qy, qx)])


# ----------------------------- weight preparation ----------------------------


def _pack_upconv(w_up, cp):
    """Collapse the 3x3 upsample conv (on a nearest-2x input) into 4 phase
    specific 2x2 kernels, in the kernel's (Cp, 4*Cp) transposed-im2col layout."""
    cin = w_up.shape[2]
    phases = []
    for qy, qx in _PHASES:
        blocks = []
        for _, dys in _phase_maps(qy):
            for _, dxs in _phase_maps(qx):
                acc = None
                for dy in dys:
                    for dx in dxs:
                        t = w_up[dy + 1, dx + 1]                   # (cin_in, cin_out)
                        acc = t if acc is None else acc + t
                blocks.append(jnp.pad(acc.T, ((0, cp - cin), (0, cp - cin))))
        phases.append(jnp.concatenate(blocks, axis=1))             # (cp, 4*cp)
    return jnp.stack(phases, axis=0)                               # (4, cp, 4*cp)


def _pack_conv3x3(w, cp_in, cp_out):
    """(3,3,ci,co) HWIO -> (cp_out, 9*cp_in) with zero-padded channels; columns
    ordered (dy, dx, ci) to match the in-kernel im2col tap order."""
    _, _, ci, co = w.shape
    wt = jnp.transpose(w, (3, 0, 1, 2))                            # (co, 3, 3, ci)
    wt = jnp.pad(wt, ((0, cp_out - co), (0, 0), (0, 0), (0, cp_in - ci)))
    return wt.reshape(cp_out, 9 * cp_in)


# ---------------------------------- wrapper ----------------------------------


def upsample_block(x_nchw, params):
    """UpSampleBlock forward.  x_nchw: (B, Cin, H, W) f32 -> (B, Cout, 2H, 2W)."""
    B, Cin, H, W = x_nchw.shape
    Cout = params["w1"].shape[-1]
    G = min(4, Cout)
    cg = Cout // G
    HW = H * W
    Cp = ((Cin + 7) // 8) * 8     # channels padded to sublane multiple
    Cop = ((Cout + 7) // 8) * 8

    # Original-resolution input only (upsample is fused into the kernel);
    # NCHW -> (B, C, H*W) is a pure reshape, channels land on sublanes.
    x_flat = x_nchw.reshape(B, Cin, HW)
    if Cp != Cin:
        x_flat = jnp.pad(x_flat, ((0, 0), (0, Cp - Cin), (0, 0)))

    # Border-validity masks for +-1 shifts at original resolution.
    ii = jnp.arange(HW, dtype=jnp.int32) // W
    jj = jnp.arange(HW, dtype=jnp.int32) % W
    em = jnp.stack([ii >= 1, ii <= H - 2, jj >= 1, jj <= W - 2],
                   axis=0).astype(jnp.float32)                     # (4, HW)

    wup = _pack_upconv(params["w_up"], Cp)                         # (4, Cp, 4*Cp)
    w1m = _pack_conv3x3(params["w1"], Cp, Cop)                     # (Cop, 9*Cp)
    w2m = _pack_conv3x3(params["w2"], Cop, Cop)                    # (Cop, 9*Cop)
    wskip = jnp.pad(params["w_skip"].T, ((0, Cop - Cout), (0, Cp - Cin)))

    def _gn_param(p):
        return jnp.pad(p, (0, Cop - Cout)).reshape(Cop, 1)

    g1w, g1b = _gn_param(params["g1_w"]), _gn_param(params["g1_b"])
    g2w, g2b = _gn_param(params["g2_w"]), _gn_param(params["g2_b"])

    # Group-averaging matrix (replaces one-hot matmul pair); padded channels
    # belong to no group so they never pollute the statistics.
    n_per_group = float(4 * HW * cg)                               # Hs*Ws*cg
    grp = jnp.arange(Cout) // cg
    avg = (grp[:, None] == grp[None, :]).astype(jnp.float32) / n_per_group
    avg = jnp.pad(avg, ((0, Cop - Cout), (0, Cop - Cout)))

    kernel = functools.partial(_upsample_block_kernel, W)

    def _full(shape):
        n = len(shape)
        return pl.BlockSpec(shape, lambda b, n=n: (0,) * n)

    out_ph = pl.pallas_call(
        kernel,
        out_shape=jax.ShapeDtypeStruct((B, 4, Cop, HW), jnp.float32),
        grid_spec=pltpu.PrefetchScalarGridSpec(
            num_scalar_prefetch=0,
            grid=(B,),
            in_specs=[
                pl.BlockSpec((1, Cp, HW), lambda b: (b, 0, 0)),
                _full((4, HW)),
                _full((4, Cp, 4 * Cp)),
                _full((Cop, Cp)),
                _full((Cop, 9 * Cp)),
                _full((Cop, 1)),
                _full((Cop, 1)),
                _full((Cop, 9 * Cop)),
                _full((Cop, 1)),
                _full((Cop, 1)),
                _full((Cop, Cop)),
            ],
            out_specs=pl.BlockSpec((1, 4, Cop, HW), lambda b: (b, 0, 0, 0)),
        ),
        compiler_params=pltpu.CompilerParams(
            dimension_semantics=("parallel",),
            vmem_limit_bytes=64 * 1024 * 1024,
        ),
    )(x_flat, em, wup, wskip, w1m, g1w, g1b, w2m, g2w, g2b, avg)

    # Phase planes -> NCHW: out[b, c, 2i+qy, 2j+qx] = out_ph[b, 2*qy+qx, c, i*W+j]
    out = out_ph[:, :, :Cout, :].reshape(B, 2, 2, Cout, H, W)
    out = jnp.transpose(out, (0, 3, 4, 1, 5, 2)).reshape(B, Cout, 2 * H, 2 * W)
    return out


# ----------------------------- params / reference ----------------------------


def init_params(key, cin, cout):
    """Deterministic synthetic parameters (shapes from UpSampleBlock.__init__)."""
    ks = jax.random.split(key, 8)
    s = 0.15
    return dict(
        # conv weights stored HWIO (equivalent to PyTorch OIHW (cout,cin,3,3))
        w_up=s * jax.random.normal(ks[0], (3, 3, cin, cin), jnp.float32),
        w_skip=s * jax.random.normal(ks[1], (cin, cout), jnp.float32),
        w1=s * jax.random.normal(ks[2], (3, 3, cin, cout), jnp.float32),
        w2=s * jax.random.normal(ks[3], (3, 3, cout, cout), jnp.float32),
        g1_w=1.0 + 0.1 * jax.random.normal(ks[4], (cout,), jnp.float32),
        g1_b=0.1 * jax.random.normal(ks[5], (cout,), jnp.float32),
        g2_w=1.0 + 0.1 * jax.random.normal(ks[6], (cout,), jnp.float32),
        g2_b=0.1 * jax.random.normal(ks[7], (cout,), jnp.float32),
    )


def reference(x_nchw, params):
    """Pure-JAX reference mirroring the PyTorch forward (for validation)."""
    Cout = params["w1"].shape[-1]
    G = min(4, Cout)
    x = jnp.transpose(x_nchw, (0, 2, 3, 1))
    x = jnp.repeat(jnp.repeat(x, 2, axis=1), 2, axis=2)

    def conv3x3(h, w):
        return jax.lax.conv_general_dilated(
            h, w, (1, 1), "SAME", dimension_numbers=("NHWC", "HWIO", "NHWC"))

    def gn(h, gamma, beta, eps=1e-5):
        B, H, W, C = h.shape
        hg = h.reshape(B, H, W, G, C // G)
        mean = hg.mean(axis=(1, 2, 4), keepdims=True)
        var = ((hg - mean) ** 2).mean(axis=(1, 2, 4), keepdims=True)
        hn = ((hg - mean) / jnp.sqrt(var + eps)).reshape(B, H, W, C)
        return hn * gamma + beta

    def silu(h):
        return h * jax.nn.sigmoid(h)

    h0 = conv3x3(x, params["w_up"])
    identity = jnp.einsum("bhwc,cf->bhwf", h0, params["w_skip"])
    h1 = silu(gn(conv3x3(h0, params["w1"]), params["g1_w"], params["g1_b"]))
    h2 = gn(conv3x3(h1, params["w2"]), params["g2_w"], params["g2_b"])
    out = silu(h2 + identity)
    return jnp.transpose(out, (0, 3, 1, 2))


# ------------------------------------ main -----------------------------------

if __name__ == "__main__":
    key = jax.random.PRNGKey(0)
    k_x, k_p = jax.random.split(key)

    B, Cin, H, W = 2, 4, 16, 16
    Cout = 8
    x = jax.random.normal(k_x, (B, Cin, H, W), jnp.float32)
    params = init_params(k_p, Cin, Cout)

    out = upsample_block(x, params)
    out = jax.block_until_ready(out)
    assert out.shape == (B, Cout, 2 * H, 2 * W), out.shape

    ref = reference(x, params)
    max_err = float(jnp.max(jnp.abs(out - ref)))
    assert max_err < 1e-2, f"mismatch vs reference: max_err={max_err}"

    print("KERNEL_OK")
</pallas_src>

<mosaic_0001>
module attributes {stable_mosaic.version = 11 : i64} {
  func.func @_upsample_block_kernel(%arg0: i32, %arg1: memref<1x8x256xf32, #tpu.memory_space<vmem>>, %arg2: memref<4x256xf32, #tpu.memory_space<vmem>>, %arg3: memref<4x8x32xf32, #tpu.memory_space<vmem>>, %arg4: memref<8x8xf32, #tpu.memory_space<vmem>>, %arg5: memref<8x72xf32, #tpu.memory_space<vmem>>, %arg6: memref<8x1xf32, #tpu.memory_space<vmem>>, %arg7: memref<8x1xf32, #tpu.memory_space<vmem>>, %arg8: memref<8x72xf32, #tpu.memory_space<vmem>>, %arg9: memref<8x1xf32, #tpu.memory_space<vmem>>, %arg10: memref<8x1xf32, #tpu.memory_space<vmem>>, %arg11: memref<8x8xf32, #tpu.memory_space<vmem>>, %arg12: memref<1x4x8x256xf32, #tpu.memory_space<vmem>>) attributes {dimension_semantics = [#tpu.dimension_semantics<parallel>], iteration_bounds = array<i64: 2>, scalar_prefetch = 0 : i64, scratch_operands = 0 : i64, tpu.core_type = #tpu.core_type<tc>, window_params = [{transform_indices = @transform_0, window_bounds = array<i64: 1, 8, 256>}, {pipeline_mode = #tpu.pipeline_mode<synchronous>, transform_indices = @transform_1, window_bounds = array<i64: 4, 256>}, {pipeline_mode = #tpu.pipeline_mode<synchronous>, transform_indices = @transform_2, window_bounds = array<i64: 4, 8, 32>}, {pipeline_mode = #tpu.pipeline_mode<synchronous>, transform_indices = @transform_3, window_bounds = array<i64: 8, 8>}, {pipeline_mode = #tpu.pipeline_mode<synchronous>, transform_indices = @transform_4, window_bounds = array<i64: 8, 72>}, {pipeline_mode = #tpu.pipeline_mode<synchronous>, transform_indices = @transform_5, window_bounds = array<i64: 8, 1>}, {pipeline_mode = #tpu.pipeline_mode<synchronous>, transform_indices = @transform_6, window_bounds = array<i64: 8, 1>}, {pipeline_mode = #tpu.pipeline_mode<synchronous>, transform_indices = @transform_7, window_bounds = array<i64: 8, 72>}, {pipeline_mode = #tpu.pipeline_mode<synchronous>, transform_indices = @transform_8, window_bounds = array<i64: 8, 1>}, {pipeline_mode = #tpu.pipeline_mode<synchronous>, transform_indices = @transform_9, window_bounds = array<i64: 8, 1>}, {pipeline_mode = #tpu.pipeline_mode<synchronous>, transform_indices = @transform_10, window_bounds = array<i64: 8, 8>}, {transform_indices = @transform_11, window_bounds = array<i64: 1, 4, 8, 256>}]} {
    %c0 = arith.constant 0 : index
    %c0_0 = arith.constant 0 : index
    %c0_1 = arith.constant 0 : index
    %0 = vector.load %arg1[%c0, %c0_0, %c0_1] : memref<1x8x256xf32, #tpu.memory_space<vmem>>, vector<1x8x256xf32>
    %1 = vector.shape_cast %0 : vector<1x8x256xf32> to vector<8x256xf32>
    %c0_2 = arith.constant 0 : index
    %c0_3 = arith.constant 0 : index
    %2 = vector.load %arg2[%c0_2, %c0_3] : memref<4x256xf32, #tpu.memory_space<vmem>>, vector<4x256xf32>
    %c0_4 = arith.constant 0 : index
    %c0_5 = arith.constant 0 : index
    %3 = vector.load %arg4[%c0_4, %c0_5] : memref<8x8xf32, #tpu.memory_space<vmem>>, vector<8x8xf32>
    %c17_i32 = arith.constant 17 : i32
    %4 = tpu.dynamic_rotate %1 by %c17_i32 dim 1 : vector<8x256xf32>, i32 -> vector<8x256xf32>
    %5 = vector.extract_strided_slice %2 {offsets = [0, 0], sizes = [1, 256], strides = [1, 1]} : vector<4x256xf32> to vector<1x256xf32>
    %6 = vector.extract_strided_slice %2 {offsets = [2, 0], sizes = [1, 256], strides = [1, 1]} : vector<4x256xf32> to vector<1x256xf32>
    %7 = arith.mulf %5, %6 : vector<1x256xf32>
    %8 = vector.broadcast %7 : vector<1x256xf32> to vector<8x256xf32>
    %9 = arith.mulf %4, %8 : vector<8x256xf32>
    %c16_i32 = arith.constant 16 : i32
    %10 = tpu.dynamic_rotate %1 by %c16_i32 dim 1 : vector<8x256xf32>, i32 -> vector<8x256xf32>
    %11 = vector.extract_strided_slice %2 {offsets = [0, 0], sizes = [1, 256], strides = [1, 1]} : vector<4x256xf32> to vector<1x256xf32>
    %12 = vector.broadcast %11 : vector<1x256xf32> to vector<8x256xf32>
    %13 = arith.mulf %10, %12 : vector<8x256xf32>
    %c1_i32 = arith.constant 1 : i32
    %14 = tpu.dynamic_rotate %1 by %c1_i32 dim 1 : vector<8x256xf32>, i32 -> vector<8x256xf32>
    %15 = vector.extract_strided_slice %2 {offsets = [2, 0], sizes = [1, 256], strides = [1, 1]} : vector<4x256xf32> to vector<1x256xf32>
    %16 = vector.broadcast %15 : vector<1x256xf32> to vector<8x256xf32>
    %17 = arith.mulf %14, %16 : vector<8x256xf32>
    %18 = tpu.concatenate %9, %13, %17, %1 in 0 : vector<8x256xf32>, vector<8x256xf32>, vector<8x256xf32>, vector<8x256xf32> -> vector<32x256xf32>
    %c0_6 = arith.constant 0 : index
    %c0_7 = arith.constant 0 : index
    %c0_8 = arith.constant 0 : index
    %19 = vector.load %arg3[%c0_6, %c0_7, %c0_8] : memref<4x8x32xf32, #tpu.memory_space<vmem>>, vector<1x8x32xf32>
    %20 = vector.shape_cast %19 : vector<1x8x32xf32> to vector<8x32xf32>
    %cst = arith.constant dense<0.000000e+00> : vector<8x256xf32>
    %21 = tpu.matmul %20, %18, %cst {dimension_numbers = #tpu.dot_dimension_numbers<[1], [0], [0], [1], [0, 0, 1, 1], [], []>} : vector<8x32xf32>, vector<32x256xf32>, vector<8x256xf32> -> vector<8x256xf32>
    %cst_9 = arith.constant dense<0.000000e+00> : vector<8x256xf32>
    %22 = tpu.matmul %3, %21, %cst_9 {dimension_numbers = #tpu.dot_dimension_numbers<[1], [0], [0], [1], [0, 0, 1, 1], [], []>} : vector<8x8xf32>, vector<8x256xf32>, vector<8x256xf32> -> vector<8x256xf32>
    %c15_i32 = arith.constant 15 : i32
    %23 = tpu.dynamic_rotate %1 by %c15_i32 dim 1 : vector<8x256xf32>, i32 -> vector<8x256xf32>
    %24 = vector.extract_strided_slice %2 {offsets = [0, 0], sizes = [1, 256], strides = [1, 1]} : vector<4x256xf32> to vector<1x256xf32>
    %25 = vector.extract_strided_slice %2 {offsets = [3, 0], sizes = [1, 256], strides = [1, 1]} : vector<4x256xf32> to vector<1x256xf32>
    %26 = arith.mulf %24, %25 : vector<1x256xf32>
    %27 = vector.broadcast %26 : vector<1x256xf32> to vector<8x256xf32>
    %28 = arith.mulf %23, %27 : vector<8x256xf32>
    %c255_i32 = arith.constant 255 : i32
    %29 = tpu.dynamic_rotate %1 by %c255_i32 dim 1 : vector<8x256xf32>, i32 -> vector<8x256xf32>
    %30 = vector.extract_strided_slice %2 {offsets = [3, 0], sizes = [1, 256], strides = [1, 1]} : vector<4x256xf32> to vector<1x256xf32>
    %31 = vector.broadcast %30 : vector<1x256xf32> to vector<8x256xf32>
    %32 = arith.mulf %29, %31 : vector<8x256xf32>
    %33 = tpu.concatenate %13, %28, %1, %32 in 0 : vector<8x256xf32>, vector<8x256xf32>, vector<8x256xf32>, vector<8x256xf32> -> vector<32x256xf32>
    %c1 = arith.constant 1 : index
    %c0_10 = arith.constant 0 : index
    %c0_11 = arith.constant 0 : index
    %34 = vector.load %arg3[%c1, %c0_10, %c0_11] : memref<4x8x32xf32, #tpu.memory_space<vmem>>, vector<1x8x32xf32>
    %35 = vector.shape_cast %34 : vector<1x8x32xf32> to vector<8x32xf32>
    %cst_12 = arith.constant dense<0.000000e+00> : vector<8x256xf32>
    %36 = tpu.matmul %35, %33, %cst_12 {dimension_numbers = #tpu.dot_dimension_numbers<[1], [0], [0], [1], [0, 0, 1, 1], [], []>} : vector<8x32xf32>, vector<32x256xf32>, vector<8x256xf32> -> vector<8x256xf32>
    %cst_13 = arith.constant dense<0.000000e+00> : vector<8x256xf32>
    %37 = tpu.matmul %3, %36, %cst_13 {dimension_numbers = #tpu.dot_dimension_numbers<[1], [0], [0], [1], [0, 0, 1, 1], [], []>} : vector<8x8xf32>, vector<8x256xf32>, vector<8x256xf32> -> vector<8x256xf32>
    %c241_i32 = arith.constant 241 : i32
    %38 = tpu.dynamic_rotate %1 by %c241_i32 dim 1 : vector<8x256xf32>, i32 -> vector<8x256xf32>
    %39 = vector.extract_strided_slice %2 {offsets = [1, 0], sizes = [1, 256], strides = [1, 1]} : vector<4x256xf32> to vector<1x256xf32>
    %40 = vector.extract_strided_slice %2 {offsets = [2, 0], sizes = [1, 256], strides = [1, 1]} : vector<4x256xf32> to vector<1x256xf32>
    %41 = arith.mulf %39, %40 : vector<1x256xf32>
    %42 = vector.broadcast %41 : vector<1x256xf32> to vector<8x256xf32>
    %43 = arith.mulf %38, %42 : vector<8x256xf32>
    %c240_i32 = arith.constant 240 : i32
    %44 = tpu.dynamic_rotate %1 by %c240_i32 dim 1 : vector<8x256xf32>, i32 -> vector<8x256xf32>
    %45 = vector.extract_strided_slice %2 {offsets = [1, 0], sizes = [1, 256], strides = [1, 1]} : vector<4x256xf32> to vector<1x256xf32>
    %46 = vector.broadcast %45 : vector<1x256xf32> to vector<8x256xf32>
    %47 = arith.mulf %44, %46 : vector<8x256xf32>
    %48 = tpu.concatenate %17, %1, %43, %47 in 0 : vector<8x256xf32>, vector<8x256xf32>, vector<8x256xf32>, vector<8x256xf32> -> vector<32x256xf32>
    %c2 = arith.constant 2 : index
    %c0_14 = arith.constant 0 : index
    %c0_15 = arith.constant 0 : index
    %49 = vector.load %arg3[%c2, %c0_14, %c0_15] : memref<4x8x32xf32, #tpu.memory_space<vmem>>, vector<1x8x32xf32>
    %50 = vector.shape_cast %49 : vector<1x8x32xf32> to vector<8x32xf32>
    %cst_16 = arith.constant dense<0.000000e+00> : vector<8x256xf32>
    %51 = tpu.matmul %50, %48, %cst_16 {dimension_numbers = #tpu.dot_dimension_numbers<[1], [0], [0], [1], [0, 0, 1, 1], [], []>} : vector<8x32xf32>, vector<32x256xf32>, vector<8x256xf32> -> vector<8x256xf32>
    %cst_17 = arith.constant dense<0.000000e+00> : vector<8x256xf32>
    %52 = tpu.matmul %3, %51, %cst_17 {dimension_numbers = #tpu.dot_dimension_numbers<[1], [0], [0], [1], [0, 0, 1, 1], [], []>} : vector<8x8xf32>, vector<8x256xf32>, vector<8x256xf32> -> vector<8x256xf32>
    %c239_i32 = arith.constant 239 : i32
    %53 = tpu.dynamic_rotate %1 by %c239_i32 dim 1 : vector<8x256xf32>, i32 -> vector<8x256xf32>
    %54 = vector.extract_strided_slice %2 {offsets = [1, 0], sizes = [1, 256], strides = [1, 1]} : vector<4x256xf32> to vector<1x256xf32>
    %55 = vector.extract_strided_slice %2 {offsets = [3, 0], sizes = [1, 256], strides = [1, 1]} : vector<4x256xf32> to vector<1x256xf32>
    %56 = arith.mulf %54, %55 : vector<1x256xf32>
    %57 = vector.broadcast %56 : vector<1x256xf32> to vector<8x256xf32>
    %58 = arith.mulf %53, %57 : vector<8x256xf32>
    %59 = tpu.concatenate %1, %32, %47, %58 in 0 : vector<8x256xf32>, vector<8x256xf32>, vector<8x256xf32>, vector<8x256xf32> -> vector<32x256xf32>
    %c3 = arith.constant 3 : index
    %c0_18 = arith.constant 0 : index
    %c0_19 = arith.constant 0 : index
    %60 = vector.load %arg3[%c3, %c0_18, %c0_19] : memref<4x8x32xf32, #tpu.memory_space<vmem>>, vector<1x8x32xf32>
    %61 = vector.shape_cast %60 : vector<1x8x32xf32> to vector<8x32xf32>
    %cst_20 = arith.constant dense<0.000000e+00> : vector<8x256xf32>
    %62 = tpu.matmul %61, %59, %cst_20 {dimension_numbers = #tpu.dot_dimension_numbers<[1], [0], [0], [1], [0, 0, 1, 1], [], []>} : vector<8x32xf32>, vector<32x256xf32>, vector<8x256xf32> -> vector<8x256xf32>
    %cst_21 = arith.constant dense<0.000000e+00> : vector<8x256xf32>
    %63 = tpu.matmul %3, %62, %cst_21 {dimension_numbers = #tpu.dot_dimension_numbers<[1], [0], [0], [1], [0, 0, 1, 1], [], []>} : vector<8x8xf32>, vector<8x256xf32>, vector<8x256xf32> -> vector<8x256xf32>
    %c0_22 = arith.constant 0 : index
    %c0_23 = arith.constant 0 : index
    %64 = vector.load %arg5[%c0_22, %c0_23] : memref<8x72xf32, #tpu.memory_space<vmem>>, vector<8x72xf32>
    %c17_i32_24 = arith.constant 17 : i32
    %65 = tpu.dynamic_rotate %62 by %c17_i32_24 dim 1 : vector<8x256xf32>, i32 -> vector<8x256xf32>
    %66 = vector.extract_strided_slice %2 {offsets = [0, 0], sizes = [1, 256], strides = [1, 1]} : vector<4x256xf32> to vector<1x256xf32>
    %67 = vector.extract_strided_slice %2 {offsets = [2, 0], sizes = [1, 256], strides = [1, 1]} : vector<4x256xf32> to vector<1x256xf32>
    %68 = arith.mulf %66, %67 : vector<1x256xf32>
    %69 = vector.broadcast %68 : vector<1x256xf32> to vector<8x256xf32>
    %70 = arith.mulf %65, %69 : vector<8x256xf32>
    %c16_i32_25 = arith.constant 16 : i32
    %71 = tpu.dynamic_rotate %51 by %c16_i32_25 dim 1 : vector<8x256xf32>, i32 -> vector<8x256xf32>
    %72 = vector.extract_strided_slice %2 {offsets = [0, 0], sizes = [1, 256], strides = [1, 1]} : vector<4x256xf32> to vector<1x256xf32>
    %73 = vector.broadcast %72 : vector<1x256xf32> to vector<8x256xf32>
    %74 = arith.mulf %71, %73 : vector<8x256xf32>
    %c16_i32_26 = arith.constant 16 : i32
    %75 = tpu.dynamic_rotate %62 by %c16_i32_26 dim 1 : vector<8x256xf32>, i32 -> vector<8x256xf32>
    %76 = vector.extract_strided_slice %2 {offsets = [0, 0], sizes = [1, 256], strides = [1, 1]} : vector<4x256xf32> to vector<1x256xf32>
    %77 = vector.broadcast %76 : vector<1x256xf32> to vector<8x256xf32>
    %78 = arith.mulf %75, %77 : vector<8x256xf32>
    %c1_i32_27 = arith.constant 1 : i32
    %79 = tpu.dynamic_rotate %36 by %c1_i32_27 dim 1 : vector<8x256xf32>, i32 -> vector<8x256xf32>
    %80 = vector.extract_strided_slice %2 {offsets = [2, 0], sizes = [1, 256], strides = [1, 1]} : vector<4x256xf32> to vector<1x256xf32>
    %81 = vector.broadcast %80 : vector<1x256xf32> to vector<8x256xf32>
    %82 = arith.mulf %79, %81 : vector<8x256xf32>
    %c1_i32_28 = arith.constant 1 : i32
    %83 = tpu.dynamic_rotate %62 by %c1_i32_28 dim 1 : vector<8x256xf32>, i32 -> vector<8x256xf32>
    %84 = vector.extract_strided_slice %2 {offsets = [2, 0], sizes = [1, 256], strides = [1, 1]} : vector<4x256xf32> to vector<1x256xf32>
    %85 = vector.broadcast %84 : vector<1x256xf32> to vector<8x256xf32>
    %86 = arith.mulf %83, %85 : vector<8x256xf32>
    %87 = tpu.concatenate %70, %74, %78, %82, %21, %36, %86, %51, %62 in 0 : vector<8x256xf32>, vector<8x256xf32>, vector<8x256xf32>, vector<8x256xf32>, vector<8x256xf32>, vector<8x256xf32>, vector<8x256xf32>, vector<8x256xf32>, vector<8x256xf32> -> vector<72x256xf32>
    %cst_29 = arith.constant dense<0.000000e+00> : vector<8x256xf32>
    %88 = tpu.matmul %64, %87, %cst_29 {dimension_numbers = #tpu.dot_dimension_numbers<[1], [0], [0], [1], [0, 0, 1, 1], [], []>} : vector<8x72xf32>, vector<72x256xf32>, vector<8x256xf32> -> vector<8x256xf32>
    %c15_i32_30 = arith.constant 15 : i32
    %89 = tpu.dynamic_rotate %51 by %c15_i32_30 dim 1 : vector<8x256xf32>, i32 -> vector<8x256xf32>
    %90 = vector.extract_strided_slice %2 {offsets = [0, 0], sizes = [1, 256], strides = [1, 1]} : vector<4x256xf32> to vector<1x256xf32>
    %91 = vector.extract_strided_slice %2 {offsets = [3, 0], sizes = [1, 256], strides = [1, 1]} : vector<4x256xf32> to vector<1x256xf32>
    %92 = arith.mulf %90, %91 : vector<1x256xf32>
    %93 = vector.broadcast %92 : vector<1x256xf32> to vector<8x256xf32>
    %94 = arith.mulf %89, %93 : vector<8x256xf32>
    %c255_i32_31 = arith.constant 255 : i32
    %95 = tpu.dynamic_rotate %21 by %c255_i32_31 dim 1 : vector<8x256xf32>, i32 -> vector<8x256xf32>
    %96 = vector.extract_strided_slice %2 {offsets = [3, 0], sizes = [1, 256], strides = [1, 1]} : vector<4x256xf32> to vector<1x256xf32>
    %97 = vector.broadcast %96 : vector<1x256xf32> to vector<8x256xf32>
    %98 = arith.mulf %95, %97 : vector<8x256xf32>
    %c255_i32_32 = arith.constant 255 : i32
    %99 = tpu.dynamic_rotate %51 by %c255_i32_32 dim 1 : vector<8x256xf32>, i32 -> vector<8x256xf32>
    %100 = vector.extract_strided_slice %2 {offsets = [3, 0], sizes = [1, 256], strides = [1, 1]} : vector<4x256xf32> to vector<1x256xf32>
    %101 = vector.broadcast %100 : vector<1x256xf32> to vector<8x256xf32>
    %102 = arith.mulf %99, %101 : vector<8x256xf32>
    %103 = tpu.concatenate %74, %78, %94, %21, %36, %98, %51, %62, %102 in 0 : vector<8x256xf32>, vector<8x256xf32>, vector<8x256xf32>, vector<8x256xf32>, vector<8x256xf32>, vector<8x256xf32>, vector<8x256xf32>, vector<8x256xf32>, vector<8x256xf32> -> vector<72x256xf32>
    %cst_33 = arith.constant dense<0.000000e+00> : vector<8x256xf32>
    %104 = tpu.matmul %64, %103, %cst_33 {dimension_numbers = #tpu.dot_dimension_numbers<[1], [0], [0], [1], [0, 0, 1, 1], [], []>} : vector<8x72xf32>, vector<72x256xf32>, vector<8x256xf32> -> vector<8x256xf32>
    %c241_i32_34 = arith.constant 241 : i32
    %105 = tpu.dynamic_rotate %36 by %c241_i32_34 dim 1 : vector<8x256xf32>, i32 -> vector<8x256xf32>
    %106 = vector.extract_strided_slice %2 {offsets = [1, 0], sizes = [1, 256], strides = [1, 1]} : vector<4x256xf32> to vector<1x256xf32>
    %107 = vector.extract_strided_slice %2 {offsets = [2, 0], sizes = [1, 256], strides = [1, 1]} : vector<4x256xf32> to vector<1x256xf32>
    %108 = arith.mulf %106, %107 : vector<1x256xf32>
    %109 = vector.broadcast %108 : vector<1x256xf32> to vector<8x256xf32>
    %110 = arith.mulf %105, %109 : vector<8x256xf32>
    %c240_i32_35 = arith.constant 240 : i32
    %111 = tpu.dynamic_rotate %21 by %c240_i32_35 dim 1 : vector<8x256xf32>, i32 -> vector<8x256xf32>
    %112 = vector.extract_strided_slice %2 {offsets = [1, 0], sizes = [1, 256], strides = [1, 1]} : vector<4x256xf32> to vector<1x256xf32>
    %113 = vector.broadcast %112 : vector<1x256xf32> to vector<8x256xf32>
    %114 = arith.mulf %111, %113 : vector<8x256xf32>
    %c240_i32_36 = arith.constant 240 : i32
    %115 = tpu.dynamic_rotate %36 by %c240_i32_36 dim 1 : vector<8x256xf32>, i32 -> vector<8x256xf32>
    %116 = vector.extract_strided_slice %2 {offsets = [1, 0], sizes = [1, 256], strides = [1, 1]} : vector<4x256xf32> to vector<1x256xf32>
    %117 = vector.broadcast %116 : vector<1x256xf32> to vector<8x256xf32>
    %118 = arith.mulf %115, %117 : vector<8x256xf32>
    %119 = tpu.concatenate %82, %21, %36, %86, %51, %62, %110, %114, %118 in 0 : vector<8x256xf32>, vector<8x256xf32>, vector<8x256xf32>, vector<8x256xf32>, vector<8x256xf32>, vector<8x256xf32>, vector<8x256xf32>, vector<8x256xf32>, vector<8x256xf32> -> vector<72x256xf32>
    %cst_37 = arith.constant dense<0.000000e+00> : vector<8x256xf32>
    %120 = tpu.matmul %64, %119, %cst_37 {dimension_numbers = #tpu.dot_dimension_numbers<[1], [0], [0], [1], [0, 0, 1, 1], [], []>} : vector<8x72xf32>, vector<72x256xf32>, vector<8x256xf32> -> vector<8x256xf32>
    %c239_i32_38 = arith.constant 239 : i32
    %121 = tpu.dynamic_rotate %21 by %c239_i32_38 dim 1 : vector<8x256xf32>, i32 -> vector<8x256xf32>
    %122 = vector.extract_strided_slice %2 {offsets = [1, 0], sizes = [1, 256], strides = [1, 1]} : vector<4x256xf32> to vector<1x256xf32>
    %123 = vector.extract_strided_slice %2 {offsets = [3, 0], sizes = [1, 256], strides = [1, 1]} : vector<4x256xf32> to vector<1x256xf32>
    %124 = arith.mulf %122, %123 : vector<1x256xf32>
    %125 = vector.broadcast %124 : vector<1x256xf32> to vector<8x256xf32>
    %126 = arith.mulf %121, %125 : vector<8x256xf32>
    %127 = tpu.concatenate %21, %36, %98, %51, %62, %102, %114, %118, %126 in 0 : vector<8x256xf32>, vector<8x256xf32>, vector<8x256xf32>, vector<8x256xf32>, vector<8x256xf32>, vector<8x256xf32>, vector<8x256xf32>, vector<8x256xf32>, vector<8x256xf32> -> vector<72x256xf32>
    %cst_39 = arith.constant dense<0.000000e+00> : vector<8x256xf32>
    %128 = tpu.matmul %64, %127, %cst_39 {dimension_numbers = #tpu.dot_dimension_numbers<[1], [0], [0], [1], [0, 0, 1, 1], [], []>} : vector<8x72xf32>, vector<72x256xf32>, vector<8x256xf32> -> vector<8x256xf32>
    %c0_40 = arith.constant 0 : index
    %c0_41 = arith.constant 0 : index
    %129 = vector.load %arg11[%c0_40, %c0_41] : memref<8x8xf32, #tpu.memory_space<vmem>>, vector<8x8xf32>
    %c0_42 = arith.constant 0 : index
    %c0_43 = arith.constant 0 : index
    %130 = vector.load %arg6[%c0_42, %c0_43] : memref<8x1xf32, #tpu.memory_space<vmem>>, vector<8x1xf32>
    %c0_44 = arith.constant 0 : index
    %c0_45 = arith.constant 0 : index
    %131 = vector.load %arg7[%c0_44, %c0_45] : memref<8x1xf32, #tpu.memory_space<vmem>>, vector<8x1xf32>
    %cst_46 = arith.constant dense<0.000000e+00> : vector<8xf32>
    %132 = vector.multi_reduction <add>, %88, %cst_46 [1] : vector<8x256xf32> to vector<8xf32>
    %133 = vector.shape_cast %132 : vector<8xf32> to vector<8x1xf32>
    %cst_47 = arith.constant dense<0.000000e+00> : vector<8xf32>
    %134 = vector.multi_reduction <add>, %104, %cst_47 [1] : vector<8x256xf32> to vector<8xf32>
    %135 = vector.shape_cast %134 : vector<8xf32> to vector<8x1xf32>
    %136 = arith.addf %133, %135 : vector<8x1xf32>
    %cst_48 = arith.constant dense<0.000000e+00> : vector<8xf32>
    %137 = vector.multi_reduction <add>, %120, %cst_48 [1] : vector<8x256xf32> to vector<8xf32>
    %138 = vector.shape_cast %137 : vector<8xf32> to vector<8x1xf32>
    %139 = arith.addf %136, %138 : vector<8x1xf32>
    %cst_49 = arith.constant dense<0.000000e+00> : vector<8xf32>
    %140 = vector.multi_reduction <add>, %128, %cst_49 [1] : vector<8x256xf32> to vector<8xf32>
    %141 = vector.shape_cast %140 : vector<8xf32> to vector<8x1xf32>
    %142 = arith.addf %139, %141 : vector<8x1xf32>
    %cst_50 = arith.constant dense<0.000000e+00> : vector<8x1xf32>
    %143 = tpu.matmul %129, %142, %cst_50 {dimension_numbers = #tpu.dot_dimension_numbers<[1], [0], [0], [1], [0, 0, 1, 1], [], []>} : vector<8x8xf32>, vector<8x1xf32>, vector<8x1xf32> -> vector<8x1xf32>
    %144 = vector.broadcast %143 : vector<8x1xf32> to vector<8x256xf32>
    %145 = arith.subf %88, %144 : vector<8x256xf32>
    %146 = vector.broadcast %143 : vector<8x1xf32> to vector<8x256xf32>
    %147 = arith.subf %104, %146 : vector<8x256xf32>
    %148 = vector.broadcast %143 : vector<8x1xf32> to vector<8x256xf32>
    %149 = arith.subf %120, %148 : vector<8x256xf32>
    %150 = vector.broadcast %143 : vector<8x1xf32> to vector<8x256xf32>
    %151 = arith.subf %128, %150 : vector<8x256xf32>
    %152 = arith.mulf %145, %145 : vector<8x256xf32>
    %cst_51 = arith.constant dense<0.000000e+00> : vector<8xf32>
    %153 = vector.multi_reduction <add>, %152, %cst_51 [1] : vector<8x256xf32> to vector<8xf32>
    %154 = vector.shape_cast %153 : vector<8xf32> to vector<8x1xf32>
    %155 = arith.mulf %147, %147 : vector<8x256xf32>
    %cst_52 = arith.constant dense<0.000000e+00> : vector<8xf32>
    %156 = vector.multi_reduction <add>, %155, %cst_52 [1] : vector<8x256xf32> to vector<8xf32>
    %157 = vector.shape_cast %156 : vector<8xf32> to vector<8x1xf32>
    %158 = arith.addf %154, %157 : vector<8x1xf32>
    %159 = arith.mulf %149, %149 : vector<8x256xf32>
    %cst_53 = arith.constant dense<0.000000e+00> : vector<8xf32>
    %160 = vector.multi_reduction <add>, %159, %cst_53 [1] : vector<8x256xf32> to vector<8xf32>
    %161 = vector.shape_cast %160 : vector<8xf32> to vector<8x1xf32>
    %162 = arith.addf %158, %161 : vector<8x1xf32>
    %163 = arith.mulf %151, %151 : vector<8x256xf32>
    %cst_54 = arith.constant dense<0.000000e+00> : vector<8xf32>
    %164 = vector.multi_reduction <add>, %163, %cst_54 [1] : vector<8x256xf32> to vector<8xf32>
    %165 = vector.shape_cast %164 : vector<8xf32> to vector<8x1xf32>
    %166 = arith.addf %162, %165 : vector<8x1xf32>
    %cst_55 = arith.constant dense<0.000000e+00> : vector<8x1xf32>
    %167 = tpu.matmul %129, %166, %cst_55 {dimension_numbers = #tpu.dot_dimension_numbers<[1], [0], [0], [1], [0, 0, 1, 1], [], []>} : vector<8x8xf32>, vector<8x1xf32>, vector<8x1xf32> -> vector<8x1xf32>
    %cst_56 = arith.constant 9.99999974E-6 : f32
    %168 = vector.broadcast %cst_56 : f32 to vector<8x1xf32>
    %169 = arith.addf %167, %168 : vector<8x1xf32>
    %170 = math.rsqrt %169 : vector<8x1xf32>
    %171 = arith.mulf %170, %130 : vector<8x1xf32>
    %172 = vector.broadcast %171 : vector<8x1xf32> to vector<8x256xf32>
    %173 = arith.mulf %145, %172 : vector<8x256xf32>
    %174 = vector.broadcast %131 : vector<8x1xf32> to vector<8x256xf32>
    %175 = arith.addf %173, %174 : vector<8x256xf32>
    %176 = vector.broadcast %171 : vector<8x1xf32> to vector<8x256xf32>
    %177 = arith.mulf %147, %176 : vector<8x256xf32>
    %178 = vector.broadcast %131 : vector<8x1xf32> to vector<8x256xf32>
    %179 = arith.addf %177, %178 : vector<8x256xf32>
    %180 = vector.broadcast %171 : vector<8x1xf32> to vector<8x256xf32>
    %181 = arith.mulf %149, %180 : vector<8x256xf32>
    %182 = vector.broadcast %131 : vector<8x1xf32> to vector<8x256xf32>
    %183 = arith.addf %181, %182 : vector<8x256xf32>
    %184 = vector.broadcast %171 : vector<8x1xf32> to vector<8x256xf32>
    %185 = arith.mulf %151, %184 : vector<8x256xf32>
    %186 = vector.broadcast %131 : vector<8x1xf32> to vector<8x256xf32>
    %187 = arith.addf %185, %186 : vector<8x256xf32>
    %188 = arith.negf %175 : vector<8x256xf32>
    %189 = math.exp %188 : vector<8x256xf32>
    %cst_57 = arith.constant 1.000000e+00 : f32
    %190 = vector.broadcast %cst_57 : f32 to vector<8x256xf32>
    %191 = arith.addf %190, %189 : vector<8x256xf32>
    %192 = arith.divf %190, %191 : vector<8x256xf32>
    %193 = arith.mulf %175, %192 : vector<8x256xf32>
    %194 = arith.negf %179 : vector<8x256xf32>
    %195 = math.exp %194 : vector<8x256xf32>
    %cst_58 = arith.constant 1.000000e+00 : f32
    %196 = vector.broadcast %cst_58 : f32 to vector<8x256xf32>
    %197 = arith.addf %196, %195 : vector<8x256xf32>
    %198 = arith.divf %196, %197 : vector<8x256xf32>
    %199 = arith.mulf %179, %198 : vector<8x256xf32>
    %200 = arith.negf %183 : vector<8x256xf32>
    %201 = math.exp %200 : vector<8x256xf32>
    %cst_59 = arith.constant 1.000000e+00 : f32
    %202 = vector.broadcast %cst_59 : f32 to vector<8x256xf32>
    %203 = arith.addf %202, %201 : vector<8x256xf32>
    %204 = arith.divf %202, %203 : vector<8x256xf32>
    %205 = arith.mulf %183, %204 : vector<8x256xf32>
    %206 = arith.negf %187 : vector<8x256xf32>
    %207 = math.exp %206 : vector<8x256xf32>
    %cst_60 = arith.constant 1.000000e+00 : f32
    %208 = vector.broadcast %cst_60 : f32 to vector<8x256xf32>
    %209 = arith.addf %208, %207 : vector<8x256xf32>
    %210 = arith.divf %208, %209 : vector<8x256xf32>
    %211 = arith.mulf %187, %210 : vector<8x256xf32>
    %c0_61 = arith.constant 0 : index
    %c0_62 = arith.constant 0 : index
    %212 = vector.load %arg8[%c0_61, %c0_62] : memref<8x72xf32, #tpu.memory_space<vmem>>, vector<8x72xf32>
    %c17_i32_63 = arith.constant 17 : i32
    %213 = tpu.dynamic_rotate %211 by %c17_i32_63 dim 1 : vector<8x256xf32>, i32 -> vector<8x256xf32>
    %214 = vector.extract_strided_slice %2 {offsets = [0, 0], sizes = [1, 256], strides = [1, 1]} : vector<4x256xf32> to vector<1x256xf32>
    %215 = vector.extract_strided_slice %2 {offsets = [2, 0], sizes = [1, 256], strides = [1, 1]} : vector<4x256xf32> to vector<1x256xf32>
    %216 = arith.mulf %214, %215 : vector<1x256xf32>
    %217 = vector.broadcast %216 : vector<1x256xf32> to vector<8x256xf32>
    %218 = arith.mulf %213, %217 : vector<8x256xf32>
    %c16_i32_64 = arith.constant 16 : i32
    %219 = tpu.dynamic_rotate %205 by %c16_i32_64 dim 1 : vector<8x256xf32>, i32 -> vector<8x256xf32>
    %220 = vector.extract_strided_slice %2 {offsets = [0, 0], sizes = [1, 256], strides = [1, 1]} : vector<4x256xf32> to vector<1x256xf32>
    %221 = vector.broadcast %220 : vector<1x256xf32> to vector<8x256xf32>
    %222 = arith.mulf %219, %221 : vector<8x256xf32>
    %c16_i32_65 = arith.constant 16 : i32
    %223 = tpu.dynamic_rotate %211 by %c16_i32_65 dim 1 : vector<8x256xf32>, i32 -> vector<8x256xf32>
    %224 = vector.extract_strided_slice %2 {offsets = [0, 0], sizes = [1, 256], strides = [1, 1]} : vector<4x256xf32> to vector<1x256xf32>
    %225 = vector.broadcast %224 : vector<1x256xf32> to vector<8x256xf32>
    %226 = arith.mulf %223, %225 : vector<8x256xf32>
    %c1_i32_66 = arith.constant 1 : i32
    %227 = tpu.dynamic_rotate %199 by %c1_i32_66 dim 1 : vector<8x256xf32>, i32 -> vector<8x256xf32>
    %228 = vector.extract_strided_slice %2 {offsets = [2, 0], sizes = [1, 256], strides = [1, 1]} : vector<4x256xf32> to vector<1x256xf32>
    %229 = vector.broadcast %228 : vector<1x256xf32> to vector<8x256xf32>
    %230 = arith.mulf %227, %229 : vector<8x256xf32>
    %c1_i32_67 = arith.constant 1 : i32
    %231 = tpu.dynamic_rotate %211 by %c1_i32_67 dim 1 : vector<8x256xf32>, i32 -> vector<8x256xf32>
    %232 = vector.extract_strided_slice %2 {offsets = [2, 0], sizes = [1, 256], strides = [1, 1]} : vector<4x256xf32> to vector<1x256xf32>
    %233 = vector.broadcast %232 : vector<1x256xf32> to vector<8x256xf32>
    %234 = arith.mulf %231, %233 : vector<8x256xf32>
    %235 = tpu.concatenate %218, %222, %226, %230, %193, %199, %234, %205, %211 in 0 : vector<8x256xf32>, vector<8x256xf32>, vector<8x256xf32>, vector<8x256xf32>, vector<8x256xf32>, vector<8x256xf32>, vector<8x256xf32>, vector<8x256xf32>, vector<8x256xf32> -> vector<72x256xf32>
    %cst_68 = arith.constant dense<0.000000e+00> : vector<8x256xf32>
    %236 = tpu.matmul %212, %235, %cst_68 {dimension_numbers = #tpu.dot_dimension_numbers<[1], [0], [0], [1], [0, 0, 1, 1], [], []>} : vector<8x72xf32>, vector<72x256xf32>, vector<8x256xf32> -> vector<8x256xf32>
    %c15_i32_69 = arith.constant 15 : i32
    %237 = tpu.dynamic_rotate %205 by %c15_i32_69 dim 1 : vector<8x256xf32>, i32 -> vector<8x256xf32>
    %238 = vector.extract_strided_slice %2 {offsets = [0, 0], sizes = [1, 256], strides = [1, 1]} : vector<4x256xf32> to vector<1x256xf32>
    %239 = vector.extract_strided_slice %2 {offsets = [3, 0], sizes = [1, 256], strides = [1, 1]} : vector<4x256xf32> to vector<1x256xf32>
    %240 = arith.mulf %238, %239 : vector<1x256xf32>
    %241 = vector.broadcast %240 : vector<1x256xf32> to vector<8x256xf32>
    %242 = arith.mulf %237, %241 : vector<8x256xf32>
    %c255_i32_70 = arith.constant 255 : i32
    %243 = tpu.dynamic_rotate %193 by %c255_i32_70 dim 1 : vector<8x256xf32>, i32 -> vector<8x256xf32>
    %244 = vector.extract_strided_slice %2 {offsets = [3, 0], sizes = [1, 256], strides = [1, 1]} : vector<4x256xf32> to vector<1x256xf32>
    %245 = vector.broadcast %244 : vector<1x256xf32> to vector<8x256xf32>
    %246 = arith.mulf %243, %245 : vector<8x256xf32>
    %c255_i32_71 = arith.constant 255 : i32
    %247 = tpu.dynamic_rotate %205 by %c255_i32_71 dim 1 : vector<8x256xf32>, i32 -> vector<8x256xf32>
    %248 = vector.extract_strided_slice %2 {offsets = [3, 0], sizes = [1, 256], strides = [1, 1]} : vector<4x256xf32> to vector<1x256xf32>
    %249 = vector.broadcast %248 : vector<1x256xf32> to vector<8x256xf32>
    %250 = arith.mulf %247, %249 : vector<8x256xf32>
    %251 = tpu.concatenate %222, %226, %242, %193, %199, %246, %205, %211, %250 in 0 : vector<8x256xf32>, vector<8x256xf32>, vector<8x256xf32>, vector<8x256xf32>, vector<8x256xf32>, vector<8x256xf32>, vector<8x256xf32>, vector<8x256xf32>, vector<8x256xf32> -> vector<72x256xf32>
    %cst_72 = arith.constant dense<0.000000e+00> : vector<8x256xf32>
    %252 = tpu.matmul %212, %251, %cst_72 {dimension_numbers = #tpu.dot_dimension_numbers<[1], [0], [0], [1], [0, 0, 1, 1], [], []>} : vector<8x72xf32>, vector<72x256xf32>, vector<8x256xf32> -> vector<8x256xf32>
    %c241_i32_73 = arith.constant 241 : i32
    %253 = tpu.dynamic_rotate %199 by %c241_i32_73 dim 1 : vector<8x256xf32>, i32 -> vector<8x256xf32>
    %254 = vector.extract_strided_slice %2 {offsets = [1, 0], sizes = [1, 256], strides = [1, 1]} : vector<4x256xf32> to vector<1x256xf32>
    %255 = vector.extract_strided_slice %2 {offsets = [2, 0], sizes = [1, 256], strides = [1, 1]} : vector<4x256xf32> to vector<1x256xf32>
    %256 = arith.mulf %254, %255 : vector<1x256xf32>
    %257 = vector.broadcast %256 : vector<1x256xf32> to vector<8x256xf32>
    %258 = arith.mulf %253, %257 : vector<8x256xf32>
    %c240_i32_74 = arith.constant 240 : i32
    %259 = tpu.dynamic_rotate %193 by %c240_i32_74 dim 1 : vector<8x256xf32>, i32 -> vector<8x256xf32>
    %260 = vector.extract_strided_slice %2 {offsets = [1, 0], sizes = [1, 256], strides = [1, 1]} : vector<4x256xf32> to vector<1x256xf32>
    %261 = vector.broadcast %260 : vector<1x256xf32> to vector<8x256xf32>
    %262 = arith.mulf %259, %261 : vector<8x256xf32>
    %c240_i32_75 = arith.constant 240 : i32
    %263 = tpu.dynamic_rotate %199 by %c240_i32_75 dim 1 : vector<8x256xf32>, i32 -> vector<8x256xf32>
    %264 = vector.extract_strided_slice %2 {offsets = [1, 0], sizes = [1, 256], strides = [1, 1]} : vector<4x256xf32> to vector<1x256xf32>
    %265 = vector.broadcast %264 : vector<1x256xf32> to vector<8x256xf32>
    %266 = arith.mulf %263, %265 : vector<8x256xf32>
    %267 = tpu.concatenate %230, %193, %199, %234, %205, %211, %258, %262, %266 in 0 : vector<8x256xf32>, vector<8x256xf32>, vector<8x256xf32>, vector<8x256xf32>, vector<8x256xf32>, vector<8x256xf32>, vector<8x256xf32>, vector<8x256xf32>, vector<8x256xf32> -> vector<72x256xf32>
    %cst_76 = arith.constant dense<0.000000e+00> : vector<8x256xf32>
    %268 = tpu.matmul %212, %267, %cst_76 {dimension_numbers = #tpu.dot_dimension_numbers<[1], [0], [0], [1], [0, 0, 1, 1], [], []>} : vector<8x72xf32>, vector<72x256xf32>, vector<8x256xf32> -> vector<8x256xf32>
    %c239_i32_77 = arith.constant 239 : i32
    %269 = tpu.dynamic_rotate %193 by %c239_i32_77 dim 1 : vector<8x256xf32>, i32 -> vector<8x256xf32>
    %270 = vector.extract_strided_slice %2 {offsets = [1, 0], sizes = [1, 256], strides = [1, 1]} : vector<4x256xf32> to vector<1x256xf32>
    %271 = vector.extract_strided_slice %2 {offsets = [3, 0], sizes = [1, 256], strides = [1, 1]} : vector<4x256xf32> to vector<1x256xf32>
    %272 = arith.mulf %270, %271 : vector<1x256xf32>
    %273 = vector.broadcast %272 : vector<1x256xf32> to vector<8x256xf32>
    %274 = arith.mulf %269, %273 : vector<8x256xf32>
    %275 = tpu.concatenate %193, %199, %246, %205, %211, %250, %262, %266, %274 in 0 : vector<8x256xf32>, vector<8x256xf32>, vector<8x256xf32>, vector<8x256xf32>, vector<8x256xf32>, vector<8x256xf32>, vector<8x256xf32>, vector<8x256xf32>, vector<8x256xf32> -> vector<72x256xf32>
    %cst_78 = arith.constant dense<0.000000e+00> : vector<8x256xf32>
    %276 = tpu.matmul %212, %275, %cst_78 {dimension_numbers = #tpu.dot_dimension_numbers<[1], [0], [0], [1], [0, 0, 1, 1], [], []>} : vector<8x72xf32>, vector<72x256xf32>, vector<8x256xf32> -> vector<8x256xf32>
    %c0_79 = arith.constant 0 : index
    %c0_80 = arith.constant 0 : index
    %277 = vector.load %arg11[%c0_79, %c0_80] : memref<8x8xf32, #tpu.memory_space<vmem>>, vector<8x8xf32>
    %c0_81 = arith.constant 0 : index
    %c0_82 = arith.constant 0 : index
    %278 = vector.load %arg9[%c0_81, %c0_82] : memref<8x1xf32, #tpu.memory_space<vmem>>, vector<8x1xf32>
    %c0_83 = arith.constant 0 : index
    %c0_84 = arith.constant 0 : index
    %279 = vector.load %arg10[%c0_83, %c0_84] : memref<8x1xf32, #tpu.memory_space<vmem>>, vector<8x1xf32>
    %cst_85 = arith.constant dense<0.000000e+00> : vector<8xf32>
    %280 = vector.multi_reduction <add>, %236, %cst_85 [1] : vector<8x256xf32> to vector<8xf32>
    %281 = vector.shape_cast %280 : vector<8xf32> to vector<8x1xf32>
    %cst_86 = arith.constant dense<0.000000e+00> : vector<8xf32>
    %282 = vector.multi_reduction <add>, %252, %cst_86 [1] : vector<8x256xf32> to vector<8xf32>
    %283 = vector.shape_cast %282 : vector<8xf32> to vector<8x1xf32>
    %284 = arith.addf %281, %283 : vector<8x1xf32>
    %cst_87 = arith.constant dense<0.000000e+00> : vector<8xf32>
    %285 = vector.multi_reduction <add>, %268, %cst_87 [1] : vector<8x256xf32> to vector<8xf32>
    %286 = vector.shape_cast %285 : vector<8xf32> to vector<8x1xf32>
    %287 = arith.addf %284, %286 : vector<8x1xf32>
    %cst_88 = arith.constant dense<0.000000e+00> : vector<8xf32>
    %288 = vector.multi_reduction <add>, %276, %cst_88 [1] : vector<8x256xf32> to vector<8xf32>
    %289 = vector.shape_cast %288 : vector<8xf32> to vector<8x1xf32>
    %290 = arith.addf %287, %289 : vector<8x1xf32>
    %cst_89 = arith.constant dense<0.000000e+00> : vector<8x1xf32>
    %291 = tpu.matmul %277, %290, %cst_89 {dimension_numbers = #tpu.dot_dimension_numbers<[1], [0], [0], [1], [0, 0, 1, 1], [], []>} : vector<8x8xf32>, vector<8x1xf32>, vector<8x1xf32> -> vector<8x1xf32>
    %292 = vector.broadcast %291 : vector<8x1xf32> to vector<8x256xf32>
    %293 = arith.subf %236, %292 : vector<8x256xf32>
    %294 = vector.broadcast %291 : vector<8x1xf32> to vector<8x256xf32>
    %295 = arith.subf %252, %294 : vector<8x256xf32>
    %296 = vector.broadcast %291 : vector<8x1xf32> to vector<8x256xf32>
    %297 = arith.subf %268, %296 : vector<8x256xf32>
    %298 = vector.broadcast %291 : vector<8x1xf32> to vector<8x256xf32>
    %299 = arith.subf %276, %298 : vector<8x256xf32>
    %300 = arith.mulf %293, %293 : vector<8x256xf32>
    %cst_90 = arith.constant dense<0.000000e+00> : vector<8xf32>
    %301 = vector.multi_reduction <add>, %300, %cst_90 [1] : vector<8x256xf32> to vector<8xf32>
    %302 = vector.shape_cast %301 : vector<8xf32> to vector<8x1xf32>
    %303 = arith.mulf %295, %295 : vector<8x256xf32>
    %cst_91 = arith.constant dense<0.000000e+00> : vector<8xf32>
    %304 = vector.multi_reduction <add>, %303, %cst_91 [1] : vector<8x256xf32> to vector<8xf32>
    %305 = vector.shape_cast %304 : vector<8xf32> to vector<8x1xf32>
    %306 = arith.addf %302, %305 : vector<8x1xf32>
    %307 = arith.mulf %297, %297 : vector<8x256xf32>
    %cst_92 = arith.constant dense<0.000000e+00> : vector<8xf32>
    %308 = vector.multi_reduction <add>, %307, %cst_92 [1] : vector<8x256xf32> to vector<8xf32>
    %309 = vector.shape_cast %308 : vector<8xf32> to vector<8x1xf32>
    %310 = arith.addf %306, %309 : vector<8x1xf32>
    %311 = arith.mulf %299, %299 : vector<8x256xf32>
    %cst_93 = arith.constant dense<0.000000e+00> : vector<8xf32>
    %312 = vector.multi_reduction <add>, %311, %cst_93 [1] : vector<8x256xf32> to vector<8xf32>
    %313 = vector.shape_cast %312 : vector<8xf32> to vector<8x1xf32>
    %314 = arith.addf %310, %313 : vector<8x1xf32>
    %cst_94 = arith.constant dense<0.000000e+00> : vector<8x1xf32>
    %315 = tpu.matmul %277, %314, %cst_94 {dimension_numbers = #tpu.dot_dimension_numbers<[1], [0], [0], [1], [0, 0, 1, 1], [], []>} : vector<8x8xf32>, vector<8x1xf32>, vector<8x1xf32> -> vector<8x1xf32>
    %cst_95 = arith.constant 9.99999974E-6 : f32
    %316 = vector.broadcast %cst_95 : f32 to vector<8x1xf32>
    %317 = arith.addf %315, %316 : vector<8x1xf32>
    %318 = math.rsqrt %317 : vector<8x1xf32>
    %319 = arith.mulf %318, %278 : vector<8x1xf32>
    %320 = vector.broadcast %319 : vector<8x1xf32> to vector<8x256xf32>
    %321 = arith.mulf %293, %320 : vector<8x256xf32>
    %322 = vector.broadcast %279 : vector<8x1xf32> to vector<8x256xf32>
    %323 = arith.addf %321, %322 : vector<8x256xf32>
    %324 = vector.broadcast %319 : vector<8x1xf32> to vector<8x256xf32>
    %325 = arith.mulf %295, %324 : vector<8x256xf32>
    %326 = vector.broadcast %279 : vector<8x1xf32> to vector<8x256xf32>
    %327 = arith.addf %325, %326 : vector<8x256xf32>
    %328 = vector.broadcast %319 : vector<8x1xf32> to vector<8x256xf32>
    %329 = arith.mulf %297, %328 : vector<8x256xf32>
    %330 = vector.broadcast %279 : vector<8x1xf32> to vector<8x256xf32>
    %331 = arith.addf %329, %330 : vector<8x256xf32>
    %332 = vector.broadcast %319 : vector<8x1xf32> to vector<8x256xf32>
    %333 = arith.mulf %299, %332 : vector<8x256xf32>
    %334 = vector.broadcast %279 : vector<8x1xf32> to vector<8x256xf32>
    %335 = arith.addf %333, %334 : vector<8x256xf32>
    %336 = arith.addf %323, %22 : vector<8x256xf32>
    %337 = arith.negf %336 : vector<8x256xf32>
    %338 = math.exp %337 : vector<8x256xf32>
    %cst_96 = arith.constant 1.000000e+00 : f32
    %339 = vector.broadcast %cst_96 : f32 to vector<8x256xf32>
    %340 = arith.addf %339, %338 : vector<8x256xf32>
    %341 = arith.divf %339, %340 : vector<8x256xf32>
    %342 = arith.mulf %336, %341 : vector<8x256xf32>
    %c0_97 = arith.constant 0 : index
    %c0_98 = arith.constant 0 : index
    %c0_99 = arith.constant 0 : index
    %c0_100 = arith.constant 0 : index
    %343 = vector.load %arg12[%c0_97, %c0_98, %c0_99, %c0_100] : memref<1x4x8x256xf32, #tpu.memory_space<vmem>>, vector<1x1x8x256xf32>
    %344 = vector.shape_cast %343 : vector<1x1x8x256xf32> to vector<8x256xf32>
    %345 = vector.shape_cast %342 : vector<8x256xf32> to vector<1x1x8x256xf32>
    tpu.vector_store %arg12[%c0_97, %c0_98, %c0_99, %c0_100], %345 {strides = array<i32>} : memref<1x4x8x256xf32, #tpu.memory_space<vmem>>, vector<1x1x8x256xf32>,
    %346 = arith.addf %327, %37 : vector<8x256xf32>
    %347 = arith.negf %346 : vector<8x256xf32>
    %348 = math.exp %347 : vector<8x256xf32>
    %cst_101 = arith.constant 1.000000e+00 : f32
    %349 = vector.broadcast %cst_101 : f32 to vector<8x256xf32>
    %350 = arith.addf %349, %348 : vector<8x256xf32>
    %351 = arith.divf %349, %350 : vector<8x256xf32>
    %352 = arith.mulf %346, %351 : vector<8x256xf32>
    %c0_102 = arith.constant 0 : index
    %c1_103 = arith.constant 1 : index
    %c0_104 = arith.constant 0 : index
    %c0_105 = arith.constant 0 : index
    %353 = vector.load %arg12[%c0_102, %c1_103, %c0_104, %c0_105] : memref<1x4x8x256xf32, #tpu.memory_space<vmem>>, vector<1x1x8x256xf32>
    %354 = vector.shape_cast %353 : vector<1x1x8x256xf32> to vector<8x256xf32>
    %355 = vector.shape_cast %352 : vector<8x256xf32> to vector<1x1x8x256xf32>
    tpu.vector_store %arg12[%c0_102, %c1_103, %c0_104, %c0_105], %355 {strides = array<i32>} : memref<1x4x8x256xf32, #tpu.memory_space<vmem>>, vector<1x1x8x256xf32>,
    %356 = arith.addf %331, %52 : vector<8x256xf32>
    %357 = arith.negf %356 : vector<8x256xf32>
    %358 = math.exp %357 : vector<8x256xf32>
    %cst_106 = arith.constant 1.000000e+00 : f32
    %359 = vector.broadcast %cst_106 : f32 to vector<8x256xf32>
    %360 = arith.addf %359, %358 : vector<8x256xf32>
    %361 = arith.divf %359, %360 : vector<8x256xf32>
    %362 = arith.mulf %356, %361 : vector<8x256xf32>
    %c0_107 = arith.constant 0 : index
    %c2_108 = arith.constant 2 : index
    %c0_109 = arith.constant 0 : index
    %c0_110 = arith.constant 0 : index
    %363 = vector.load %arg12[%c0_107, %c2_108, %c0_109, %c0_110] : memref<1x4x8x256xf32, #tpu.memory_space<vmem>>, vector<1x1x8x256xf32>
    %364 = vector.shape_cast %363 : vector<1x1x8x256xf32> to vector<8x256xf32>
    %365 = vector.shape_cast %362 : vector<8x256xf32> to vector<1x1x8x256xf32>
    tpu.vector_store %arg12[%c0_107, %c2_108, %c0_109, %c0_110], %365 {strides = array<i32>} : memref<1x4x8x256xf32, #tpu.memory_space<vmem>>, vector<1x1x8x256xf32>,
    %366 = arith.addf %335, %63 : vector<8x256xf32>
    %367 = arith.negf %366 : vector<8x256xf32>
    %368 = math.exp %367 : vector<8x256xf32>
    %cst_111 = arith.constant 1.000000e+00 : f32
    %369 = vector.broadcast %cst_111 : f32 to vector<8x256xf32>
    %370 = arith.addf %369, %368 : vector<8x256xf32>
    %371 = arith.divf %369, %370 : vector<8x256xf32>
    %372 = arith.mulf %366, %371 : vector<8x256xf32>
    %c0_112 = arith.constant 0 : index
    %c3_113 = arith.constant 3 : index
    %c0_114 = arith.constant 0 : index
    %c0_115 = arith.constant 0 : index
    %373 = vector.load %arg12[%c0_112, %c3_113, %c0_114, %c0_115] : memref<1x4x8x256xf32, #tpu.memory_space<vmem>>, vector<1x1x8x256xf32>
    %374 = vector.shape_cast %373 : vector<1x1x8x256xf32> to vector<8x256xf32>
    %375 = vector.shape_cast %372 : vector<8x256xf32> to vector<1x1x8x256xf32>
    tpu.vector_store %arg12[%c0_112, %c3_113, %c0_114, %c0_115], %375 {strides = array<i32>} : memref<1x4x8x256xf32, #tpu.memory_space<vmem>>, vector<1x1x8x256xf32>,
    return
  }
  func.func @transform_0(%arg0: i32) -> (i32, i32, i32) {
    %c0_i32 = arith.constant 0 : i32
    %c0_i32_0 = arith.constant 0 : i32
    %c0_i32_1 = arith.constant 0 : i32
    return %arg0, %c0_i32, %c0_i32_0 : i32, i32, i32
  }
  func.func @transform_1(%arg0: i32) -> (i32, i32) {
    %c0_i32 = arith.constant 0 : i32
    %c0_i32_0 = arith.constant 0 : i32
    %c0_i32_1 = arith.constant 0 : i32
    return %c0_i32, %c0_i32_0 : i32, i32
  }
  func.func @transform_2(%arg0: i32) -> (i32, i32, i32) {
    %c0_i32 = arith.constant 0 : i32
    %c0_i32_0 = arith.constant 0 : i32
    %c0_i32_1 = arith.constant 0 : i32
    %c0_i32_2 = arith.constant 0 : i32
    return %c0_i32, %c0_i32_0, %c0_i32_1 : i32, i32, i32
  }
  func.func @transform_3(%arg0: i32) -> (i32, i32) {
    %c0_i32 = arith.constant 0 : i32
    %c0_i32_0 = arith.constant 0 : i32
    %c0_i32_1 = arith.constant 0 : i32
    return %c0_i32, %c0_i32_0 : i32, i32
  }
  func.func @transform_4(%arg0: i32) -> (i32, i32) {
    %c0_i32 = arith.constant 0 : i32
    %c0_i32_0 = arith.constant 0 : i32
    %c0_i32_1 = arith.constant 0 : i32
    return %c0_i32, %c0_i32_0 : i32, i32
  }
  func.func @transform_5(%arg0: i32) -> (i32, i32) {
    %c0_i32 = arith.constant 0 : i32
    %c0_i32_0 = arith.constant 0 : i32
    %c0_i32_1 = arith.constant 0 : i32
    return %c0_i32, %c0_i32_0 : i32, i32
  }
  func.func @transform_6(%arg0: i32) -> (i32, i32) {
    %c0_i32 = arith.constant 0 : i32
    %c0_i32_0 = arith.constant 0 : i32
    %c0_i32_1 = arith.constant 0 : i32
    return %c0_i32, %c0_i32_0 : i32, i32
  }
  func.func @transform_7(%arg0: i32) -> (i32, i32) {
    %c0_i32 = arith.constant 0 : i32
    %c0_i32_0 = arith.constant 0 : i32
    %c0_i32_1 = arith.constant 0 : i32
    return %c0_i32, %c0_i32_0 : i32, i32
  }
  func.func @transform_8(%arg0: i32) -> (i32, i32) {
    %c0_i32 = arith.constant 0 : i32
    %c0_i32_0 = arith.constant 0 : i32
    %c0_i32_1 = arith.constant 0 : i32
    return %c0_i32, %c0_i32_0 : i32, i32
  }
  func.func @transform_9(%arg0: i32) -> (i32, i32) {
    %c0_i32 = arith.constant 0 : i32
    %c0_i32_0 = arith.constant 0 : i32
    %c0_i32_1 = arith.constant 0 : i32
    return %c0_i32, %c0_i32_0 : i32, i32
  }
  func.func @transform_10(%arg0: i32) -> (i32, i32) {
    %c0_i32 = arith.constant 0 : i32
    %c0_i32_0 = arith.constant 0 : i32
    %c0_i32_1 = arith.constant 0 : i32
    return %c0_i32, %c0_i32_0 : i32, i32
  }
  func.func @transform_11(%arg0: i32) -> (i32, i32, i32, i32) {
    %c0_i32 = arith.constant 0 : i32
    %c0_i32_0 = arith.constant 0 : i32
    %c0_i32_1 = arith.constant 0 : i32
    %c0_i32_2 = arith.constant 0 : i32
    return %arg0, %c0_i32, %c0_i32_0, %c0_i32_1 : i32, i32, i32, i32
  }
}

</mosaic_0001>

<llo_original>
// kernel: tpu_custom_call.1
$region0: #{tpu_custom_call.1}
  #allocation0 [shape = 'u32[]', space=smem, size = 0x4, offset = 0x4, fixed_abs, tag = 'smem constant byte address 0x4 - core index']
  #allocation1 [shape = 'u32[144,128]{1,0:T(1,128)}', space=vmem, size = 0x12000, scoped, tag = 'internal scratch']
  %s0 = inlined_call_operand.hbm [shape: f32[2,8,256], index: 0, kind: input, shape index: {}]
  %s1 = inlined_call_operand.hbm [shape: f32[4,256], index: 1, kind: input, shape index: {}]
  %s2 = inlined_call_operand.hbm [shape: f32[4,8,32], index: 2, kind: input, shape index: {}]
  %s3 = inlined_call_operand.hbm [shape: f32[8,8], index: 3, kind: input, shape index: {}]
  %s4 = inlined_call_operand.hbm [shape: f32[8,72], index: 4, kind: input, shape index: {}]
  %s5 = inlined_call_operand.hbm [shape: f32[8,1], index: 5, kind: input, shape index: {}]
  %s6 = inlined_call_operand.hbm [shape: f32[8,1], index: 6, kind: input, shape index: {}]
  %s7 = inlined_call_operand.hbm [shape: f32[8,72], index: 7, kind: input, shape index: {}]
  %s8 = inlined_call_operand.hbm [shape: f32[8,1], index: 8, kind: input, shape index: {}]
  %s9 = inlined_call_operand.hbm [shape: f32[8,1], index: 9, kind: input, shape index: {}]
  %s10 = inlined_call_operand.hbm [shape: f32[8,8], index: 10, kind: input, shape index: {}]
  %s11 = inlined_call_operand.hbm [shape: f32[2,4,8,256], index: 11, kind: output, shape index: {}]
  %s12 = sld [smem:[#allocation0]]
  $region121: #{tpu_custom_call.1} parent=0
    _
  %s14 = ssub.s32 1, %s12
  %s15 = scalar_select 0, %s14, %s12
  $region1: #{tpu_custom_call.1} parent=0
    #allocation2 [shape = 'u8[16384]{0}', space=vmem, size = 0x4000, scoped, tag = 'input window, operand 0']
    #allocation3 [shape = 's32[2]{0}', space=sflag, size = 0x8, scoped, tag = 'scoped memory for tpu_custom_call.1']
    #allocation4 [shape = 's32[2]{0}', space=sflag, size = 0x8, scoped, tag = 'scoped memory for tpu_custom_call.1']
    #allocation5 [shape = 'u8[4096]{0}', space=vmem, size = 0x1000, scoped, tag = 'input window, operand 1, single buffered']
    #allocation6 [shape = 's32[1]{0}', space=sflag, size = 0x4, scoped, tag = 'scoped memory for tpu_custom_call.1']
    #allocation7 [shape = 'u8[16384]{0}', space=vmem, size = 0x4000, scoped, tag = 'input window, operand 2, single buffered']
    #allocation8 [shape = 'u8[4096]{0}', space=vmem, size = 0x1000, scoped, tag = 'input window, operand 3, single buffered']
    #allocation9 [shape = 's32[1]{0}', space=sflag, size = 0x4, scoped, tag = 'scoped memory for tpu_custom_call.1']
    #allocation10 [shape = 'u8[4096]{0}', space=vmem, size = 0x1000, scoped, tag = 'input window, operand 4, single buffered']
    #allocation11 [shape = 'u8[4096]{0}', space=vmem, size = 0x1000, scoped, tag = 'input window, operand 5, single buffered']
    #allocation12 [shape = 's32[1]{0}', space=sflag, size = 0x4, scoped, tag = 'scoped memory for tpu_custom_call.1']
    #allocation13 [shape = 'u8[4096]{0}', space=vmem, size = 0x1000, scoped, tag = 'input window, operand 6, single buffered']
    #allocation14 [shape = 'u8[4096]{0}', space=vmem, size = 0x1000, scoped, tag = 'input window, operand 7, single buffered']
    #allocation15 [shape = 's32[1]{0}', space=sflag, size = 0x4, scoped, tag = 'scoped memory for tpu_custom_call.1']
    #allocation16 [shape = 'u8[4096]{0}', space=vmem, size = 0x1000, scoped, tag = 'input window, operand 8, single buffered']
    #allocation17 [shape = 'u8[4096]{0}', space=vmem, size = 0x1000, scoped, tag = 'input window, operand 9, single buffered']
    #allocation18 [shape = 's32[1]{0}', space=sflag, size = 0x4, scoped, tag = 'scoped memory for tpu_custom_call.1']
    #allocation19 [shape = 'u8[4096]{0}', space=vmem, size = 0x1000, scoped, tag = 'input window, operand 10, single buffered']
    #allocation20 [shape = 'u8[65536]{0}', space=vmem, size = 0x10000, scoped, tag = 'output window, operand 0']
    %16 = vsyncpa [#allocation3], 0
    %s17 = scalar_lea.sflag [#allocation3], 1
    %18 = vsyncpa %s17, 0
    %19 = vsyncpa [#allocation6], 0
    %20 = vsyncpa [#allocation9], 0
    %21 = vsyncpa [#allocation12], 0
    %22 = vsyncpa [#allocation15], 0
    %23 = vsyncpa [#allocation18], 0
    %24 = vsyncpa [#allocation4], 0
    %s25 = scalar_lea.sflag [#allocation4], 1
    %26 = vsyncpa %s25, 0
    loop: start=0, step=1, limit=4
    $region2: #{tpu_custom_call.1} parent=1 // loop_pre_header
      _
    $region3: #{tpu_custom_call.1} parent=1 // loop_header
      %s28 = sphi 0, %s32
      %p29 = scmp.ge.s32.totalorder %s28, 4
      %s38 = sphi 0, %s40
      %s41 = sphi 0, %s38
      %s42 = sphi 0, %s41
      %s58 = sphi 0, %s42
      %s62 = sphi 0, %s62
      %s64 = sphi 0, %s62
      %s65 = sphi 0, %s64
      %s79 = sphi 0, %s65
      %s83 = sphi 0, %s83
      %s85 = sphi 0, %s83
      %s86 = sphi 0, %s85
      %s100 = sphi 0, %s86
      %s104 = sphi 0, %s104
      %s106 = sphi 0, %s104
      %s107 = sphi 0, %s106
      %s121 = sphi 0, %s107
      %s125 = sphi 0, %s125
      %s127 = sphi 0, %s125
      %s128 = sphi 0, %s127
      %s142 = sphi 0, %s128
      %s146 = sphi 0, %s146
      %s148 = sphi 0, %s146
      %s149 = sphi 0, %s148
      %s163 = sphi 0, %s149
      %s167 = sphi 0, %s167
      %s169 = sphi 0, %s167
      %s170 = sphi 0, %s169
      %s184 = sphi 0, %s170
      %s188 = sphi 0, %s188
      %s190 = sphi 0, %s188
      %s191 = sphi 0, %s190
      %s205 = sphi 0, %s191
      %s209 = sphi 0, %s209
      %s211 = sphi 0, %s209
      %s212 = sphi 0, %s211
      %s226 = sphi 0, %s212
      %s230 = sphi 0, %s230
      %s232 = sphi 0, %s230
      %s233 = sphi 0, %s232
      %s247 = sphi 0, %s233
      %s251 = sphi 0, %s251
      %s253 = sphi 0, %s251
      %s254 = sphi 0, %s253
      %s268 = sphi 0, %s254
      %s274 = sphi 0, %s276
      %s277 = sphi 0, %s274
      %s278 = sphi 0, %s277
      %s294 = sphi 0, %s278
    $region4: #{tpu_custom_call.1} parent=1 // loop_header_branch
      %31 = sbr.rel (%p29) target = $region8
    $region5: #{tpu_custom_call.1} parent=1 // loop_body
      %s33 = ssub.s32 %s28, 1
      %s34 = ssub.s32 %s28, 2
      %s35 = sadd.s32 %s28, 1
      %s36 = ssub.s32 %s28, %s35
      %p37 = scmp.eq.s32.totalorder %s36, 0
      %s39 = sadd.s32 %s38, 1
      %s40 = scalar_select %p37, %s38, %s39
      %p43 = pneg %p37
      %p44 = scmp.eq.s32.totalorder %s28, 1
      %p45 = por %p43, %p44
      %p46 = scmp.ne.s32.totalorder %s38, %s41
      %p47 = scmp.eq.s32.totalorder %s28, 0
      %p48 = por %p46, %p47
      %p49 = scmp.ne.s32.totalorder %s38, %s41
      %p50 = scmp.eq.s32.totalorder %s33, 1
      %p51 = por %p49, %p50
      %p52 = scmp.ne.s32.totalorder %s41, %s42
      %p53 = scmp.eq.s32.totalorder %s33, 0
      %p54 = por %p52, %p53
      %p55 = scmp.ne.s32.totalorder %s41, %s42
      %p56 = scmp.eq.s32.totalorder %s34, 1
      %p57 = por %p55, %p56
      %p59 = scmp.ne.s32.totalorder %s42, %s58
      %p60 = scmp.eq.s32.totalorder %s34, 0
      %p61 = por %p59, %p60
      %s63 = sadd.s32 %s62, 1
      %p66 = scmp.eq.s32.totalorder %s28, 1
      %p67 = scmp.ne.s32.totalorder %s62, %s64
      %p68 = scmp.eq.s32.totalorder %s28, 0
      %p69 = por %p67, %p68
      %p70 = scmp.ne.s32.totalorder %s62, %s64
      %p71 = scmp.eq.s32.totalorder %s33, 1
      %p72 = por %p70, %p71
      %p73 = scmp.ne.s32.totalorder %s64, %s65
      %p74 = scmp.eq.s32.totalorder %s33, 0
      %p75 = por %p73, %p74
      %p76 = scmp.ne.s32.totalorder %s64, %s65
      %p77 = scmp.eq.s32.totalorder %s34, 1
      %p78 = por %p76, %p77
      %p80 = scmp.ne.s32.totalorder %s65, %s79
      %p81 = scmp.eq.s32.totalorder %s34, 0
      %p82 = por %p80, %p81
      %s84 = sadd.s32 %s83, 1
      %p87 = scmp.eq.s32.totalorder %s28, 1
      %p88 = scmp.ne.s32.totalorder %s83, %s85
      %p89 = scmp.eq.s32.totalorder %s28, 0
      %p90 = por %p88, %p89
      %p91 = scmp.ne.s32.totalorder %s83, %s85
      %p92 = scmp.eq.s32.totalorder %s33, 1
      %p93 = por %p91, %p92
      %p94 = scmp.ne.s32.totalorder %s85, %s86
      %p95 = scmp.eq.s32.totalorder %s33, 0
      %p96 = por %p94, %p95
      %p97 = scmp.ne.s32.totalorder %s85, %s86
      %p98 = scmp.eq.s32.totalorder %s34, 1
      %p99 = por %p97, %p98
      %p101 = scmp.ne.s32.totalorder %s86, %s100
      %p102 = scmp.eq.s32.totalorder %s34, 0
      %p103 = por %p101, %p102
      %s105 = sadd.s32 %s104, 1
      %p108 = scmp.eq.s32.totalorder %s28, 1
      %p109 = scmp.ne.s32.totalorder %s104, %s106
      %p110 = scmp.eq.s32.totalorder %s28, 0
      %p111 = por %p109, %p110
      %p112 = scmp.ne.s32.totalorder %s104, %s106
      %p113 = scmp.eq.s32.totalorder %s33, 1
      %p114 = por %p112, %p113
      %p115 = scmp.ne.s32.totalorder %s106, %s107
      %p116 = scmp.eq.s32.totalorder %s33, 0
      %p117 = por %p115, %p116
      %p118 = scmp.ne.s32.totalorder %s106, %s107
      %p119 = scmp.eq.s32.totalorder %s34, 1
      %p120 = por %p118, %p119
      %p122 = scmp.ne.s32.totalorder %s107, %s121
      %p123 = scmp.eq.s32.totalorder %s34, 0
      %p124 = por %p122, %p123
      %s126 = sadd.s32 %s125, 1
      %p129 = scmp.eq.s32.totalorder %s28, 1
      %p130 = scmp.ne.s32.totalorder %s125, %s127
      %p131 = scmp.eq.s32.totalorder %s28, 0
      %p132 = por %p130, %p131
      %p133 = scmp.ne.s32.totalorder %s125, %s127
      %p134 = scmp.eq.s32.totalorder %s33, 1
      %p135 = por %p133, %p134
      %p136 = scmp.ne.s32.totalorder %s127, %s128
      %p137 = scmp.eq.s32.totalorder %s33, 0
      %p138 = por %p136, %p137
      %p139 = scmp.ne.s32.totalorder %s127, %s128
      %p140 = scmp.eq.s32.totalorder %s34, 1
      %p141 = por %p139, %p140
      %p143 = scmp.ne.s32.totalorder %s128, %s142
      %p144 = scmp.eq.s32.totalorder %s34, 0
      %p145 = por %p143, %p144
      %s147 = sadd.s32 %s146, 1
      %p150 = scmp.eq.s32.totalorder %s28, 1
      %p151 = scmp.ne.s32.totalorder %s146, %s148
      %p152 = scmp.eq.s32.totalorder %s28, 0
      %p153 = por %p151, %p152
      %p154 = scmp.ne.s32.totalorder %s146, %s148
      %p155 = scmp.eq.s32.totalorder %s33, 1
      %p156 = por %p154, %p155
      %p157 = scmp.ne.s32.totalorder %s148, %s149
      %p158 = scmp.eq.s32.totalorder %s33, 0
      %p159 = por %p157, %p158
      %p160 = scmp.ne.s32.totalorder %s148, %s149
      %p161 = scmp.eq.s32.totalorder %s34, 1
      %p162 = por %p160, %p161
      %p164 = scmp.ne.s32.totalorder %s149, %s163
      %p165 = scmp.eq.s32.totalorder %s34, 0
      %p166 = por %p164, %p165
      %s168 = sadd.s32 %s167, 1
      %p171 = scmp.eq.s32.totalorder %s28, 1
      %p172 = scmp.ne.s32.totalorder %s167, %s169
      %p173 = scmp.eq.s32.totalorder %s28, 0
      %p174 = por %p172, %p173
      %p175 = scmp.ne.s32.totalorder %s167, %s169
      %p176 = scmp.eq.s32.totalorder %s33, 1
      %p177 = por %p175, %p176
      %p178 = scmp.ne.s32.totalorder %s169, %s170
      %p179 = scmp.eq.s32.totalorder %s33, 0
      %p180 = por %p178, %p179
      %p181 = scmp.ne.s32.totalorder %s169, %s170
      %p182 = scmp.eq.s32.totalorder %s34, 1
      %p183 = por %p181, %p182
      %p185 = scmp.ne.s32.totalorder %s170, %s184
      %p186 = scmp.eq.s32.totalorder %s34, 0
      %p187 = por %p185, %p186
      %s189 = sadd.s32 %s188, 1
      %p192 = scmp.eq.s32.totalorder %s28, 1
      %p193 = scmp.ne.s32.totalorder %s188, %s190
      %p194 = scmp.eq.s32.totalorder %s28, 0
      %p195 = por %p193, %p194
      %p196 = scmp.ne.s32.totalorder %s188, %s190
      %p197 = scmp.eq.s32.totalorder %s33, 1
      %p198 = por %p196, %p197
      %p199 = scmp.ne.s32.totalorder %s190, %s191
      %p200 = scmp.eq.s32.totalorder %s33, 0
      %p201 = por %p199, %p200
      %p202 = scmp.ne.s32.totalorder %s190, %s191
      %p203 = scmp.eq.s32.totalorder %s34, 1
      %p204 = por %p202, %p203
      %p206 = scmp.ne.s32.totalorder %s191, %s205
      %p207 = scmp.eq.s32.totalorder %s34, 0
      %p208 = por %p206, %p207
      %s210 = sadd.s32 %s209, 1
      %p213 = scmp.eq.s32.totalorder %s28, 1
      %p214 = scmp.ne.s32.totalorder %s209, %s211
      %p215 = scmp.eq.s32.totalorder %s28, 0
      %p216 = por %p214, %p215
      %p217 = scmp.ne.s32.totalorder %s209, %s211
      %p218 = scmp.eq.s32.totalorder %s33, 1
      %p219 = por %p217, %p218
      %p220 = scmp.ne.s32.totalorder %s211, %s212
      %p221 = scmp.eq.s32.totalorder %s33, 0
      %p222 = por %p220, %p221
      %p223 = scmp.ne.s32.totalorder %s211, %s212
      %p224 = scmp.eq.s32.totalorder %s34, 1
      %p225 = por %p223, %p224
      %p227 = scmp.ne.s32.totalorder %s212, %s226
      %p228 = scmp.eq.s32.totalorder %s34, 0
      %p229 = por %p227, %p228
      %s231 = sadd.s32 %s230, 1
      %p234 = scmp.eq.s32.totalorder %s28, 1
      %p235 = scmp.ne.s32.totalorder %s230, %s232
      %p236 = scmp.eq.s32.totalorder %s28, 0
      %p237 = por %p235, %p236
      %p238 = scmp.ne.s32.totalorder %s230, %s232
      %p239 = scmp.eq.s32.totalorder %s33, 1
      %p240 = por %p238, %p239
      %p241 = scmp.ne.s32.totalorder %s232, %s233
      %p242 = scmp.eq.s32.totalorder %s33, 0
      %p243 = por %p241, %p242
      %p244 = scmp.ne.s32.totalorder %s232, %s233
      %p245 = scmp.eq.s32.totalorder %s34, 1
      %p246 = por %p244, %p245
      %p248 = scmp.ne.s32.totalorder %s233, %s247
      %p249 = scmp.eq.s32.totalorder %s34, 0
      %p250 = por %p248, %p249
      %s252 = sadd.s32 %s251, 1
      %p255 = scmp.eq.s32.totalorder %s28, 1
      %p256 = scmp.ne.s32.totalorder %s251, %s253
      %p257 = scmp.eq.s32.totalorder %s28, 0
      %p258 = por %p256, %p257
      %p259 = scmp.ne.s32.totalorder %s251, %s253
      %p260 = scmp.eq.s32.totalorder %s33, 1
      %p261 = por %p259, %p260
      %p262 = scmp.ne.s32.totalorder %s253, %s254
      %p263 = scmp.eq.s32.totalorder %s33, 0
      %p264 = por %p262, %p263
      %p265 = scmp.ne.s32.totalorder %s253, %s254
      %p266 = scmp.eq.s32.totalorder %s34, 1
      %p267 = por %p265, %p266
      %p269 = scmp.ne.s32.totalorder %s254, %s268
      %p270 = scmp.eq.s32.totalorder %s34, 0
      %p271 = por %p269, %p270
      %s272 = ssub.s32 %s28, %s35
      %p273 = scmp.eq.s32.totalorder %s272, 0
      %s275 = sadd.s32 %s274, 1
      %s276 = scalar_select %p273, %s274, %s275
      %p279 = pneg %p273
      %p280 = scmp.eq.s32.totalorder %s28, 1
      %p281 = por %p279, %p280
      %p282 = scmp.ne.s32.totalorder %s274, %s277
      %p283 = scmp.eq.s32.totalorder %s28, 0
      %p284 = por %p282, %p283
      %p285 = scmp.ne.s32.totalorder %s274, %s277
      %p286 = scmp.eq.s32.totalorder %s33, 1
      %p287 = por %p285, %p286
      %p288 = scmp.ne.s32.totalorder %s277, %s278
      %p289 = scmp.eq.s32.totalorder %s33, 0
      %p290 = por %p288, %p289
      %p291 = scmp.ne.s32.totalorder %s277, %s278
      %p292 = scmp.eq.s32.totalorder %s34, 1
      %p293 = por %p291, %p292
      %p295 = scmp.ne.s32.totalorder %s278, %s294
      %p296 = scmp.eq.s32.totalorder %s34, 0
      %p297 = por %p295, %p296
      %p298 = scmp.le.s32.totalorder 1, %s28
      %p299 = scmp.lt.s32.totalorder %s28, 3
      %p300 = pnand %p298, %p299
      %p301 = pneg %p300
      // Predicated region
      $region9: #{tpu_custom_call.1} parent=5 // pred_check
        _
      $region10: #{tpu_custom_call.1} parent=5 // pred_check_branch
        %303 = sbr.rel (%p300) target = $region12
      $region11: #{tpu_custom_call.1} parent=5 // pred_region
        %s304 = ssub.s32 %s28, 1
        // Predicated region
        $region13: #{tpu_custom_call.1} parent=11 // pred_check
          %p305 = pneg %p75
        $region14: #{tpu_custom_call.1} parent=11 // pred_check_branch
          %307 = sbr.rel (%p305) target = $region16
        $region15: #{tpu_custom_call.1} parent=11 // pred_region
          %s309 = ssub.s32 128, 128
          %310 = vsyncadd [#allocation6], %s309
          %s312 = sshll.u32 [#allocation5], 4
          %s313 = int_to_ptr.vmem [resolvable:$true] %s312
          %315 = dma.hbm_to_vmem [thread:$0]  %s1, 128, %s313, [#allocation6]
        $region16: #{tpu_custom_call.1} parent=11 // pred_fallthru
          _
        // Predicated region
        $region17: #{tpu_custom_call.1} parent=11 // pred_check
          %p316 = pneg %p96
        $region18: #{tpu_custom_call.1} parent=11 // pred_check_branch
          %318 = sbr.rel (%p316) target = $region20
        $region19: #{tpu_custom_call.1} parent=11 // pred_region
          %s320 = ssub.s32 512, 512
          %321 = vsyncadd [#allocation6], %s320
          %s322 = sshll.u32 [#allocation7], 4
          %s323 = int_to_ptr.vmem [resolvable:$true] %s322
          %328 = dma.hbm_to_vmem [thread:$0]  %s2, 512, %s323, [#allocation6], 128, 128, 8
        $region20: #{tpu_custom_call.1} parent=11 // pred_fallthru
          _
        // Predicated region
        $region21: #{tpu_custom_call.1} parent=11 // pred_check
          %p329 = pneg %p117
        $region22: #{tpu_custom_call.1} parent=11 // pred_check_branch
          %331 = sbr.rel (%p329) target = $region24
        $region23: #{tpu_custom_call.1} parent=11 // pred_region
          %s333 = ssub.s32 128, 128
          %334 = vsyncadd [#allocation9], %s333
          %s336 = sshll.u32 [#allocation8], 4
          %s337 = int_to_ptr.vmem [resolvable:$true] %s336
          %339 = dma.hbm_to_vmem [thread:$0]  %s3, 128, %s337, [#allocation9]
        $region24: #{tpu_custom_call.1} parent=11 // pred_fallthru
          _
        // Predicated region
        $region25: #{tpu_custom_call.1} parent=11 // pred_check
          %p340 = pneg %p138
        $region26: #{tpu_custom_call.1} parent=11 // pred_check_branch
          %342 = sbr.rel (%p340) target = $region28
        $region27: #{tpu_custom_call.1} parent=11 // pred_region
          %s344 = ssub.s32 128, 128
          %345 = vsyncadd [#allocation9], %s344
          %s347 = sshll.u32 [#allocation10], 4
          %s348 = int_to_ptr.vmem [resolvable:$true] %s347
          %350 = dma.hbm_to_vmem [thread:$0]  %s4, 128, %s348, [#allocation9]
        $region28: #{tpu_custom_call.1} parent=11 // pred_fallthru
          _
        // Predicated region
        $region29: #{tpu_custom_call.1} parent=11 // pred_check
          %p351 = pneg %p159
        $region30: #{tpu_custom_call.1} parent=11 // pred_check_branch
          %353 = sbr.rel (%p351) target = $region32
        $region31: #{tpu_custom_call.1} parent=11 // pred_region
          %s355 = ssub.s32 128, 128
          %356 = vsyncadd [#allocation12], %s355
          %s358 = sshll.u32 [#allocation11], 4
          %s359 = int_to_ptr.vmem [resolvable:$true] %s358
          %361 = dma.hbm_to_vmem [thread:$0]  %s5, 128, %s359, [#allocation12]
        $region32: #{tpu_custom_call.1} parent=11 // pred_fallthru
          _
        // Predicated region
        $region33: #{tpu_custom_call.1} parent=11 // pred_check
          %p362 = pneg %p180
        $region34: #{tpu_custom_call.1} parent=11 // pred_check_branch
          %364 = sbr.rel (%p362) target = $region36
        $region35: #{tpu_custom_call.1} parent=11 // pred_region
          %s366 = ssub.s32 128, 128
          %367 = vsyncadd [#allocation12], %s366
          %s369 = sshll.u32 [#allocation13], 4
          %s370 = int_to_ptr.vmem [resolvable:$true] %s369
          %372 = dma.hbm_to_vmem [thread:$0]  %s6, 128, %s370, [#allocation12]
        $region36: #{tpu_custom_call.1} parent=11 // pred_fallthru
          _
        // Predicated region
        $region37: #{tpu_custom_call.1} parent=11 // pred_check
          %p373 = pneg %p201
        $region38: #{tpu_custom_call.1} parent=11 // pred_check_branch
          %375 = sbr.rel (%p373) target = $region40
        $region39: #{tpu_custom_call.1} parent=11 // pred_region
          %s377 = ssub.s32 128, 128
          %378 = vsyncadd [#allocation15], %s377
          %s380 = sshll.u32 [#allocation14], 4
          %s381 = int_to_ptr.vmem [resolvable:$true] %s380
          %383 = dma.hbm_to_vmem [thread:$0]  %s7, 128, %s381, [#allocation15]
        $region40: #{tpu_custom_call.1} parent=11 // pred_fallthru
          _
        // Predicated region
        $region41: #{tpu_custom_call.1} parent=11 // pred_check
          %p384 = pneg %p222
        $region42: #{tpu_custom_call.1} parent=11 // pred_check_branch
          %386 = sbr.rel (%p384) target = $region44
        $region43: #{tpu_custom_call.1} parent=11 // pred_region
          %s388 = ssub.s32 128, 128
          %389 = vsyncadd [#allocation15], %s388
          %s391 = sshll.u32 [#allocation16], 4
          %s392 = int_to_ptr.vmem [resolvable:$true] %s391
          %394 = dma.hbm_to_vmem [thread:$0]  %s8, 128, %s392, [#allocation15]
        $region44: #{tpu_custom_call.1} parent=11 // pred_fallthru
          _
        // Predicated region
        $region45: #{tpu_custom_call.1} parent=11 // pred_check
          %p395 = pneg %p243
        $region46: #{tpu_custom_call.1} parent=11 // pred_check_branch
          %397 = sbr.rel (%p395) target = $region48
        $region47: #{tpu_custom_call.1} parent=11 // pred_region
          %s399 = ssub.s32 128, 128
          %400 = vsyncadd [#allocation18], %s399
          %s402 = sshll.u32 [#allocation17], 4
          %s403 = int_to_ptr.vmem [resolvable:$true] %s402
          %405 = dma.hbm_to_vmem [thread:$0]  %s9, 128, %s403, [#allocation18]
        $region48: #{tpu_custom_call.1} parent=11 // pred_fallthru
          _
        // Predicated region
        $region49: #{tpu_custom_call.1} parent=11 // pred_check
          %p406 = pneg %p264
        $region50: #{tpu_custom_call.1} parent=11 // pred_check_branch
          %408 = sbr.rel (%p406) target = $region52
        $region51: #{tpu_custom_call.1} parent=11 // pred_region
          %s410 = ssub.s32 128, 128
          %411 = vsyncadd [#allocation18], %s410
          %s413 = sshll.u32 [#allocation19], 4
          %s414 = int_to_ptr.vmem [resolvable:$true] %s413
          %416 = dma.hbm_to_vmem [thread:$0]  %s10, 128, %s414, [#allocation18]
        $region52: #{tpu_custom_call.1} parent=11 // pred_fallthru
          _
      $region12: #{tpu_custom_call.1} parent=5 // pred_fallthru
        _
      %p417 = scmp.lt.s32.totalorder %s28, 2
      // Predicated region
      $region53: #{tpu_custom_call.1} parent=5 // pred_check
        %p418 = pneg %p417
      $region54: #{tpu_custom_call.1} parent=5 // pred_check_branch
        %420 = sbr.rel (%p418) target = $region56
      $region55: #{tpu_custom_call.1} parent=5 // pred_region
        // Predicated region
        $region57: #{tpu_custom_call.1} parent=55 // pred_check
          %p421 = pneg %p48
        $region58: #{tpu_custom_call.1} parent=55 // pred_check_branch
          %423 = sbr.rel (%p421) target = $region60
        $region59: #{tpu_custom_call.1} parent=55 // pred_region
          %s424 = sand.u32 %s38, 1
          %s425 = scalar_lea.sflag [#allocation3], %s424
          %s426 = sand.u32 %s38, 1
          %s427 = smul.addr %s426, 16
          %s428 = scalar_lea.vmem [#allocation2], %s427
          %s430 = ssub.s32 256, 256
          %431 = vsyncadd %s425, %s430
          %s432 = smul.addr %s28, 2
          %s433 = smul.addr %s432, 128
          %s434 = scalar_lea.hbm %s0, %s433
          %s436 = sshll.u32 %s428, 4
          %s437 = int_to_ptr.vmem [resolvable:$true] %s436
          %439 = dma.hbm_to_vmem [thread:$0]  %s434, 256, %s437, %s425
        $region60: #{tpu_custom_call.1} parent=55 // pred_fallthru
          _
      $region56: #{tpu_custom_call.1} parent=5 // pred_fallthru
        _
      %p440 = scmp.le.s32.totalorder 1, %s28
      %p441 = scmp.lt.s32.totalorder %s28, 3
      %p442 = pnand %p440, %p441
      %p443 = pneg %p442
      // Predicated region
      $region61: #{tpu_custom_call.1} parent=5 // pred_check
        _
      $region62: #{tpu_custom_call.1} parent=5 // pred_check_branch
        %445 = sbr.rel (%p442) target = $region64
      $region63: #{tpu_custom_call.1} parent=5 // pred_region
        %s446 = ssub.s32 %s28, 1
        %s447 = sand.u32 %s41, 1
        %s448 = scalar_lea.sflag [#allocation3], %s447
        %s449 = sand.u32 %s41, 1
        %s450 = smul.addr %s449, 16
        %s451 = scalar_lea.vmem [#allocation2], %s450
        // Predicated region
        $region65: #{tpu_custom_call.1} parent=63 // pred_check
          %p452 = pneg %p54
        $region66: #{tpu_custom_call.1} parent=63 // pred_check_branch
          %454 = sbr.rel (%p452) target = $region68
        $region67: #{tpu_custom_call.1} parent=63 // pred_region
          %455 = dma.done %s448, 256
        $region68: #{tpu_custom_call.1} parent=63 // pred_fallthru
          _
        // Predicated region
        $region69: #{tpu_custom_call.1} parent=63 // pred_check
          %p456 = pneg %p75
        $region70: #{tpu_custom_call.1} parent=63 // pred_check_branch
          %458 = sbr.rel (%p456) target = $region72
        $region71: #{tpu_custom_call.1} parent=63 // pred_region
          %459 = dma.done [#allocation6], 128
        $region72: #{tpu_custom_call.1} parent=63 // pred_fallthru
          _
        // Predicated region
        $region73: #{tpu_custom_call.1} parent=63 // pred_check
          %p460 = pneg %p96
        $region74: #{tpu_custom_call.1} parent=63 // pred_check_branch
          %462 = sbr.rel (%p460) target = $region76
        $region75: #{tpu_custom_call.1} parent=63 // pred_region
          %463 = dma.done [#allocation6], 512
        $region76: #{tpu_custom_call.1} parent=63 // pred_fallthru
          _
        // Predicated region
        $region77: #{tpu_custom_call.1} parent=63 // pred_check
          %p464 = pneg %p117
        $region78: #{tpu_custom_call.1} parent=63 // pred_check_branch
          %466 = sbr.rel (%p464) target = $region80
        $region79: #{tpu_custom_call.1} parent=63 // pred_region
          %467 = dma.done [#allocation9], 128
        $region80: #{tpu_custom_call.1} parent=63 // pred_fallthru
          _
        // Predicated region
        $region81: #{tpu_custom_call.1} parent=63 // pred_check
          %p468 = pneg %p138
        $region82: #{tpu_custom_call.1} parent=63 // pred_check_branch
          %470 = sbr.rel (%p468) target = $region84
        $region83: #{tpu_custom_call.1} parent=63 // pred_region
          %471 = dma.done [#allocation9], 128
        $region84: #{tpu_custom_call.1} parent=63 // pred_fallthru
          _
        // Predicated region
        $region85: #{tpu_custom_call.1} parent=63 // pred_check
          %p472 = pneg %p159
        $region86: #{tpu_custom_call.1} parent=63 // pred_check_branch
          %474 = sbr.rel (%p472) target = $region88
        $region87: #{tpu_custom_call.1} parent=63 // pred_region
          %475 = dma.done [#allocation12], 128
        $region88: #{tpu_custom_call.1} parent=63 // pred_fallthru
          _
        // Predicated region
        $region89: #{tpu_custom_call.1} parent=63 // pred_check
          %p476 = pneg %p180
        $region90: #{tpu_custom_call.1} parent=63 // pred_check_branch
          %478 = sbr.rel (%p476) target = $region92
        $region91: #{tpu_custom_call.1} parent=63 // pred_region
          %479 = dma.done [#allocation12], 128
        $region92: #{tpu_custom_call.1} parent=63 // pred_fallthru
          _
        // Predicated region
        $region93: #{tpu_custom_call.1} parent=63 // pred_check
          %p480 = pneg %p201
        $region94: #{tpu_custom_call.1} parent=63 // pred_check_branch
          %482 = sbr.rel (%p480) target = $region96
        $region95: #{tpu_custom_call.1} parent=63 // pred_region
          %483 = dma.done [#allocation15], 128
        $region96: #{tpu_custom_call.1} parent=63 // pred_fallthru
          _
        // Predicated region
        $region97: #{tpu_custom_call.1} parent=63 // pred_check
          %p484 = pneg %p222
        $region98: #{tpu_custom_call.1} parent=63 // pred_check_branch
          %486 = sbr.rel (%p484) target = $region100
        $region99: #{tpu_custom_call.1} parent=63 // pred_region
          %487 = dma.done [#allocation15], 128
        $region100: #{tpu_custom_call.1} parent=63 // pred_fallthru
          _
        // Predicated region
        $region101: #{tpu_custom_call.1} parent=63 // pred_check
          %p488 = pneg %p243
        $region102: #{tpu_custom_call.1} parent=63 // pred_check_branch
          %490 = sbr.rel (%p488) target = $region104
        $region103: #{tpu_custom_call.1} parent=63 // pred_region
          %491 = dma.done [#allocation18], 128
        $region104: #{tpu_custom_call.1} parent=63 // pred_fallthru
          _
        // Predicated region
        $region105: #{tpu_custom_call.1} parent=63 // pred_check
          %p492 = pneg %p264
        $region106: #{tpu_custom_call.1} parent=63 // pred_check_branch
          %494 = sbr.rel (%p492) target = $region108
        $region107: #{tpu_custom_call.1} parent=63 // pred_region
          %495 = dma.done [#allocation18], 128
        $region108: #{tpu_custom_call.1} parent=63 // pred_fallthru
          _
        %s496 = sand.u32 %s41, 1
        %s497 = scalar_lea.sflag [#allocation3], %s496
        %s498 = sand.u32 %s41, 1
        %s499 = smul.addr %s498, 16
        %s500 = scalar_lea.vmem [#allocation2], %s499
        %p501 = pneg %p54
        %p502 = pneg %p51
        %p503 = pneg %p75
        %p504 = pneg %p72
        %p505 = pneg %p96
        %p506 = pneg %p93
        %p507 = pneg %p117
        %p508 = pneg %p114
        %p509 = pneg %p138
        %p510 = pneg %p135
        %p511 = pneg %p159
        %p512 = pneg %p156
        %p513 = pneg %p180
        %p514 = pneg %p177
        %p515 = pneg %p201
        %p516 = pneg %p198
        %p517 = pneg %p222
        %p518 = pneg %p219
        %p519 = pneg %p243
        %p520 = pneg %p240
        %p521 = pneg %p264
        %p522 = pneg %p261
        %p523 = pneg %p290
        %p524 = pneg %p287
        %s525 = sand.u32 %s277, 1
        %s526 = scalar_lea.sflag [#allocation4], %s525
        %s527 = sand.u32 %s277, 1
        %s528 = smul.addr %s527, 64
        %s529 = scalar_lea.vmem [#allocation20], %s528
        %v530 = vld [vmem:[%s451] sm:$0xff]
        %v531 = vld [vmem:[%s451 + $0x8] sm:$0xff]
        %v532 = vld [vmem:[#allocation5] sm:$0xff]
        %v533 = vld [vmem:[#allocation8] sm:$0xff]
        %534 = vrot.lane.b32.xlu0 %v530, 17
        %v535 = vpop.permute.xlu0 %534
        %536 = vrot.lane.b32.xlu0 %v531, 17
        %v537 = vpop.permute.xlu0 %536
        %v538 = vlaneseq
        %v539 = vand.u32 %v538, 127
        %vm540 = vcmp.lt.s32.totalorder %v539, 17
        %v541 = vsel %vm540, %v535, %v537
        %v542 = vsel %vm540, %v537, %v535
        %v544 = vrot.slane %v532, 6
        %v545 = vrot.slane %v544, 4
        %v547 = vmul.f32 %v532, %v545
        %v549 = vlaneseq
        %v550 = vshrl.u32 %v549, 7
        %v551 = vsub.s32 0, %v550
        %v552 = vrot.slane %v547, %v551
        %v553 = vlaneseq
        %v554 = vshrl.u32 %v553, 7
        %v555 = vsub.s32 4, %v554
        %v556 = vrot.slane %v547, %v555
        %v559 = vlaneseq
        %v560 = vshrl.u32 %v559, 7
        %v561 = vsub.s32 0, %v560
        %v562 = vrot.slane %v552, %v561
        %v563 = vlaneseq
        %v564 = vshrl.u32 %v563, 7
        %v565 = vsub.s32 0, %v564
        %v566 = vrot.slane %v556, %v565
        %v567 = vmul.f32 %v542, %v562
        %v568 = vmul.f32 %v541, %v566
        %569 = vrot.lane.b32.xlu0 %v530, 16
        %v570 = vpop.permute.xlu0 %569
        %571 = vrot.lane.b32.xlu0 %v531, 16
        %v572 = vpop.permute.xlu0 %571
        %vm573 = vcmp.lt.s32.totalorder %v539, 16
        %v574 = vsel %vm573, %v570, %v572
        %v575 = vsel %vm573, %v572, %v570
        %v576 = vlaneseq
        %v577 = vshrl.u32 %v576, 7
        %v578 = vsub.s32 0, %v577
        %v579 = vrot.slane %v532, %v578
        %v580 = vlaneseq
        %v581 = vshrl.u32 %v580, 7
        %v582 = vsub.s32 4, %v581
        %v583 = vrot.slane %v532, %v582
        %v586 = vlaneseq
        %v587 = vshrl.u32 %v586, 7
        %v588 = vsub.s32 0, %v587
        %v589 = vrot.slane %v579, %v588
        %v590 = vlaneseq
        %v591 = vshrl.u32 %v590, 7
        %v592 = vsub.s32 0, %v591
        %v593 = vrot.slane %v583, %v592
        %v594 = vmul.f32 %v575, %v589
        %v595 = vmul.f32 %v574, %v593
        %596 = vrot.lane.b32.xlu0 %v530, 1
        %v597 = vpop.permute.xlu0 %596
        %598 = vrot.lane.b32.xlu0 %v531, 1
        %v599 = vpop.permute.xlu0 %598
        %vm600 = vcmp.lt.s32.totalorder %v539, 1
        %v601 = vsel %vm600, %v597, %v599
        %v602 = vsel %vm600, %v599, %v597
        %v603 = vlaneseq
        %v604 = vshrl.u32 %v603, 7
        %v605 = vsub.s32 2, %v604
        %v606 = vrot.slane %v532, %v605
        %v607 = vlaneseq
        %v608 = vshrl.u32 %v607, 7
        %v609 = vsub.s32 6, %v608
        %v610 = vrot.slane %v532, %v609
        %v613 = vlaneseq
        %v614 = vshrl.u32 %v613, 7
        %v615 = vsub.s32 2, %v614
        %v616 = vrot.slane %v606, %v615
        %v617 = vlaneseq
        %v618 = vshrl.u32 %v617, 7
        %v619 = vsub.s32 2, %v618
        %v620 = vrot.slane %v610, %v619
        %v621 = vmul.f32 %v602, %v616
        %v622 = vmul.f32 %v601, %v620
        %v623 = vld [vmem:[#allocation7] sm:$0xff]
        %vm624 = vcmask 261120
        %v626 = vsel %vm624, %v623, 0
        %628 = vmatprep.subr.mxu0 %v568
        %629 = vmatpush1.msra.mxu0 %v567
        %630 = vmatprep.subr.mxu0 %v595
        %631 = vmatpush1.msra.mxu0 %v594
        %632 = vmatprep.subr.mxu0 %v622
        %633 = vmatpush1.msra.mxu0 %v621
        %634 = vmatprep.subr.mxu0 %v531
        %635 = vmatpush1.msra.mxu0 %v530
        %636 = vmatprep.subr.mxu0 0.0
        %637 = vmatpush1.msra.mxu0 0.0
        %638 = vmatprep.subr.mxu0 0.0
        %639 = vmatpush1.msra.mxu0 0.0
        %640 = vmatprep.subr.mxu0 0.0
        %641 = vmatpush1.msra.mxu0 0.0
        %642 = vmatprep.subr.mxu0 0.0
        %643 = vmatpush1.msra.mxu0 0.0
        %644 = vmatprep.subr.mxu0 0.0
        %645 = vmatpush1.msra.mxu0 0.0
        %646 = vmatprep.subr.mxu0 0.0
        %647 = vmatpush1.msra.mxu0 0.0
        %648 = vmatprep.subr.mxu0 0.0
        %649 = vmatpush1.msra.mxu0 0.0
        %650 = vmatprep.subr.mxu0 0.0
        %651 = vmatpush1.msra.mxu0 0.0
        %652 = vmatprep.subr.mxu0 0.0
        %653 = vmatpush1.msra.mxu0 0.0
        %654 = vmatprep.subr.mxu0 0.0
        %655 = vmatpush1.msra.mxu0 0.0
        %656 = vmatprep.subr.mxu0 0.0
        %657 = vmatpush1.msra.mxu0 0.0
        %658 = vmatprep.subr.mxu0 0.0
        %659 = vmatpush1.msra.mxu0 0.0
        %660 = vmatprep.subr.mxu0 0.0
        %661 = vmatpush1.msra.mxu0 0.0
        %662 = vmatprep.subr.mxu0 0.0
        %663 = vmatpush1.msra.mxu0 0.0
        %664 = vmatprep.subr.mxu0 0.0
        %665 = vmatpush1.msra.mxu0 0.0
        %666 = vmatprep.subr.mxu0 0.0
        %667 = vmatpush1.msra.mxu0 0.0
        %668 = vmatprep.subr.mxu0 0.0
        %669 = vmatpush1.msra.mxu0 0.0
        %670 = vmatprep.subr.mxu0 0.0
        %671 = vmatpush1.msra.mxu0 0.0
        %672 = vmatprep.subr.mxu0 0.0
        %673 = vmatpush1.msra.mxu0 0.0
        %674 = vmatprep.subr.mxu0 0.0
        %675 = vmatpush1.msra.mxu0 0.0
        %676 = vmatprep.subr.mxu0 0.0
        %677 = vmatpush1.msra.mxu0 0.0
        %678 = vmatprep.subr.mxu0 0.0
        %679 = vmatpush1.msra.mxu0 0.0
        %680 = vmatprep.subr.mxu0 0.0
        %681 = vmatpush1.msra.mxu0 0.0
        %682 = vmatprep.subr.mxu0 0.0
        %683 = vmatpush1.msra.mxu0 0.0
        %684 = vmatprep.subr.mxu0 0.0
        %685 = vmatpush1.msra.mxu0 0.0
        %686 = vmatprep.subr.mxu0 0.0
        %687 = vmatpush1.msra.mxu0 0.0
        %688 = vmatprep.subr.mxu0 0.0
        %689 = vmatpush1.msra.mxu0 0.0
        %690 = vmatprep.subr.mxu0 0.0
        %691 = vmatpush1.msra.mxu0 0.0
        %692 = vmatprep.mubr.f32.mxu0 0.0
        %693 = vmatmul.mubr.f32.gmra.mrb[0].mxu0 %v626
        %v694 = vpop.f32.mrb[0].mxu0
        %v695 = vadd.f32 0.0, %v694
        %v696 = vpop.f32.mrb[0].mxu0
        %v697 = vadd.f32 0.0, %v696
        %698 = vdwg.mxu0
        %vm699 = vcmask 64512
        %v701 = vsel %vm699, %v533, 0
        %703 = vmatprep.subr.mxu0 %v697
        %704 = vmatpush1.msra.mxu0 %v695
        %705 = vmatprep.subr.mxu0 0.0
        %706 = vmatpush1.msra.mxu0 0.0
        %707 = vmatprep.subr.mxu0 0.0
        %708 = vmatpush1.msra.mxu0 0.0
        %709 = vmatprep.subr.mxu0 0.0
        %710 = vmatpush1.msra.mxu0 0.0
        %711 = vmatprep.subr.mxu0 0.0
        %712 = vmatpush1.msra.mxu0 0.0
        %713 = vmatprep.subr.mxu0 0.0
        %714 = vmatpush1.msra.mxu0 0.0
        %715 = vmatprep.subr.mxu0 0.0
        %716 = vmatpush1.msra.mxu0 0.0
        %717 = vmatprep.subr.mxu0 0.0
        %718 = vmatpush1.msra.mxu0 0.0
        %719 = vmatprep.subr.mxu0 0.0
        %720 = vmatpush1.msra.mxu0 0.0
        %721 = vmatprep.subr.mxu0 0.0
        %722 = vmatpush1.msra.mxu0 0.0
        %723 = vmatprep.subr.mxu0 0.0
        %724 = vmatpush1.msra.mxu0 0.0
        %725 = vmatprep.subr.mxu0 0.0
        %726 = vmatpush1.msra.mxu0 0.0
        %727 = vmatprep.subr.mxu0 0.0
        %728 = vmatpush1.msra.mxu0 0.0
        %729 = vmatprep.subr.mxu0 0.0
        %730 = vmatpush1.msra.mxu0 0.0
        %731 = vmatprep.subr.mxu0 0.0
        %732 = vmatpush1.msra.mxu0 0.0
        %733 = vmatprep.subr.mxu0 0.0
        %734 = vmatpush1.msra.mxu0 0.0
        %735 = vmatprep.subr.mxu0 0.0
        %736 = vmatpush1.msra.mxu0 0.0
        %737 = vmatprep.subr.mxu0 0.0
        %738 = vmatpush1.msra.mxu0 0.0
        %739 = vmatprep.subr.mxu0 0.0
        %740 = vmatpush1.msra.mxu0 0.0
        %741 = vmatprep.subr.mxu0 0.0
        %742 = vmatpush1.msra.mxu0 0.0
        %743 = vmatprep.subr.mxu0 0.0
        %744 = vmatpush1.msra.mxu0 0.0
        %745 = vmatprep.subr.mxu0 0.0
        %746 = vmatpush1.msra.mxu0 0.0
        %747 = vmatprep.subr.mxu0 0.0
        %748 = vmatpush1.msra.mxu0 0.0
        %749 = vmatprep.subr.mxu0 0.0
        %750 = vmatpush1.msra.mxu0 0.0
        %751 = vmatprep.subr.mxu0 0.0
        %752 = vmatpush1.msra.mxu0 0.0
        %753 = vmatprep.subr.mxu0 0.0
        %754 = vmatpush1.msra.mxu0 0.0
        %755 = vmatprep.subr.mxu0 0.0
        %756 = vmatpush1.msra.mxu0 0.0
        %757 = vmatprep.subr.mxu0 0.0
        %758 = vmatpush1.msra.mxu0 0.0
        %759 = vmatprep.subr.mxu0 0.0
        %760 = vmatpush1.msra.mxu0 0.0
        %761 = vmatprep.subr.mxu0 0.0
        %762 = vmatpush1.msra.mxu0 0.0
        %763 = vmatprep.subr.mxu0 0.0
        %764 = vmatpush1.msra.mxu0 0.0
        %765 = vmatprep.subr.mxu0 0.0
        %766 = vmatpush1.msra.mxu0 0.0
        %767 = vmatprep.mubr.f32.mxu0 0.0
        %768 = vmatmul.mubr.f32.gmra.mrb[0].mxu0 %v701
        %v769 = vpop.f32.mrb[0].mxu0
        %v770 = vadd.f32 0.0, %v769
        %v771 = vpop.f32.mrb[0].mxu0
        %v772 = vadd.f32 0.0, %v771
        %773 = vdwg.mxu0
        %774 = vrot.lane.b32.xlu0 %v530, 15
        %v775 = vpop.permute.xlu0 %774
        %776 = vrot.lane.b32.xlu0 %v531, 15
        %v777 = vpop.permute.xlu0 %776
        %vm778 = vcmp.lt.s32.totalorder %v539, 15
        %v779 = vsel %vm778, %v775, %v777
        %v780 = vsel %vm778, %v777, %v775
        %v781 = vrot.slane %v532, 7
        %v782 = vrot.slane %v781, 4
        %v784 = vmul.f32 %v532, %v782
        %v786 = vlaneseq
        %v787 = vshrl.u32 %v786, 7
        %v788 = vsub.s32 0, %v787
        %v789 = vrot.slane %v784, %v788
        %v790 = vlaneseq
        %v791 = vshrl.u32 %v790, 7
        %v792 = vsub.s32 4, %v791
        %v793 = vrot.slane %v784, %v792
        %v796 = vlaneseq
        %v797 = vshrl.u32 %v796, 7
        %v798 = vsub.s32 0, %v797
        %v799 = vrot.slane %v789, %v798
        %v800 = vlaneseq
        %v801 = vshrl.u32 %v800, 7
        %v802 = vsub.s32 0, %v801
        %v803 = vrot.slane %v793, %v802
        %v804 = vmul.f32 %v780, %v799
        %v805 = vmul.f32 %v779, %v803
        %806 = vrot.lane.b32.xlu0 %v530, 127
        %v807 = vpop.permute.xlu0 %806
        %808 = vrot.lane.b32.xlu0 %v531, 127
        %v809 = vpop.permute.xlu0 %808
        %vm810 = vcmp.lt.s32.totalorder %v539, 127
        %v811 = vsel %vm810, %v807, %v809
        %v812 = vsel %vm810, %v809, %v807
        %v813 = vlaneseq
        %v814 = vshrl.u32 %v813, 7
        %v815 = vsub.s32 3, %v814
        %v816 = vrot.slane %v532, %v815
        %v817 = vlaneseq
        %v818 = vshrl.u32 %v817, 7
        %v819 = vsub.s32 7, %v818
        %v820 = vrot.slane %v532, %v819
        %v823 = vlaneseq
        %v824 = vshrl.u32 %v823, 7
        %v825 = vsub.s32 3, %v824
        %v826 = vrot.slane %v816, %v825
        %v827 = vlaneseq
        %v828 = vshrl.u32 %v827, 7
        %v829 = vsub.s32 3, %v828
        %v830 = vrot.slane %v820, %v829
        %v831 = vmul.f32 %v811, %v826
        %v832 = vmul.f32 %v812, %v830
        %s833 = scalar_lea.vmem [#allocation7], 8
        %v834 = vld [vmem:[%s833] sm:$0xff]
        %v836 = vsel %vm624, %v834, 0
        %838 = vmatprep.subr.mxu0 %v595
        %839 = vmatpush1.msra.mxu0 %v594
        %840 = vmatprep.subr.mxu0 %v805
        %841 = vmatpush1.msra.mxu0 %v804
        %842 = vmatprep.subr.mxu0 %v531
        %843 = vmatpush1.msra.mxu0 %v530
        %844 = vmatprep.subr.mxu0 %v832
        %845 = vmatpush1.msra.mxu0 %v831
        %846 = vmatprep.subr.mxu0 0.0
        %847 = vmatpush1.msra.mxu0 0.0
        %848 = vmatprep.subr.mxu0 0.0
        %849 = vmatpush1.msra.mxu0 0.0
        %850 = vmatprep.subr.mxu0 0.0
        %851 = vmatpush1.msra.mxu0 0.0
        %852 = vmatprep.subr.mxu0 0.0
        %853 = vmatpush1.msra.mxu0 0.0
        %854 = vmatprep.subr.mxu0 0.0
        %855 = vmatpush1.msra.mxu0 0.0
        %856 = vmatprep.subr.mxu0 0.0
        %857 = vmatpush1.msra.mxu0 0.0
        %858 = vmatprep.subr.mxu0 0.0
        %859 = vmatpush1.msra.mxu0 0.0
        %860 = vmatprep.subr.mxu0 0.0
        %861 = vmatpush1.msra.mxu0 0.0
        %862 = vmatprep.subr.mxu0 0.0
        %863 = vmatpush1.msra.mxu0 0.0
        %864 = vmatprep.subr.mxu0 0.0
        %865 = vmatpush1.msra.mxu0 0.0
        %866 = vmatprep.subr.mxu0 0.0
        %867 = vmatpush1.msra.mxu0 0.0
        %868 = vmatprep.subr.mxu0 0.0
        %869 = vmatpush1.msra.mxu0 0.0
        %870 = vmatprep.subr.mxu0 0.0
        %871 = vmatpush1.msra.mxu0 0.0
        %872 = vmatprep.subr.mxu0 0.0
        %873 = vmatpush1.msra.mxu0 0.0
        %874 = vmatprep.subr.mxu0 0.0
        %875 = vmatpush1.msra.mxu0 0.0
        %876 = vmatprep.subr.mxu0 0.0
        %877 = vmatpush1.msra.mxu0 0.0
        %878 = vmatprep.subr.mxu0 0.0
        %879 = vmatpush1.msra.mxu0 0.0
        %880 = vmatprep.subr.mxu0 0.0
        %881 = vmatpush1.msra.mxu0 0.0
        %882 = vmatprep.subr.mxu0 0.0
        %883 = vmatpush1.msra.mxu0 0.0
        %884 = vmatprep.subr.mxu0 0.0
        %885 = vmatpush1.msra.mxu0 0.0
        %886 = vmatprep.subr.mxu0 0.0
        %887 = vmatpush1.msra.mxu0 0.0
        %888 = vmatprep.subr.mxu0 0.0
        %889 = vmatpush1.msra.mxu0 0.0
        %890 = vmatprep.subr.mxu0 0.0
        %891 = vmatpush1.msra.mxu0 0.0
        %892 = vmatprep.subr.mxu0 0.0
        %893 = vmatpush1.msra.mxu0 0.0
        %894 = vmatprep.subr.mxu0 0.0
        %895 = vmatpush1.msra.mxu0 0.0
        %896 = vmatprep.subr.mxu0 0.0
        %897 = vmatpush1.msra.mxu0 0.0
        %898 = vmatprep.subr.mxu0 0.0
        %899 = vmatpush1.msra.mxu0 0.0
        %900 = vmatprep.subr.mxu0 0.0
        %901 = vmatpush1.msra.mxu0 0.0
        %902 = vmatprep.mubr.f32.mxu0 0.0
        %903 = vmatmul.mubr.f32.gmra.mrb[0].mxu0 %v836
        %v904 = vpop.f32.mrb[0].mxu0
        %v905 = vadd.f32 0.0, %v904
        %v906 = vpop.f32.mrb[0].mxu0
        %v907 = vadd.f32 0.0, %v906
        %908 = vdwg.mxu0
        %909 = vmatprep.subr.mxu0 %v907
        %910 = vmatpush1.msra.mxu0 %v905
        %911 = vmatprep.subr.mxu0 0.0
        %912 = vmatpush1.msra.mxu0 0.0
        %913 = vmatprep.subr.mxu0 0.0
        %914 = vmatpush1.msra.mxu0 0.0
        %915 = vmatprep.subr.mxu0 0.0
        %916 = vmatpush1.msra.mxu0 0.0
        %917 = vmatprep.subr.mxu0 0.0
        %918 = vmatpush1.msra.mxu0 0.0
        %919 = vmatprep.subr.mxu0 0.0
        %920 = vmatpush1.msra.mxu0 0.0
        %921 = vmatprep.subr.mxu0 0.0
        %922 = vmatpush1.msra.mxu0 0.0
        %923 = vmatprep.subr.mxu0 0.0
        %924 = vmatpush1.msra.mxu0 0.0
        %925 = vmatprep.subr.mxu0 0.0
        %926 = vmatpush1.msra.mxu0 0.0
        %927 = vmatprep.subr.mxu0 0.0
        %928 = vmatpush1.msra.mxu0 0.0
        %929 = vmatprep.subr.mxu0 0.0
        %930 = vmatpush1.msra.mxu0 0.0
        %931 = vmatprep.subr.mxu0 0.0
        %932 = vmatpush1.msra.mxu0 0.0
        %933 = vmatprep.subr.mxu0 0.0
        %934 = vmatpush1.msra.mxu0 0.0
        %935 = vmatprep.subr.mxu0 0.0
        %936 = vmatpush1.msra.mxu0 0.0
        %937 = vmatprep.subr.mxu0 0.0
        %938 = vmatpush1.msra.mxu0 0.0
        %939 = vmatprep.subr.mxu0 0.0
        %940 = vmatpush1.msra.mxu0 0.0
        %941 = vmatprep.subr.mxu0 0.0
        %942 = vmatpush1.msra.mxu0 0.0
        %943 = vmatprep.subr.mxu0 0.0
        %944 = vmatpush1.msra.mxu0 0.0
        %945 = vmatprep.subr.mxu0 0.0
        %946 = vmatpush1.msra.mxu0 0.0
        %947 = vmatprep.subr.mxu0 0.0
        %948 = vmatpush1.msra.mxu0 0.0
        %949 = vmatprep.subr.mxu0 0.0
        %950 = vmatpush1.msra.mxu0 0.0
        %951 = vmatprep.subr.mxu0 0.0
        %952 = vmatpush1.msra.mxu0 0.0
        %953 = vmatprep.subr.mxu0 0.0
        %954 = vmatpush1.msra.mxu0 0.0
        %955 = vmatprep.subr.mxu0 0.0
        %956 = vmatpush1.msra.mxu0 0.0
        %957 = vmatprep.subr.mxu0 0.0
        %958 = vmatpush1.msra.mxu0 0.0
        %959 = vmatprep.subr.mxu0 0.0
        %960 = vmatpush1.msra.mxu0 0.0
        %961 = vmatprep.subr.mxu0 0.0
        %962 = vmatpush1.msra.mxu0 0.0
        %963 = vmatprep.subr.mxu0 0.0
        %964 = vmatpush1.msra.mxu0 0.0
        %965 = vmatprep.subr.mxu0 0.0
        %966 = vmatpush1.msra.mxu0 0.0
        %967 = vmatprep.subr.mxu0 0.0
        %968 = vmatpush1.msra.mxu0 0.0
        %969 = vmatprep.subr.mxu0 0.0
        %970 = vmatpush1.msra.mxu0 0.0
        %971 = vmatprep.subr.mxu0 0.0
        %972 = vmatpush1.msra.mxu0 0.0
        %973 = vmatprep.mubr.f32.mxu0 0.0
        %974 = vmatmul.mubr.f32.gmra.mrb[0].mxu0 %v701
        %v975 = vpop.f32.mrb[0].mxu0
        %v976 = vadd.f32 0.0, %v975
        %v977 = vpop.f32.mrb[0].mxu0
        %v978 = vadd.f32 0.0, %v977
        %979 = vdwg.mxu0
        %980 = vrot.lane.b32.xlu0 %v530, 113
        %v981 = vpop.permute.xlu0 %980
        %982 = vrot.lane.b32.xlu0 %v531, 113
        %v983 = vpop.permute.xlu0 %982
        %vm984 = vcmp.lt.s32.totalorder %v539, 113
        %v985 = vsel %vm984, %v981, %v983
        %v986 = vsel %vm984, %v983, %v981
        %v987 = vrot.slane %v532, 5
        %v988 = vrot.slane %v987, 4
        %v990 = vmul.f32 %v532, %v988
        %v992 = vlaneseq
        %v993 = vshrl.u32 %v992, 7
        %v994 = vsub.s32 1, %v993
        %v995 = vrot.slane %v990, %v994
        %v996 = vlaneseq
        %v997 = vshrl.u32 %v996, 7
        %v998 = vsub.s32 5, %v997
        %v999 = vrot.slane %v990, %v998
        %v1002 = vlaneseq
        %v1003 = vshrl.u32 %v1002, 7
        %v1004 = vsub.s32 1, %v1003
        %v1005 = vrot.slane %v995, %v1004
        %v1006 = vlaneseq
        %v1007 = vshrl.u32 %v1006, 7
        %v1008 = vsub.s32 1, %v1007
        %v1009 = vrot.slane %v999, %v1008
        %v1010 = vmul.f32 %v985, %v1005
        %v1011 = vmul.f32 %v986, %v1009
        %1012 = vrot.lane.b32.xlu0 %v530, 112
        %v1013 = vpop.permute.xlu0 %1012
        %1014 = vrot.lane.b32.xlu0 %v531, 112
        %v1015 = vpop.permute.xlu0 %1014
        %vm1016 = vcmp.lt.s32.totalorder %v539, 112
        %v1017 = vsel %vm1016, %v1013, %v1015
        %v1018 = vsel %vm1016, %v1015, %v1013
        %v1019 = vlaneseq
        %v1020 = vshrl.u32 %v1019, 7
        %v1021 = vsub.s32 1, %v1020
        %v1022 = vrot.slane %v532, %v1021
        %v1023 = vlaneseq
        %v1024 = vshrl.u32 %v1023, 7
        %v1025 = vsub.s32 5, %v1024
        %v1026 = vrot.slane %v532, %v1025
        %v1029 = vlaneseq
        %v1030 = vshrl.u32 %v1029, 7
        %v1031 = vsub.s32 1, %v1030
        %v1032 = vrot.slane %v1022, %v1031
        %v1033 = vlaneseq
        %v1034 = vshrl.u32 %v1033, 7
        %v1035 = vsub.s32 1, %v1034
        %v1036 = vrot.slane %v1026, %v1035
        %v1037 = vmul.f32 %v1017, %v1032
        %v1038 = vmul.f32 %v1018, %v1036
        %s1039 = scalar_lea.vmem [#allocation7], 16
        %v1040 = vld [vmem:[%s1039] sm:$0xff]
        %v1042 = vsel %vm624, %v1040, 0
        %1044 = vmatprep.subr.mxu0 %v622
        %1045 = vmatpush1.msra.mxu0 %v621
        %1046 = vmatprep.subr.mxu0 %v531
        %1047 = vmatpush1.msra.mxu0 %v530
        %1048 = vmatprep.subr.mxu0 %v1011
        %1049 = vmatpush1.msra.mxu0 %v1010
        %1050 = vmatprep.subr.mxu0 %v1038
        %1051 = vmatpush1.msra.mxu0 %v1037
        %1052 = vmatprep.subr.mxu0 0.0
        %1053 = vmatpush1.msra.mxu0 0.0
        %1054 = vmatprep.subr.mxu0 0.0
        %1055 = vmatpush1.msra.mxu0 0.0
        %1056 = vmatprep.subr.mxu0 0.0
        %1057 = vmatpush1.msra.mxu0 0.0
        %1058 = vmatprep.subr.mxu0 0.0
        %1059 = vmatpush1.msra.mxu0 0.0
        %1060 = vmatprep.subr.mxu0 0.0
        %1061 = vmatpush1.msra.mxu0 0.0
        %1062 = vmatprep.subr.mxu0 0.0
        %1063 = vmatpush1.msra.mxu0 0.0
        %1064 = vmatprep.subr.mxu0 0.0
        %1065 = vmatpush1.msra.mxu0 0.0
        %1066 = vmatprep.subr.mxu0 0.0
        %1067 = vmatpush1.msra.mxu0 0.0
        %1068 = vmatprep.subr.mxu0 0.0
        %1069 = vmatpush1.msra.mxu0 0.0
        %1070 = vmatprep.subr.mxu0 0.0
        %1071 = vmatpush1.msra.mxu0 0.0
        %1072 = vmatprep.subr.mxu0 0.0
        %1073 = vmatpush1.msra.mxu0 0.0
        %1074 = vmatprep.subr.mxu0 0.0
        %1075 = vmatpush1.msra.mxu0 0.0
        %1076 = vmatprep.subr.mxu0 0.0
        %1077 = vmatpush1.msra.mxu0 0.0
        %1078 = vmatprep.subr.mxu0 0.0
        %1079 = vmatpush1.msra.mxu0 0.0
        %1080 = vmatprep.subr.mxu0 0.0
        %1081 = vmatpush1.msra.mxu0 0.0
        %1082 = vmatprep.subr.mxu0 0.0
        %1083 = vmatpush1.msra.mxu0 0.0
        %1084 = vmatprep.subr.mxu0 0.0
        %1085 = vmatpush1.msra.mxu0 0.0
        %1086 = vmatprep.subr.mxu0 0.0
        %1087 = vmatpush1.msra.mxu0 0.0
        %1088 = vmatprep.subr.mxu0 0.0
        %1089 = vmatpush1.msra.mxu0 0.0
        %1090 = vmatprep.subr.mxu0 0.0
        %1091 = vmatpush1.msra.mxu0 0.0
        %1092 = vmatprep.subr.mxu0 0.0
        %1093 = vmatpush1.msra.mxu0 0.0
        %1094 = vmatprep.subr.mxu0 0.0
        %1095 = vmatpush1.msra.mxu0 0.0
        %1096 = vmatprep.subr.mxu0 0.0
        %1097 = vmatpush1.msra.mxu0 0.0
        %1098 = vmatprep.subr.mxu0 0.0
        %1099 = vmatpush1.msra.mxu0 0.0
        %1100 = vmatprep.subr.mxu0 0.0
        %1101 = vmatpush1.msra.mxu0 0.0
        %1102 = vmatprep.subr.mxu0 0.0
        %1103 = vmatpush1.msra.mxu0 0.0
        %1104 = vmatprep.subr.mxu0 0.0
        %1105 = vmatpush1.msra.mxu0 0.0
        %1106 = vmatprep.subr.mxu0 0.0
        %1107 = vmatpush1.msra.mxu0 0.0
        %1108 = vmatprep.mubr.f32.mxu0 0.0
        %1109 = vmatmul.mubr.f32.gmra.mrb[0].mxu0 %v1042
        %v1110 = vpop.f32.mrb[0].mxu0
        %v1111 = vadd.f32 0.0, %v1110
        %v1112 = vpop.f32.mrb[0].mxu0
        %v1113 = vadd.f32 0.0, %v1112
        %1114 = vdwg.mxu0
        %1115 = vmatprep.subr.mxu0 %v1113
        %1116 = vmatpush1.msra.mxu0 %v1111
        %1117 = vmatprep.subr.mxu0 0.0
        %1118 = vmatpush1.msra.mxu0 0.0
        %1119 = vmatprep.subr.mxu0 0.0
        %1120 = vmatpush1.msra.mxu0 0.0
        %1121 = vmatprep.subr.mxu0 0.0
        %1122 = vmatpush1.msra.mxu0 0.0
        %1123 = vmatprep.subr.mxu0 0.0
        %1124 = vmatpush1.msra.mxu0 0.0
        %1125 = vmatprep.subr.mxu0 0.0
        %1126 = vmatpush1.msra.mxu0 0.0
        %1127 = vmatprep.subr.mxu0 0.0
        %1128 = vmatpush1.msra.mxu0 0.0
        %1129 = vmatprep.subr.mxu0 0.0
        %1130 = vmatpush1.msra.mxu0 0.0
        %1131 = vmatprep.subr.mxu0 0.0
        %1132 = vmatpush1.msra.mxu0 0.0
        %1133 = vmatprep.subr.mxu0 0.0
        %1134 = vmatpush1.msra.mxu0 0.0
        %1135 = vmatprep.subr.mxu0 0.0
        %1136 = vmatpush1.msra.mxu0 0.0
        %1137 = vmatprep.subr.mxu0 0.0
        %1138 = vmatpush1.msra.mxu0 0.0
        %1139 = vmatprep.subr.mxu0 0.0
        %1140 = vmatpush1.msra.mxu0 0.0
        %1141 = vmatprep.subr.mxu0 0.0
        %1142 = vmatpush1.msra.mxu0 0.0
        %1143 = vmatprep.subr.mxu0 0.0
        %1144 = vmatpush1.msra.mxu0 0.0
        %1145 = vmatprep.subr.mxu0 0.0
        %1146 = vmatpush1.msra.mxu0 0.0
        %1147 = vmatprep.subr.mxu0 0.0
        %1148 = vmatpush1.msra.mxu0 0.0
        %1149 = vmatprep.subr.mxu0 0.0
        %1150 = vmatpush1.msra.mxu0 0.0
        %1151 = vmatprep.subr.mxu0 0.0
        %1152 = vmatpush1.msra.mxu0 0.0
        %1153 = vmatprep.subr.mxu0 0.0
        %1154 = vmatpush1.msra.mxu0 0.0
        %1155 = vmatprep.subr.mxu0 0.0
        %1156 = vmatpush1.msra.mxu0 0.0
        %1157 = vmatprep.subr.mxu0 0.0
        %1158 = vmatpush1.msra.mxu0 0.0
        %1159 = vmatprep.subr.mxu0 0.0
        %1160 = vmatpush1.msra.mxu0 0.0
        %1161 = vmatprep.subr.mxu0 0.0
        %1162 = vmatpush1.msra.mxu0 0.0
        %1163 = vmatprep.subr.mxu0 0.0
        %1164 = vmatpush1.msra.mxu0 0.0
        %1165 = vmatprep.subr.mxu0 0.0
        %1166 = vmatpush1.msra.mxu0 0.0
        %1167 = vmatprep.subr.mxu0 0.0
        %1168 = vmatpush1.msra.mxu0 0.0
        %1169 = vmatprep.subr.mxu0 0.0
        %1170 = vmatpush1.msra.mxu0 0.0
        %1171 = vmatprep.subr.mxu0 0.0
        %1172 = vmatpush1.msra.mxu0 0.0
        %1173 = vmatprep.subr.mxu0 0.0
        %1174 = vmatpush1.msra.mxu0 0.0
        %1175 = vmatprep.subr.mxu0 0.0
        %1176 = vmatpush1.msra.mxu0 0.0
        %1177 = vmatprep.subr.mxu0 0.0
        %1178 = vmatpush1.msra.mxu0 0.0
        %1179 = vmatprep.mubr.f32.mxu0 0.0
        %1180 = vmatmul.mubr.f32.gmra.mrb[0].mxu0 %v701
        %v1181 = vpop.f32.mrb[0].mxu0
        %v1182 = vadd.f32 0.0, %v1181
        %v1183 = vpop.f32.mrb[0].mxu0
        %v1184 = vadd.f32 0.0, %v1183
        %1185 = vdwg.mxu0
        %1186 = vrot.lane.b32.xlu0 %v530, 111
        %v1187 = vpop.permute.xlu0 %1186
        %1188 = vrot.lane.b32.xlu0 %v531, 111
        %v1189 = vpop.permute.xlu0 %1188
        %vm1190 = vcmp.lt.s32.totalorder %v539, 111
        %v1191 = vsel %vm1190, %v1187, %v1189
        %v1192 = vsel %vm1190, %v1189, %v1187
        %v1193 = vlaneseq
        %v1194 = vshrl.u32 %v1193, 7
        %v1195 = vsub.s32 1, %v1194
        %v1196 = vrot.slane %v547, %v1195
        %v1197 = vlaneseq
        %v1198 = vshrl.u32 %v1197, 7
        %v1199 = vsub.s32 5, %v1198
        %v1200 = vrot.slane %v547, %v1199
        %v1203 = vlaneseq
        %v1204 = vshrl.u32 %v1203, 7
        %v1205 = vsub.s32 1, %v1204
        %v1206 = vrot.slane %v1196, %v1205
        %v1207 = vlaneseq
        %v1208 = vshrl.u32 %v1207, 7
        %v1209 = vsub.s32 1, %v1208
        %v1210 = vrot.slane %v1200, %v1209
        %v1211 = vmul.f32 %v1191, %v1206
        %v1212 = vmul.f32 %v1192, %v1210
        %s1213 = scalar_lea.vmem [#allocation7], 24
        %v1214 = vld [vmem:[%s1213] sm:$0xff]
        %v1216 = vsel %vm624, %v1214, 0
        %1218 = vmatprep.subr.mxu0 %v531
        %1219 = vmatpush1.msra.mxu0 %v530
        %1220 = vmatprep.subr.mxu0 %v832
        %1221 = vmatpush1.msra.mxu0 %v831
        %1222 = vmatprep.subr.mxu0 %v1038
        %1223 = vmatpush1.msra.mxu0 %v1037
        %1224 = vmatprep.subr.mxu0 %v1212
        %1225 = vmatpush1.msra.mxu0 %v1211
        %1226 = vmatprep.subr.mxu0 0.0
        %1227 = vmatpush1.msra.mxu0 0.0
        %1228 = vmatprep.subr.mxu0 0.0
        %1229 = vmatpush1.msra.mxu0 0.0
        %1230 = vmatprep.subr.mxu0 0.0
        %1231 = vmatpush1.msra.mxu0 0.0
        %1232 = vmatprep.subr.mxu0 0.0
        %1233 = vmatpush1.msra.mxu0 0.0
        %1234 = vmatprep.subr.mxu0 0.0
        %1235 = vmatpush1.msra.mxu0 0.0
        %1236 = vmatprep.subr.mxu0 0.0
        %1237 = vmatpush1.msra.mxu0 0.0
        %1238 = vmatprep.subr.mxu0 0.0
        %1239 = vmatpush1.msra.mxu0 0.0
        %1240 = vmatprep.subr.mxu0 0.0
        %1241 = vmatpush1.msra.mxu0 0.0
        %1242 = vmatprep.subr.mxu0 0.0
        %1243 = vmatpush1.msra.mxu0 0.0
        %1244 = vmatprep.subr.mxu0 0.0
        %1245 = vmatpush1.msra.mxu0 0.0
        %1246 = vmatprep.subr.mxu0 0.0
        %1247 = vmatpush1.msra.mxu0 0.0
        %1248 = vmatprep.subr.mxu0 0.0
        %1249 = vmatpush1.msra.mxu0 0.0
        %1250 = vmatprep.subr.mxu0 0.0
        %1251 = vmatpush1.msra.mxu0 0.0
        %1252 = vmatprep.subr.mxu0 0.0
        %1253 = vmatpush1.msra.mxu0 0.0
        %1254 = vmatprep.subr.mxu0 0.0
        %1255 = vmatpush1.msra.mxu0 0.0
        %1256 = vmatprep.subr.mxu0 0.0
        %1257 = vmatpush1.msra.mxu0 0.0
        %1258 = vmatprep.subr.mxu0 0.0
        %1259 = vmatpush1.msra.mxu0 0.0
        %1260 = vmatprep.subr.mxu0 0.0
        %1261 = vmatpush1.msra.mxu0 0.0
        %1262 = vmatprep.subr.mxu0 0.0
        %1263 = vmatpush1.msra.mxu0 0.0
        %1264 = vmatprep.subr.mxu0 0.0
        %1265 = vmatpush1.msra.mxu0 0.0
        %1266 = vmatprep.subr.mxu0 0.0
        %1267 = vmatpush1.msra.mxu0 0.0
        %1268 = vmatprep.subr.mxu0 0.0
        %1269 = vmatpush1.msra.mxu0 0.0
        %1270 = vmatprep.subr.mxu0 0.0
        %1271 = vmatpush1.msra.mxu0 0.0
        %1272 = vmatprep.subr.mxu0 0.0
        %1273 = vmatpush1.msra.mxu0 0.0
        %1274 = vmatprep.subr.mxu0 0.0
        %1275 = vmatpush1.msra.mxu0 0.0
        %1276 = vmatprep.subr.mxu0 0.0
        %1277 = vmatpush1.msra.mxu0 0.0
        %1278 = vmatprep.subr.mxu0 0.0
        %1279 = vmatpush1.msra.mxu0 0.0
        %1280 = vmatprep.subr.mxu0 0.0
        %1281 = vmatpush1.msra.mxu0 0.0
        %1282 = vmatprep.mubr.f32.mxu0 0.0
        %1283 = vmatmul.mubr.f32.gmra.mrb[0].mxu0 %v1216
        %v1284 = vpop.f32.mrb[0].mxu0
        %v1285 = vadd.f32 0.0, %v1284
        %v1286 = vpop.f32.mrb[0].mxu0
        %v1287 = vadd.f32 0.0, %v1286
        %1288 = vdwg.mxu0
        %1289 = vmatprep.subr.mxu0 %v1287
        %1290 = vmatpush1.msra.mxu0 %v1285
        %1291 = vmatprep.subr.mxu0 0.0
        %1292 = vmatpush1.msra.mxu0 0.0
        %1293 = vmatprep.subr.mxu0 0.0
        %1294 = vmatpush1.msra.mxu0 0.0
        %1295 = vmatprep.subr.mxu0 0.0
        %1296 = vmatpush1.msra.mxu0 0.0
        %1297 = vmatprep.subr.mxu0 0.0
        %1298 = vmatpush1.msra.mxu0 0.0
        %1299 = vmatprep.subr.mxu0 0.0
        %1300 = vmatpush1.msra.mxu0 0.0
        %1301 = vmatprep.subr.mxu0 0.0
        %1302 = vmatpush1.msra.mxu0 0.0
        %1303 = vmatprep.subr.mxu0 0.0
        %1304 = vmatpush1.msra.mxu0 0.0
        %1305 = vmatprep.subr.mxu0 0.0
        %1306 = vmatpush1.msra.mxu0 0.0
        %1307 = vmatprep.subr.mxu0 0.0
        %1308 = vmatpush1.msra.mxu0 0.0
        %1309 = vmatprep.subr.mxu0 0.0
        %1310 = vmatpush1.msra.mxu0 0.0
        %1311 = vmatprep.subr.mxu0 0.0
        %1312 = vmatpush1.msra.mxu0 0.0
        %1313 = vmatprep.subr.mxu0 0.0
        %1314 = vmatpush1.msra.mxu0 0.0
        %1315 = vmatprep.subr.mxu0 0.0
        %1316 = vmatpush1.msra.mxu0 0.0
        %1317 = vmatprep.subr.mxu0 0.0
        %1318 = vmatpush1.msra.mxu0 0.0
        %1319 = vmatprep.subr.mxu0 0.0
        %1320 = vmatpush1.msra.mxu0 0.0
        %1321 = vmatprep.subr.mxu0 0.0
        %1322 = vmatpush1.msra.mxu0 0.0
        %1323 = vmatprep.subr.mxu0 0.0
        %1324 = vmatpush1.msra.mxu0 0.0
        %1325 = vmatprep.subr.mxu0 0.0
        %1326 = vmatpush1.msra.mxu0 0.0
        %1327 = vmatprep.subr.mxu0 0.0
        %1328 = vmatpush1.msra.mxu0 0.0
        %1329 = vmatprep.subr.mxu0 0.0
        %1330 = vmatpush1.msra.mxu0 0.0
        %1331 = vmatprep.subr.mxu0 0.0
        %1332 = vmatpush1.msra.mxu0 0.0
        %1333 = vmatprep.subr.mxu0 0.0
        %1334 = vmatpush1.msra.mxu0 0.0
        %1335 = vmatprep.subr.mxu0 0.0
        %1336 = vmatpush1.msra.mxu0 0.0
        %1337 = vmatprep.subr.mxu0 0.0
        %1338 = vmatpush1.msra.mxu0 0.0
        %1339 = vmatprep.subr.mxu0 0.0
        %1340 = vmatpush1.msra.mxu0 0.0
        %1341 = vmatprep.subr.mxu0 0.0
        %1342 = vmatpush1.msra.mxu0 0.0
        %1343 = vmatprep.subr.mxu0 0.0
        %1344 = vmatpush1.msra.mxu0 0.0
        %1345 = vmatprep.subr.mxu0 0.0
        %1346 = vmatpush1.msra.mxu0 0.0
        %1347 = vmatprep.subr.mxu0 0.0
        %1348 = vmatpush1.msra.mxu0 0.0
        %1349 = vmatprep.subr.mxu0 0.0
        %1350 = vmatpush1.msra.mxu0 0.0
        %1351 = vmatprep.subr.mxu0 0.0
        %1352 = vmatpush1.msra.mxu0 0.0
        %1353 = vmatprep.mubr.f32.mxu0 0.0
        %1354 = vmatmul.mubr.f32.gmra.mrb[0].mxu0 %v701
        %v1355 = vpop.f32.mrb[0].mxu0
        %v1356 = vadd.f32 0.0, %v1355
        %v1357 = vpop.f32.mrb[0].mxu0
        %v1358 = vadd.f32 0.0, %v1357
        %1359 = vdwg.mxu0
        %v1360 = vld [vmem:[#allocation10] sm:$0xff]
        %1361 = vrot.lane.b32.xlu0 %v1285, 17
        %v1362 = vpop.permute.xlu0 %1361
        %1363 = vrot.lane.b32.xlu0 %v1287, 17
        %v1364 = vpop.permute.xlu0 %1363
        %v1365 = vsel %vm540, %v1362, %v1364
        %v1366 = vsel %vm540, %v1364, %v1362
        %v1367 = vmul.f32 %v1366, %v562
        %v1368 = vmul.f32 %v1365, %v566
        %1369 = vrot.lane.b32.xlu0 %v1111, 16
        %v1370 = vpop.permute.xlu0 %1369
        %1371 = vrot.lane.b32.xlu0 %v1113, 16
        %v1372 = vpop.permute.xlu0 %1371
        %v1373 = vsel %vm573, %v1370, %v1372
        %v1374 = vsel %vm573, %v1372, %v1370
        %v1375 = vmul.f32 %v1374, %v589
        %v1376 = vmul.f32 %v1373, %v593
        %1377 = vrot.lane.b32.xlu0 %v1285, 16
        %v1378 = vpop.permute.xlu0 %1377
        %1379 = vrot.lane.b32.xlu0 %v1287, 16
        %v1380 = vpop.permute.xlu0 %1379
        %v1381 = vsel %vm573, %v1378, %v1380
        %v1382 = vsel %vm573, %v1380, %v1378
        %v1383 = vmul.f32 %v1382, %v589
        %v1384 = vmul.f32 %v1381, %v593
        %1385 = vrot.lane.b32.xlu0 %v905, 1
        %v1386 = vpop.permute.xlu0 %1385
        %1387 = vrot.lane.b32.xlu0 %v907, 1
        %v1388 = vpop.permute.xlu0 %1387
        %v1389 = vsel %vm600, %v1386, %v1388
        %v1390 = vsel %vm600, %v1388, %v1386
        %v1391 = vmul.f32 %v1390, %v616
        %v1392 = vmul.f32 %v1389, %v620
        %1393 = vrot.lane.b32.xlu0 %v1285, 1
        %v1394 = vpop.permute.xlu0 %1393
        %1395 = vrot.lane.b32.xlu0 %v1287, 1
        %v1396 = vpop.permute.xlu0 %1395
        %v1397 = vsel %vm600, %v1394, %v1396
        %v1398 = vsel %vm600, %v1396, %v1394
        %v1399 = vmul.f32 %v1398, %v616
        %v1400 = vmul.f32 %v1397, %v620
        %vm1401 = vcmask 588800
        %v1403 = vsel %vm1401, %v1360, 0
        %1405 = vmatprep.subr.mxu0 %v1368
        %1406 = vmatpush1.msra.mxu0 %v1367
        %1407 = vmatprep.subr.mxu0 %v1376
        %1408 = vmatpush1.msra.mxu0 %v1375
        %1409 = vmatprep.subr.mxu0 %v1384
        %1410 = vmatpush1.msra.mxu0 %v1383
        %1411 = vmatprep.subr.mxu0 %v1392
        %1412 = vmatpush1.msra.mxu0 %v1391
        %1413 = vmatprep.subr.mxu0 %v697
        %1414 = vmatpush1.msra.mxu0 %v695
        %1415 = vmatprep.subr.mxu0 %v907
        %1416 = vmatpush1.msra.mxu0 %v905
        %1417 = vmatprep.subr.mxu0 %v1400
        %1418 = vmatpush1.msra.mxu0 %v1399
        %1419 = vmatprep.subr.mxu0 %v1113
        %1420 = vmatpush1.msra.mxu0 %v1111
        %1421 = vmatprep.subr.mxu0 %v1287
        %1422 = vmatpush1.msra.mxu0 %v1285
        %1423 = vmatprep.subr.mxu0 0.0
        %1424 = vmatpush1.msra.mxu0 0.0
        %1425 = vmatprep.subr.mxu0 0.0
        %1426 = vmatpush1.msra.mxu0 0.0
        %1427 = vmatprep.subr.mxu0 0.0
        %1428 = vmatpush1.msra.mxu0 0.0
        %1429 = vmatprep.subr.mxu0 0.0
        %1430 = vmatpush1.msra.mxu0 0.0
        %1431 = vmatprep.subr.mxu0 0.0
        %1432 = vmatpush1.msra.mxu0 0.0
        %1433 = vmatprep.subr.mxu0 0.0
        %1434 = vmatpush1.msra.mxu0 0.0
        %1435 = vmatprep.subr.mxu0 0.0
        %1436 = vmatpush1.msra.mxu0 0.0
        %1437 = vmatprep.subr.mxu0 0.0
        %1438 = vmatpush1.msra.mxu0 0.0
        %1439 = vmatprep.subr.mxu0 0.0
        %1440 = vmatpush1.msra.mxu0 0.0
        %1441 = vmatprep.subr.mxu0 0.0
        %1442 = vmatpush1.msra.mxu0 0.0
        %1443 = vmatprep.subr.mxu0 0.0
        %1444 = vmatpush1.msra.mxu0 0.0
        %1445 = vmatprep.subr.mxu0 0.0
        %1446 = vmatpush1.msra.mxu0 0.0
        %1447 = vmatprep.subr.mxu0 0.0
        %1448 = vmatpush1.msra.mxu0 0.0
        %1449 = vmatprep.subr.mxu0 0.0
        %1450 = vmatpush1.msra.mxu0 0.0
        %1451 = vmatprep.subr.mxu0 0.0
        %1452 = vmatpush1.msra.mxu0 0.0
        %1453 = vmatprep.subr.mxu0 0.0
        %1454 = vmatpush1.msra.mxu0 0.0
        %1455 = vmatprep.subr.mxu0 0.0
        %1456 = vmatpush1.msra.mxu0 0.0
        %1457 = vmatprep.subr.mxu0 0.0
        %1458 = vmatpush1.msra.mxu0 0.0
        %1459 = vmatprep.subr.mxu0 0.0
        %1460 = vmatpush1.msra.mxu0 0.0
        %1461 = vmatprep.subr.mxu0 0.0
        %1462 = vmatpush1.msra.mxu0 0.0
        %1463 = vmatprep.subr.mxu0 0.0
        %1464 = vmatpush1.msra.mxu0 0.0
        %1465 = vmatprep.subr.mxu0 0.0
        %1466 = vmatpush1.msra.mxu0 0.0
        %1467 = vmatprep.subr.mxu0 0.0
        %1468 = vmatpush1.msra.mxu0 0.0
        %1469 = vmatprep.mubr.f32.mxu0 0.0
        %1470 = vmatmul.mubr.f32.gmra.mrb[0].mxu0 %v1403
        %v1471 = vpop.f32.mrb[0].mxu0
        %v1472 = vadd.f32 0.0, %v1471
        %v1473 = vpop.f32.mrb[0].mxu0
        %v1474 = vadd.f32 0.0, %v1473
        %1475 = vdwg.mxu0
        %1476 = vrot.lane.b32.xlu0 %v1111, 15
        %v1477 = vpop.permute.xlu0 %1476
        %1478 = vrot.lane.b32.xlu0 %v1113, 15
        %v1479 = vpop.permute.xlu0 %1478
        %v1480 = vsel %vm778, %v1477, %v1479
        %v1481 = vsel %vm778, %v1479, %v1477
        %v1482 = vmul.f32 %v1481, %v799
        %v1483 = vmul.f32 %v1480, %v803
        %1484 = vrot.lane.b32.xlu0 %v695, 127
        %v1485 = vpop.permute.xlu0 %1484
        %1486 = vrot.lane.b32.xlu0 %v697, 127
        %v1487 = vpop.permute.xlu0 %1486
        %v1488 = vsel %vm810, %v1485, %v1487
        %v1489 = vsel %vm810, %v1487, %v1485
        %v1490 = vmul.f32 %v1488, %v826
        %v1491 = vmul.f32 %v1489, %v830
        %1492 = vrot.lane.b32.xlu0 %v1111, 127
        %v1493 = vpop.permute.xlu0 %1492
        %1494 = vrot.lane.b32.xlu0 %v1113, 127
        %v1495 = vpop.permute.xlu0 %1494
        %v1496 = vsel %vm810, %v1493, %v1495
        %v1497 = vsel %vm810, %v1495, %v1493
        %v1498 = vmul.f32 %v1496, %v826
        %v1499 = vmul.f32 %v1497, %v830
        %1500 = vmatprep.subr.mxu0 %v1376
        %1501 = vmatpush1.msra.mxu0 %v1375
        %1502 = vmatprep.subr.mxu0 %v1384
        %1503 = vmatpush1.msra.mxu0 %v1383
        %1504 = vmatprep.subr.mxu0 %v1483
        %1505 = vmatpush1.msra.mxu0 %v1482
        %1506 = vmatprep.subr.mxu0 %v697
        %1507 = vmatpush1.msra.mxu0 %v695
        %1508 = vmatprep.subr.mxu0 %v907
        %1509 = vmatpush1.msra.mxu0 %v905
        %1510 = vmatprep.subr.mxu0 %v1491
        %1511 = vmatpush1.msra.mxu0 %v1490
        %1512 = vmatprep.subr.mxu0 %v1113
        %1513 = vmatpush1.msra.mxu0 %v1111
        %1514 = vmatprep.subr.mxu0 %v1287
        %1515 = vmatpush1.msra.mxu0 %v1285
        %1516 = vmatprep.subr.mxu0 %v1499
        %1517 = vmatpush1.msra.mxu0 %v1498
        %1518 = vmatprep.subr.mxu0 0.0
        %1519 = vmatpush1.msra.mxu0 0.0
        %1520 = vmatprep.subr.mxu0 0.0
        %1521 = vmatpush1.msra.mxu0 0.0
        %1522 = vmatprep.subr.mxu0 0.0
        %1523 = vmatpush1.msra.mxu0 0.0
        %1524 = vmatprep.subr.mxu0 0.0
        %1525 = vmatpush1.msra.mxu0 0.0
        %1526 = vmatprep.subr.mxu0 0.0
        %1527 = vmatpush1.msra.mxu0 0.0
        %1528 = vmatprep.subr.mxu0 0.0
        %1529 = vmatpush1.msra.mxu0 0.0
        %1530 = vmatprep.subr.mxu0 0.0
        %1531 = vmatpush1.msra.mxu0 0.0
        %1532 = vmatprep.subr.mxu0 0.0
        %1533 = vmatpush1.msra.mxu0 0.0
        %1534 = vmatprep.subr.mxu0 0.0
        %1535 = vmatpush1.msra.mxu0 0.0
        %1536 = vmatprep.subr.mxu0 0.0
        %1537 = vmatpush1.msra.mxu0 0.0
        %1538 = vmatprep.subr.mxu0 0.0
        %1539 = vmatpush1.msra.mxu0 0.0
        %1540 = vmatprep.subr.mxu0 0.0
        %1541 = vmatpush1.msra.mxu0 0.0
        %1542 = vmatprep.subr.mxu0 0.0
        %1543 = vmatpush1.msra.mxu0 0.0
        %1544 = vmatprep.subr.mxu0 0.0
        %1545 = vmatpush1.msra.mxu0 0.0
        %1546 = vmatprep.subr.mxu0 0.0
        %1547 = vmatpush1.msra.mxu0 0.0
        %1548 = vmatprep.subr.mxu0 0.0
        %1549 = vmatpush1.msra.mxu0 0.0
        %1550 = vmatprep.subr.mxu0 0.0
        %1551 = vmatpush1.msra.mxu0 0.0
        %1552 = vmatprep.subr.mxu0 0.0
        %1553 = vmatpush1.msra.mxu0 0.0
        %1554 = vmatprep.subr.mxu0 0.0
        %1555 = vmatpush1.msra.mxu0 0.0
        %1556 = vmatprep.subr.mxu0 0.0
        %1557 = vmatpush1.msra.mxu0 0.0
        %1558 = vmatprep.subr.mxu0 0.0
        %1559 = vmatpush1.msra.mxu0 0.0
        %1560 = vmatprep.subr.mxu0 0.0
        %1561 = vmatpush1.msra.mxu0 0.0
        %1562 = vmatprep.subr.mxu0 0.0
        %1563 = vmatpush1.msra.mxu0 0.0
        %1564 = vmatprep.mubr.f32.mxu0 0.0
        %1565 = vmatmul.mubr.f32.gmra.mrb[0].mxu0 %v1403
        %v1566 = vpop.f32.mrb[0].mxu0
        %v1567 = vadd.f32 0.0, %v1566
        %v1568 = vpop.f32.mrb[0].mxu0
        %v1569 = vadd.f32 0.0, %v1568
        %1570 = vdwg.mxu0
        %1571 = vrot.lane.b32.xlu0 %v905, 113
        %v1572 = vpop.permute.xlu0 %1571
        %1573 = vrot.lane.b32.xlu0 %v907, 113
        %v1574 = vpop.permute.xlu0 %1573
        %v1575 = vsel %vm984, %v1572, %v1574
        %v1576 = vsel %vm984, %v1574, %v1572
        %v1577 = vmul.f32 %v1575, %v1005
        %v1578 = vmul.f32 %v1576, %v1009
        %1579 = vrot.lane.b32.xlu0 %v695, 112
        %v1580 = vpop.permute.xlu0 %1579
        %1581 = vrot.lane.b32.xlu0 %v697, 112
        %v1582 = vpop.permute.xlu0 %1581
        %v1583 = vsel %vm1016, %v1580, %v1582
        %v1584 = vsel %vm1016, %v1582, %v1580
        %v1585 = vmul.f32 %v1583, %v1032
        %v1586 = vmul.f32 %v1584, %v1036
        %1587 = vrot.lane.b32.xlu0 %v905, 112
        %v1588 = vpop.permute.xlu0 %1587
        %1589 = vrot.lane.b32.xlu0 %v907, 112
        %v1590 = vpop.permute.xlu0 %1589
        %v1591 = vsel %vm1016, %v1588, %v1590
        %v1592 = vsel %vm1016, %v1590, %v1588
        %v1593 = vmul.f32 %v1591, %v1032
        %v1594 = vmul.f32 %v1592, %v1036
        %1595 = vmatprep.subr.mxu0 %v1392
        %1596 = vmatpush1.msra.mxu0 %v1391
        %1597 = vmatprep.subr.mxu0 %v697
        %1598 = vmatpush1.msra.mxu0 %v695
        %1599 = vmatprep.subr.mxu0 %v907
        %1600 = vmatpush1.msra.mxu0 %v905
        %1601 = vmatprep.subr.mxu0 %v1400
        %1602 = vmatpush1.msra.mxu0 %v1399
        %1603 = vmatprep.subr.mxu0 %v1113
        %1604 = vmatpush1.msra.mxu0 %v1111
        %1605 = vmatprep.subr.mxu0 %v1287
        %1606 = vmatpush1.msra.mxu0 %v1285
        %1607 = vmatprep.subr.mxu0 %v1578
        %1608 = vmatpush1.msra.mxu0 %v1577
        %1609 = vmatprep.subr.mxu0 %v1586
        %1610 = vmatpush1.msra.mxu0 %v1585
        %1611 = vmatprep.subr.mxu0 %v1594
        %1612 = vmatpush1.msra.mxu0 %v1593
        %1613 = vmatprep.subr.mxu0 0.0
        %1614 = vmatpush1.msra.mxu0 0.0
        %1615 = vmatprep.subr.mxu0 0.0
        %1616 = vmatpush1.msra.mxu0 0.0
        %1617 = vmatprep.subr.mxu0 0.0
        %1618 = vmatpush1.msra.mxu0 0.0
        %1619 = vmatprep.subr.mxu0 0.0
        %1620 = vmatpush1.msra.mxu0 0.0
        %1621 = vmatprep.subr.mxu0 0.0
        %1622 = vmatpush1.msra.mxu0 0.0
        %1623 = vmatprep.subr.mxu0 0.0
        %1624 = vmatpush1.msra.mxu0 0.0
        %1625 = vmatprep.subr.mxu0 0.0
        %1626 = vmatpush1.msra.mxu0 0.0
        %1627 = vmatprep.subr.mxu0 0.0
        %1628 = vmatpush1.msra.mxu0 0.0
        %1629 = vmatprep.subr.mxu0 0.0
        %1630 = vmatpush1.msra.mxu0 0.0
        %1631 = vmatprep.subr.mxu0 0.0
        %1632 = vmatpush1.msra.mxu0 0.0
        %1633 = vmatprep.subr.mxu0 0.0
        %1634 = vmatpush1.msra.mxu0 0.0
        %1635 = vmatprep.subr.mxu0 0.0
        %1636 = vmatpush1.msra.mxu0 0.0
        %1637 = vmatprep.subr.mxu0 0.0
        %1638 = vmatpush1.msra.mxu0 0.0
        %1639 = vmatprep.subr.mxu0 0.0
        %1640 = vmatpush1.msra.mxu0 0.0
        %1641 = vmatprep.subr.mxu0 0.0
        %1642 = vmatpush1.msra.mxu0 0.0
        %1643 = vmatprep.subr.mxu0 0.0
        %1644 = vmatpush1.msra.mxu0 0.0
        %1645 = vmatprep.subr.mxu0 0.0
        %1646 = vmatpush1.msra.mxu0 0.0
        %1647 = vmatprep.subr.mxu0 0.0
        %1648 = vmatpush1.msra.mxu0 0.0
        %1649 = vmatprep.subr.mxu0 0.0
        %1650 = vmatpush1.msra.mxu0 0.0
        %1651 = vmatprep.subr.mxu0 0.0
        %1652 = vmatpush1.msra.mxu0 0.0
        %1653 = vmatprep.subr.mxu0 0.0
        %1654 = vmatpush1.msra.mxu0 0.0
        %1655 = vmatprep.subr.mxu0 0.0
        %1656 = vmatpush1.msra.mxu0 0.0
        %1657 = vmatprep.subr.mxu0 0.0
        %1658 = vmatpush1.msra.mxu0 0.0
        %1659 = vmatprep.mubr.f32.mxu0 0.0
        %1660 = vmatmul.mubr.f32.gmra.mrb[0].mxu0 %v1403
        %v1661 = vpop.f32.mrb[0].mxu0
        %v1662 = vadd.f32 0.0, %v1661
        %v1663 = vpop.f32.mrb[0].mxu0
        %v1664 = vadd.f32 0.0, %v1663
        %1665 = vdwg.mxu0
        %1666 = vrot.lane.b32.xlu0 %v695, 111
        %v1667 = vpop.permute.xlu0 %1666
        %1668 = vrot.lane.b32.xlu0 %v697, 111
        %v1669 = vpop.permute.xlu0 %1668
        %v1670 = vsel %vm1190, %v1667, %v1669
        %v1671 = vsel %vm1190, %v1669, %v1667
        %v1672 = vmul.f32 %v1670, %v1206
        %v1673 = vmul.f32 %v1671, %v1210
        %1674 = vmatprep.subr.mxu0 %v697
        %1675 = vmatpush1.msra.mxu0 %v695
        %1676 = vmatprep.subr.mxu0 %v907
        %1677 = vmatpush1.msra.mxu0 %v905
        %1678 = vmatprep.subr.mxu0 %v1491
        %1679 = vmatpush1.msra.mxu0 %v1490
        %1680 = vmatprep.subr.mxu0 %v1113
        %1681 = vmatpush1.msra.mxu0 %v1111
        %1682 = vmatprep.subr.mxu0 %v1287
        %1683 = vmatpush1.msra.mxu0 %v1285
        %1684 = vmatprep.subr.mxu0 %v1499
        %1685 = vmatpush1.msra.mxu0 %v1498
        %1686 = vmatprep.subr.mxu0 %v1586
        %1687 = vmatpush1.msra.mxu0 %v1585
        %1688 = vmatprep.subr.mxu0 %v1594
        %1689 = vmatpush1.msra.mxu0 %v1593
        %1690 = vmatprep.subr.mxu0 %v1673
        %1691 = vmatpush1.msra.mxu0 %v1672
        %1692 = vmatprep.subr.mxu0 0.0
        %1693 = vmatpush1.msra.mxu0 0.0
        %1694 = vmatprep.subr.mxu0 0.0
        %1695 = vmatpush1.msra.mxu0 0.0
        %1696 = vmatprep.subr.mxu0 0.0
        %1697 = vmatpush1.msra.mxu0 0.0
        %1698 = vmatprep.subr.mxu0 0.0
        %1699 = vmatpush1.msra.mxu0 0.0
        %1700 = vmatprep.subr.mxu0 0.0
        %1701 = vmatpush1.msra.mxu0 0.0
        %1702 = vmatprep.subr.mxu0 0.0
        %1703 = vmatpush1.msra.mxu0 0.0
        %1704 = vmatprep.subr.mxu0 0.0
        %1705 = vmatpush1.msra.mxu0 0.0
        %1706 = vmatprep.subr.mxu0 0.0
        %1707 = vmatpush1.msra.mxu0 0.0
        %1708 = vmatprep.subr.mxu0 0.0
        %1709 = vmatpush1.msra.mxu0 0.0
        %1710 = vmatprep.subr.mxu0 0.0
        %1711 = vmatpush1.msra.mxu0 0.0
        %1712 = vmatprep.subr.mxu0 0.0
        %1713 = vmatpush1.msra.mxu0 0.0
        %1714 = vmatprep.subr.mxu0 0.0
        %1715 = vmatpush1.msra.mxu0 0.0
        %1716 = vmatprep.subr.mxu0 0.0
        %1717 = vmatpush1.msra.mxu0 0.0
        %1718 = vmatprep.subr.mxu0 0.0
        %1719 = vmatpush1.msra.mxu0 0.0
        %1720 = vmatprep.subr.mxu0 0.0
        %1721 = vmatpush1.msra.mxu0 0.0
        %1722 = vmatprep.subr.mxu0 0.0
        %1723 = vmatpush1.msra.mxu0 0.0
        %1724 = vmatprep.subr.mxu0 0.0
        %1725 = vmatpush1.msra.mxu0 0.0
        %1726 = vmatprep.subr.mxu0 0.0
        %1727 = vmatpush1.msra.mxu0 0.0
        %1728 = vmatprep.subr.mxu0 0.0
        %1729 = vmatpush1.msra.mxu0 0.0
        %1730 = vmatprep.subr.mxu0 0.0
        %1731 = vmatpush1.msra.mxu0 0.0
        %1732 = vmatprep.subr.mxu0 0.0
        %1733 = vmatpush1.msra.mxu0 0.0
        %1734 = vmatprep.subr.mxu0 0.0
        %1735 = vmatpush1.msra.mxu0 0.0
        %1736 = vmatprep.subr.mxu0 0.0
        %1737 = vmatpush1.msra.mxu0 0.0
        %1738 = vmatprep.mubr.f32.mxu0 0.0
        %1739 = vmatmul.mubr.f32.gmra.mrb[0].mxu0 %v1403
        %v1740 = vpop.f32.mrb[0].mxu0
        %v1741 = vadd.f32 0.0, %v1740
        %v1742 = vpop.f32.mrb[0].mxu0
        %v1743 = vadd.f32 0.0, %v1742
        %1744 = vdwg.mxu0
        %v1745 = vld [vmem:[#allocation19] sm:$0xff]
        %v1746 = vld [vmem:[#allocation11] sm:$0xff]
        %v1747 = vld [vmem:[#allocation13] sm:$0xff]
        %v1748 = vadd.f32 %v1472, %v1474
        %1749 = vadd.xlane.f32.xlu0 %v1748
        %v1750 = vpop.xlane.xlu0 %1749
        %v1751 = vadd.f32 %v1567, %v1569
        %1752 = vadd.xlane.f32.xlu0 %v1751
        %v1753 = vpop.xlane.xlu0 %1752
        %v1754 = vadd.f32 %v1750, %v1753
        %v1755 = vadd.f32 %v1662, %v1664
        %1756 = vadd.xlane.f32.xlu0 %v1755
        %v1757 = vpop.xlane.xlu0 %1756
        %v1758 = vadd.f32 %v1754, %v1757
        %v1759 = vadd.f32 %v1741, %v1743
        %1760 = vadd.xlane.f32.xlu0 %v1759
        %v1761 = vpop.xlane.xlu0 %1760
        %v1762 = vadd.f32 %v1758, %v1761
        %v1764 = vsel %vm699, %v1745, 0
        %1766 = vmatprep.subr.mxu0 0.0
        %1767 = vmatpush1.msra.mxu0 %v1762
        %1768 = vmatprep.subr.mxu0 0.0
        %1769 = vmatpush1.msra.mxu0 0.0
        %1770 = vmatprep.subr.mxu0 0.0
        %1771 = vmatpush1.msra.mxu0 0.0
        %1772 = vmatprep.subr.mxu0 0.0
        %1773 = vmatpush1.msra.mxu0 0.0
        %1774 = vmatprep.subr.mxu0 0.0
        %1775 = vmatpush1.msra.mxu0 0.0
        %1776 = vmatprep.subr.mxu0 0.0
        %1777 = vmatpush1.msra.mxu0 0.0
        %1778 = vmatprep.subr.mxu0 0.0
        %1779 = vmatpush1.msra.mxu0 0.0
        %1780 = vmatprep.subr.mxu0 0.0
        %1781 = vmatpush1.msra.mxu0 0.0
        %1782 = vmatprep.subr.mxu0 0.0
        %1783 = vmatpush1.msra.mxu0 0.0
        %1784 = vmatprep.subr.mxu0 0.0
        %1785 = vmatpush1.msra.mxu0 0.0
        %1786 = vmatprep.subr.mxu0 0.0
        %1787 = vmatpush1.msra.mxu0 0.0
        %1788 = vmatprep.subr.mxu0 0.0
        %1789 = vmatpush1.msra.mxu0 0.0
        %1790 = vmatprep.subr.mxu0 0.0
        %1791 = vmatpush1.msra.mxu0 0.0
        %1792 = vmatprep.subr.mxu0 0.0
        %1793 = vmatpush1.msra.mxu0 0.0
        %1794 = vmatprep.subr.mxu0 0.0
        %1795 = vmatpush1.msra.mxu0 0.0
        %1796 = vmatprep.subr.mxu0 0.0
        %1797 = vmatpush1.msra.mxu0 0.0
        %1798 = vmatprep.subr.mxu0 0.0
        %1799 = vmatpush1.msra.mxu0 0.0
        %1800 = vmatprep.subr.mxu0 0.0
        %1801 = vmatpush1.msra.mxu0 0.0
        %1802 = vmatprep.subr.mxu0 0.0
        %1803 = vmatpush1.msra.mxu0 0.0
        %1804 = vmatprep.subr.mxu0 0.0
        %1805 = vmatpush1.msra.mxu0 0.0
        %1806 = vmatprep.subr.mxu0 0.0
        %1807 = vmatpush1.msra.mxu0 0.0
        %1808 = vmatprep.subr.mxu0 0.0
        %1809 = vmatpush1.msra.mxu0 0.0
        %1810 = vmatprep.subr.mxu0 0.0
        %1811 = vmatpush1.msra.mxu0 0.0
        %1812 = vmatprep.subr.mxu0 0.0
        %1813 = vmatpush1.msra.mxu0 0.0
        %1814 = vmatprep.subr.mxu0 0.0
        %1815 = vmatpush1.msra.mxu0 0.0
        %1816 = vmatprep.subr.mxu0 0.0
        %1817 = vmatpush1.msra.mxu0 0.0
        %1818 = vmatprep.subr.mxu0 0.0
        %1819 = vmatpush1.msra.mxu0 0.0
        %1820 = vmatprep.subr.mxu0 0.0
        %1821 = vmatpush1.msra.mxu0 0.0
        %1822 = vmatprep.subr.mxu0 0.0
        %1823 = vmatpush1.msra.mxu0 0.0
        %1824 = vmatprep.subr.mxu0 0.0
        %1825 = vmatpush1.msra.mxu0 0.0
        %1826 = vmatprep.subr.mxu0 0.0
        %1827 = vmatpush1.msra.mxu0 0.0
        %1828 = vmatprep.subr.mxu0 0.0
        %1829 = vmatpush1.msra.mxu0 0.0
        %1830 = vmatprep.mubr.f32.mxu0 0.0
        %1831 = vmatmul.mubr.f32.gmra.mrb[0].mxu0 %v1764
        %v1832 = vpop.f32.mrb[0].mxu0
        %v1833 = vadd.f32 0.0, %v1832
        %v1834 = vpop.f32.mrb[0].mxu0
        %1835 = vdwg.mxu0
        %1837 = vset.pattern.permute.xlu0 0
        %1838 = vperm.xlu0 %1837, %v1833
        %v1839 = vpop.permute.xlu0 %1838
        %v1841 = vsub.f32 %v1472, %v1839
        %v1842 = vsub.f32 %v1474, %v1839
        %v1843 = vsub.f32 %v1567, %v1839
        %v1844 = vsub.f32 %v1569, %v1839
        %v1845 = vsub.f32 %v1662, %v1839
        %v1846 = vsub.f32 %v1664, %v1839
        %v1847 = vsub.f32 %v1741, %v1839
        %v1848 = vsub.f32 %v1743, %v1839
        %v1849 = vmul.f32 %v1841, %v1841
        %v1850 = vmul.f32 %v1842, %v1842
        %v1851 = vadd.f32 %v1849, %v1850
        %1852 = vadd.xlane.f32.xlu0 %v1851
        %v1853 = vpop.xlane.xlu0 %1852
        %v1854 = vmul.f32 %v1843, %v1843
        %v1855 = vmul.f32 %v1844, %v1844
        %v1856 = vadd.f32 %v1854, %v1855
        %1857 = vadd.xlane.f32.xlu0 %v1856
        %v1858 = vpop.xlane.xlu0 %1857
        %v1859 = vadd.f32 %v1853, %v1858
        %v1860 = vmul.f32 %v1845, %v1845
        %v1861 = vmul.f32 %v1846, %v1846
        %v1862 = vadd.f32 %v1860, %v1861
        %1863 = vadd.xlane.f32.xlu0 %v1862
        %v1864 = vpop.xlane.xlu0 %1863
        %v1865 = vadd.f32 %v1859, %v1864
        %v1866 = vmul.f32 %v1847, %v1847
        %v1867 = vmul.f32 %v1848, %v1848
        %v1868 = vadd.f32 %v1866, %v1867
        %1869 = vadd.xlane.f32.xlu0 %v1868
        %v1870 = vpop.xlane.xlu0 %1869
        %v1871 = vadd.f32 %v1865, %v1870
        %1872 = vmatprep.subr.mxu0 0.0
        %1873 = vmatpush1.msra.mxu0 %v1871
        %1874 = vmatprep.subr.mxu0 0.0
        %1875 = vmatpush1.msra.mxu0 0.0
        %1876 = vmatprep.subr.mxu0 0.0
        %1877 = vmatpush1.msra.mxu0 0.0
        %1878 = vmatprep.subr.mxu0 0.0
        %1879 = vmatpush1.msra.mxu0 0.0
        %1880 = vmatprep.subr.mxu0 0.0
        %1881 = vmatpush1.msra.mxu0 0.0
        %1882 = vmatprep.subr.mxu0 0.0
        %1883 = vmatpush1.msra.mxu0 0.0
        %1884 = vmatprep.subr.mxu0 0.0
        %1885 = vmatpush1.msra.mxu0 0.0
        %1886 = vmatprep.subr.mxu0 0.0
        %1887 = vmatpush1.msra.mxu0 0.0
        %1888 = vmatprep.subr.mxu0 0.0
        %1889 = vmatpush1.msra.mxu0 0.0
        %1890 = vmatprep.subr.mxu0 0.0
        %1891 = vmatpush1.msra.mxu0 0.0
        %1892 = vmatprep.subr.mxu0 0.0
        %1893 = vmatpush1.msra.mxu0 0.0
        %1894 = vmatprep.subr.mxu0 0.0
        %1895 = vmatpush1.msra.mxu0 0.0
        %1896 = vmatprep.subr.mxu0 0.0
        %1897 = vmatpush1.msra.mxu0 0.0
        %1898 = vmatprep.subr.mxu0 0.0
        %1899 = vmatpush1.msra.mxu0 0.0
        %1900 = vmatprep.subr.mxu0 0.0
        %1901 = vmatpush1.msra.mxu0 0.0
        %1902 = vmatprep.subr.mxu0 0.0
        %1903 = vmatpush1.msra.mxu0 0.0
        %1904 = vmatprep.subr.mxu0 0.0
        %1905 = vmatpush1.msra.mxu0 0.0
        %1906 = vmatprep.subr.mxu0 0.0
        %1907 = vmatpush1.msra.mxu0 0.0
        %1908 = vmatprep.subr.mxu0 0.0
        %1909 = vmatpush1.msra.mxu0 0.0
        %1910 = vmatprep.subr.mxu0 0.0
        %1911 = vmatpush1.msra.mxu0 0.0
        %1912 = vmatprep.subr.mxu0 0.0
        %1913 = vmatpush1.msra.mxu0 0.0
        %1914 = vmatprep.subr.mxu0 0.0
        %1915 = vmatpush1.msra.mxu0 0.0
        %1916 = vmatprep.subr.mxu0 0.0
        %1917 = vmatpush1.msra.mxu0 0.0
        %1918 = vmatprep.subr.mxu0 0.0
        %1919 = vmatpush1.msra.mxu0 0.0
        %1920 = vmatprep.subr.mxu0 0.0
        %1921 = vmatpush1.msra.mxu0 0.0
        %1922 = vmatprep.subr.mxu0 0.0
        %1923 = vmatpush1.msra.mxu0 0.0
        %1924 = vmatprep.subr.mxu0 0.0
        %1925 = vmatpush1.msra.mxu0 0.0
        %1926 = vmatprep.subr.mxu0 0.0
        %1927 = vmatpush1.msra.mxu0 0.0
        %1928 = vmatprep.subr.mxu0 0.0
        %1929 = vmatpush1.msra.mxu0 0.0
        %1930 = vmatprep.subr.mxu0 0.0
        %1931 = vmatpush1.msra.mxu0 0.0
        %1932 = vmatprep.subr.mxu0 0.0
        %1933 = vmatpush1.msra.mxu0 0.0
        %1934 = vmatprep.subr.mxu0 0.0
        %1935 = vmatpush1.msra.mxu0 0.0
        %1936 = vmatprep.mubr.f32.mxu0 0.0
        %1937 = vmatmul.mubr.f32.gmra.mrb[0].mxu0 %v1764
        %v1938 = vpop.f32.mrb[0].mxu0
        %v1939 = vadd.f32 1e-05, %v1938
        %v1940 = vpop.f32.mrb[0].mxu0
        %1941 = vdwg.mxu0
        %v1942 = vrsqrt.pop %v1939
        %v1943 = vmul.f32 %v1942, %v1746
        %1945 = vset.pattern.permute.xlu0 0
        %1946 = vperm.xlu0 %1945, %v1943
        %v1947 = vpop.permute.xlu0 %1946
        %v1949 = vmul.f32 %v1841, %v1947
        %v1950 = vmul.f32 %v1842, %v1947
        %1952 = vset.pattern.permute.xlu0 0
        %1953 = vperm.xlu0 %1952, %v1747
        %v1954 = vpop.permute.xlu0 %1953
        %v1956 = vadd.f32 %v1949, %v1954
        %v1957 = vadd.f32 %v1950, %v1954
        %v1958 = vmul.f32 %v1843, %v1947
        %v1959 = vmul.f32 %v1844, %v1947
        %v1960 = vadd.f32 %v1958, %v1954
        %v1961 = vadd.f32 %v1959, %v1954
        %v1962 = vmul.f32 %v1845, %v1947
        %v1963 = vmul.f32 %v1846, %v1947
        %v1964 = vadd.f32 %v1962, %v1954
        %v1965 = vadd.f32 %v1963, %v1954
        %v1966 = vmul.f32 %v1847, %v1947
        %v1967 = vmul.f32 %v1848, %v1947
        %v1968 = vadd.f32 %v1966, %v1954
        %v1969 = vadd.f32 %v1967, %v1954
        %v1970 = vxor.u32 %v1956, 2147483648
        %v1971 = vxor.u32 %v1957, 2147483648
        %v1972 = vmul.f32 %v1970, 1.442695
        %v1973 = vpow.pop %v1972
        %v1974 = vmul.f32 %v1971, 1.442695
        %v1975 = vpow.pop %v1974
        %v1976 = vadd.f32 %v1973, 1.0
        %v1977 = vadd.f32 %v1975, 1.0
        %v1978 = vrcp.pop %v1976
        %v1979 = vmul.f32 1.0, %v1978
        %v1980 = vrcp.pop %v1977
        %v1981 = vmul.f32 1.0, %v1980
        %v1982 = vmul.f32 %v1956, %v1979
        %v1983 = vmul.f32 %v1957, %v1981
        %v1984 = vxor.u32 %v1960, 2147483648
        %v1985 = vxor.u32 %v1961, 2147483648
        %v1986 = vmul.f32 %v1984, 1.442695
        %v1987 = vpow.pop %v1986
        %v1988 = vmul.f32 %v1985, 1.442695
        %v1989 = vpow.pop %v1988
        %v1990 = vadd.f32 %v1987, 1.0
        %v1991 = vadd.f32 %v1989, 1.0
        %v1992 = vrcp.pop %v1990
        %v1993 = vmul.f32 1.0, %v1992
        %v1994 = vrcp.pop %v1991
        %v1995 = vmul.f32 1.0, %v1994
        %v1996 = vmul.f32 %v1960, %v1993
        %v1997 = vmul.f32 %v1961, %v1995
        %v1998 = vxor.u32 %v1964, 2147483648
        %v1999 = vxor.u32 %v1965, 2147483648
        %v2000 = vmul.f32 %v1998, 1.442695
        %v2001 = vpow.pop %v2000
        %v2002 = vmul.f32 %v1999, 1.442695
        %v2003 = vpow.pop %v2002
        %v2004 = vadd.f32 %v2001, 1.0
        %v2005 = vadd.f32 %v2003, 1.0
        %v2006 = vrcp.pop %v2004
        %v2007 = vmul.f32 1.0, %v2006
        %v2008 = vrcp.pop %v2005
        %v2009 = vmul.f32 1.0, %v2008
        %v2010 = vmul.f32 %v1964, %v2007
        %v2011 = vmul.f32 %v1965, %v2009
        %v2012 = vxor.u32 %v1968, 2147483648
        %v2013 = vxor.u32 %v1969, 2147483648
        %v2014 = vmul.f32 %v2012, 1.442695
        %v2015 = vpow.pop %v2014
        %v2016 = vmul.f32 %v2013, 1.442695
        %v2017 = vpow.pop %v2016
        %v2018 = vadd.f32 %v2015, 1.0
        %v2019 = vadd.f32 %v2017, 1.0
        %v2020 = vrcp.pop %v2018
        %v2021 = vmul.f32 1.0, %v2020
        %v2022 = vrcp.pop %v2019
        %v2023 = vmul.f32 1.0, %v2022
        %v2024 = vmul.f32 %v1968, %v2021
        %v2025 = vmul.f32 %v1969, %v2023
        %v2026 = vld [vmem:[#allocation14] sm:$0xff]
        %2027 = vrot.lane.b32.xlu0 %v2024, 17
        %v2028 = vpop.permute.xlu0 %2027
        %2029 = vrot.lane.b32.xlu0 %v2025, 17
        %v2030 = vpop.permute.xlu0 %2029
        %v2031 = vsel %vm540, %v2028, %v2030
        %v2032 = vsel %vm540, %v2030, %v2028
        %v2033 = vmul.f32 %v2032, %v562
        %v2034 = vmul.f32 %v2031, %v566
        %2035 = vrot.lane.b32.xlu0 %v2010, 16
        %v2036 = vpop.permute.xlu0 %2035
        %2037 = vrot.lane.b32.xlu0 %v2011, 16
        %v2038 = vpop.permute.xlu0 %2037
        %v2039 = vsel %vm573, %v2036, %v2038
        %v2040 = vsel %vm573, %v2038, %v2036
        %v2041 = vmul.f32 %v2040, %v589
        %v2042 = vmul.f32 %v2039, %v593
        %2043 = vrot.lane.b32.xlu0 %v2024, 16
        %v2044 = vpop.permute.xlu0 %2043
        %2045 = vrot.lane.b32.xlu0 %v2025, 16
        %v2046 = vpop.permute.xlu0 %2045
        %v2047 = vsel %vm573, %v2044, %v2046
        %v2048 = vsel %vm573, %v2046, %v2044
        %v2049 = vmul.f32 %v2048, %v589
        %v2050 = vmul.f32 %v2047, %v593
        %2051 = vrot.lane.b32.xlu0 %v1996, 1
        %v2052 = vpop.permute.xlu0 %2051
        %2053 = vrot.lane.b32.xlu0 %v1997, 1
        %v2054 = vpop.permute.xlu0 %2053
        %v2055 = vsel %vm600, %v2052, %v2054
        %v2056 = vsel %vm600, %v2054, %v2052
        %v2057 = vmul.f32 %v2056, %v616
        %v2058 = vmul.f32 %v2055, %v620
        %2059 = vrot.lane.b32.xlu0 %v2024, 1
        %v2060 = vpop.permute.xlu0 %2059
        %2061 = vrot.lane.b32.xlu0 %v2025, 1
        %v2062 = vpop.permute.xlu0 %2061
        %v2063 = vsel %vm600, %v2060, %v2062
        %v2064 = vsel %vm600, %v2062, %v2060
        %v2065 = vmul.f32 %v2064, %v616
        %v2066 = vmul.f32 %v2063, %v620
        %v2068 = vsel %vm1401, %v2026, 0
        %2070 = vmatprep.subr.mxu0 %v2034
        %2071 = vmatpush1.msra.mxu0 %v2033
        %2072 = vmatprep.subr.mxu0 %v2042
        %2073 = vmatpush1.msra.mxu0 %v2041
        %2074 = vmatprep.subr.mxu0 %v2050
        %2075 = vmatpush1.msra.mxu0 %v2049
        %2076 = vmatprep.subr.mxu0 %v2058
        %2077 = vmatpush1.msra.mxu0 %v2057
        %2078 = vmatprep.subr.mxu0 %v1983
        %2079 = vmatpush1.msra.mxu0 %v1982
        %2080 = vmatprep.subr.mxu0 %v1997
        %2081 = vmatpush1.msra.mxu0 %v1996
        %2082 = vmatprep.subr.mxu0 %v2066
        %2083 = vmatpush1.msra.mxu0 %v2065
        %2084 = vmatprep.subr.mxu0 %v2011
        %2085 = vmatpush1.msra.mxu0 %v2010
        %2086 = vmatprep.subr.mxu0 %v2025
        %2087 = vmatpush1.msra.mxu0 %v2024
        %2088 = vmatprep.subr.mxu0 0.0
        %2089 = vmatpush1.msra.mxu0 0.0
        %2090 = vmatprep.subr.mxu0 0.0
        %2091 = vmatpush1.msra.mxu0 0.0
        %2092 = vmatprep.subr.mxu0 0.0
        %2093 = vmatpush1.msra.mxu0 0.0
        %2094 = vmatprep.subr.mxu0 0.0
        %2095 = vmatpush1.msra.mxu0 0.0
        %2096 = vmatprep.subr.mxu0 0.0
        %2097 = vmatpush1.msra.mxu0 0.0
        %2098 = vmatprep.subr.mxu0 0.0
        %2099 = vmatpush1.msra.mxu0 0.0
        %2100 = vmatprep.subr.mxu0 0.0
        %2101 = vmatpush1.msra.mxu0 0.0
        %2102 = vmatprep.subr.mxu0 0.0
        %2103 = vmatpush1.msra.mxu0 0.0
        %2104 = vmatprep.subr.mxu0 0.0
        %2105 = vmatpush1.msra.mxu0 0.0
        %2106 = vmatprep.subr.mxu0 0.0
        %2107 = vmatpush1.msra.mxu0 0.0
        %2108 = vmatprep.subr.mxu0 0.0
        %2109 = vmatpush1.msra.mxu0 0.0
        %2110 = vmatprep.subr.mxu0 0.0
        %2111 = vmatpush1.msra.mxu0 0.0
        %2112 = vmatprep.subr.mxu0 0.0
        %2113 = vmatpush1.msra.mxu0 0.0
        %2114 = vmatprep.subr.mxu0 0.0
        %2115 = vmatpush1.msra.mxu0 0.0
        %2116 = vmatprep.subr.mxu0 0.0
        %2117 = vmatpush1.msra.mxu0 0.0
        %2118 = vmatprep.subr.mxu0 0.0
        %2119 = vmatpush1.msra.mxu0 0.0
        %2120 = vmatprep.subr.mxu0 0.0
        %2121 = vmatpush1.msra.mxu0 0.0
        %2122 = vmatprep.subr.mxu0 0.0
        %2123 = vmatpush1.msra.mxu0 0.0
        %2124 = vmatprep.subr.mxu0 0.0
        %2125 = vmatpush1.msra.mxu0 0.0
        %2126 = vmatprep.subr.mxu0 0.0
        %2127 = vmatpush1.msra.mxu0 0.0
        %2128 = vmatprep.subr.mxu0 0.0
        %2129 = vmatpush1.msra.mxu0 0.0
        %2130 = vmatprep.subr.mxu0 0.0
        %2131 = vmatpush1.msra.mxu0 0.0
        %2132 = vmatprep.subr.mxu0 0.0
        %2133 = vmatpush1.msra.mxu0 0.0
        %2134 = vmatprep.mubr.f32.mxu0 0.0
        %2135 = vmatmul.mubr.f32.gmra.mrb[0].mxu0 %v2068
        %v2136 = vpop.f32.mrb[0].mxu0
        %v2137 = vadd.f32 0.0, %v2136
        %v2138 = vpop.f32.mrb[0].mxu0
        %v2139 = vadd.f32 0.0, %v2138
        %2140 = vdwg.mxu0
        %2141 = vrot.lane.b32.xlu0 %v2010, 15
        %v2142 = vpop.permute.xlu0 %2141
        %2143 = vrot.lane.b32.xlu0 %v2011, 15
        %v2144 = vpop.permute.xlu0 %2143
        %v2145 = vsel %vm778, %v2142, %v2144
        %v2146 = vsel %vm778, %v2144, %v2142
        %v2147 = vmul.f32 %v2146, %v799
        %v2148 = vmul.f32 %v2145, %v803
        %2149 = vrot.lane.b32.xlu0 %v1982, 127
        %v2150 = vpop.permute.xlu0 %2149
        %2151 = vrot.lane.b32.xlu0 %v1983, 127
        %v2152 = vpop.permute.xlu0 %2151
        %v2153 = vsel %vm810, %v2150, %v2152
        %v2154 = vsel %vm810, %v2152, %v2150
        %v2155 = vmul.f32 %v2153, %v826
        %v2156 = vmul.f32 %v2154, %v830
        %2157 = vrot.lane.b32.xlu0 %v2010, 127
        %v2158 = vpop.permute.xlu0 %2157
        %2159 = vrot.lane.b32.xlu0 %v2011, 127
        %v2160 = vpop.permute.xlu0 %2159
        %v2161 = vsel %vm810, %v2158, %v2160
        %v2162 = vsel %vm810, %v2160, %v2158
        %v2163 = vmul.f32 %v2161, %v826
        %v2164 = vmul.f32 %v2162, %v830
        %2165 = vmatprep.subr.mxu0 %v2042
        %2166 = vmatpush1.msra.mxu0 %v2041
        %2167 = vmatprep.subr.mxu0 %v2050
        %2168 = vmatpush1.msra.mxu0 %v2049
        %2169 = vmatprep.subr.mxu0 %v2148
        %2170 = vmatpush1.msra.mxu0 %v2147
        %2171 = vmatprep.subr.mxu0 %v1983
        %2172 = vmatpush1.msra.mxu0 %v1982
        %2173 = vmatprep.subr.mxu0 %v1997
        %2174 = vmatpush1.msra.mxu0 %v1996
        %2175 = vmatprep.subr.mxu0 %v2156
        %2176 = vmatpush1.msra.mxu0 %v2155
        %2177 = vmatprep.subr.mxu0 %v2011
        %2178 = vmatpush1.msra.mxu0 %v2010
        %2179 = vmatprep.subr.mxu0 %v2025
        %2180 = vmatpush1.msra.mxu0 %v2024
        %2181 = vmatprep.subr.mxu0 %v2164
        %2182 = vmatpush1.msra.mxu0 %v2163
        %2183 = vmatprep.subr.mxu0 0.0
        %2184 = vmatpush1.msra.mxu0 0.0
        %2185 = vmatprep.subr.mxu0 0.0
        %2186 = vmatpush1.msra.mxu0 0.0
        %2187 = vmatprep.subr.mxu0 0.0
        %2188 = vmatpush1.msra.mxu0 0.0
        %2189 = vmatprep.subr.mxu0 0.0
        %2190 = vmatpush1.msra.mxu0 0.0
        %2191 = vmatprep.subr.mxu0 0.0
        %2192 = vmatpush1.msra.mxu0 0.0
        %2193 = vmatprep.subr.mxu0 0.0
        %2194 = vmatpush1.msra.mxu0 0.0
        %2195 = vmatprep.subr.mxu0 0.0
        %2196 = vmatpush1.msra.mxu0 0.0
        %2197 = vmatprep.subr.mxu0 0.0
        %2198 = vmatpush1.msra.mxu0 0.0
        %2199 = vmatprep.subr.mxu0 0.0
        %2200 = vmatpush1.msra.mxu0 0.0
        %2201 = vmatprep.subr.mxu0 0.0
        %2202 = vmatpush1.msra.mxu0 0.0
        %2203 = vmatprep.subr.mxu0 0.0
        %2204 = vmatpush1.msra.mxu0 0.0
        %2205 = vmatprep.subr.mxu0 0.0
        %2206 = vmatpush1.msra.mxu0 0.0
        %2207 = vmatprep.subr.mxu0 0.0
        %2208 = vmatpush1.msra.mxu0 0.0
        %2209 = vmatprep.subr.mxu0 0.0
        %2210 = vmatpush1.msra.mxu0 0.0
        %2211 = vmatprep.subr.mxu0 0.0
        %2212 = vmatpush1.msra.mxu0 0.0
        %2213 = vmatprep.subr.mxu0 0.0
        %2214 = vmatpush1.msra.mxu0 0.0
        %2215 = vmatprep.subr.mxu0 0.0
        %2216 = vmatpush1.msra.mxu0 0.0
        %2217 = vmatprep.subr.mxu0 0.0
        %2218 = vmatpush1.msra.mxu0 0.0
        %2219 = vmatprep.subr.mxu0 0.0
        %2220 = vmatpush1.msra.mxu0 0.0
        %2221 = vmatprep.subr.mxu0 0.0
        %2222 = vmatpush1.msra.mxu0 0.0
        %2223 = vmatprep.subr.mxu0 0.0
        %2224 = vmatpush1.msra.mxu0 0.0
        %2225 = vmatprep.subr.mxu0 0.0
        %2226 = vmatpush1.msra.mxu0 0.0
        %2227 = vmatprep.subr.mxu0 0.0
        %2228 = vmatpush1.msra.mxu0 0.0
        %2229 = vmatprep.mubr.f32.mxu0 0.0
        %2230 = vmatmul.mubr.f32.gmra.mrb[0].mxu0 %v2068
        %v2231 = vpop.f32.mrb[0].mxu0
        %v2232 = vadd.f32 0.0, %v2231
        %v2233 = vpop.f32.mrb[0].mxu0
        %v2234 = vadd.f32 0.0, %v2233
        %2235 = vdwg.mxu0
        %2236 = vrot.lane.b32.xlu0 %v1996, 113
        %v2237 = vpop.permute.xlu0 %2236
        %2238 = vrot.lane.b32.xlu0 %v1997, 113
        %v2239 = vpop.permute.xlu0 %2238
        %v2240 = vsel %vm984, %v2237, %v2239
        %v2241 = vsel %vm984, %v2239, %v2237
        %v2242 = vmul.f32 %v2240, %v1005
        %v2243 = vmul.f32 %v2241, %v1009
        %2244 = vrot.lane.b32.xlu0 %v1982, 112
        %v2245 = vpop.permute.xlu0 %2244
        %2246 = vrot.lane.b32.xlu0 %v1983, 112
        %v2247 = vpop.permute.xlu0 %2246
        %v2248 = vsel %vm1016, %v2245, %v2247
        %v2249 = vsel %vm1016, %v2247, %v2245
        %v2250 = vmul.f32 %v2248, %v1032
        %v2251 = vmul.f32 %v2249, %v1036
        %2252 = vrot.lane.b32.xlu0 %v1996, 112
        %v2253 = vpop.permute.xlu0 %2252
        %2254 = vrot.lane.b32.xlu0 %v1997, 112
        %v2255 = vpop.permute.xlu0 %2254
        %v2256 = vsel %vm1016, %v2253, %v2255
        %v2257 = vsel %vm1016, %v2255, %v2253
        %v2258 = vmul.f32 %v2256, %v1032
        %v2259 = vmul.f32 %v2257, %v1036
        %2260 = vmatprep.subr.mxu0 %v2058
        %2261 = vmatpush1.msra.mxu0 %v2057
        %2262 = vmatprep.subr.mxu0 %v1983
        %2263 = vmatpush1.msra.mxu0 %v1982
        %2264 = vmatprep.subr.mxu0 %v1997
        %2265 = vmatpush1.msra.mxu0 %v1996
        %2266 = vmatprep.subr.mxu0 %v2066
        %2267 = vmatpush1.msra.mxu0 %v2065
        %2268 = vmatprep.subr.mxu0 %v2011
        %2269 = vmatpush1.msra.mxu0 %v2010
        %2270 = vmatprep.subr.mxu0 %v2025
        %2271 = vmatpush1.msra.mxu0 %v2024
        %2272 = vmatprep.subr.mxu0 %v2243
        %2273 = vmatpush1.msra.mxu0 %v2242
        %2274 = vmatprep.subr.mxu0 %v2251
        %2275 = vmatpush1.msra.mxu0 %v2250
        %2276 = vmatprep.subr.mxu0 %v2259
        %2277 = vmatpush1.msra.mxu0 %v2258
        %2278 = vmatprep.subr.mxu0 0.0
        %2279 = vmatpush1.msra.mxu0 0.0
        %2280 = vmatprep.subr.mxu0 0.0
        %2281 = vmatpush1.msra.mxu0 0.0
        %2282 = vmatprep.subr.mxu0 0.0
        %2283 = vmatpush1.msra.mxu0 0.0
        %2284 = vmatprep.subr.mxu0 0.0
        %2285 = vmatpush1.msra.mxu0 0.0
        %2286 = vmatprep.subr.mxu0 0.0
        %2287 = vmatpush1.msra.mxu0 0.0
        %2288 = vmatprep.subr.mxu0 0.0
        %2289 = vmatpush1.msra.mxu0 0.0
        %2290 = vmatprep.subr.mxu0 0.0
        %2291 = vmatpush1.msra.mxu0 0.0
        %2292 = vmatprep.subr.mxu0 0.0
        %2293 = vmatpush1.msra.mxu0 0.0
        %2294 = vmatprep.subr.mxu0 0.0
        %2295 = vmatpush1.msra.mxu0 0.0
        %2296 = vmatprep.subr.mxu0 0.0
        %2297 = vmatpush1.msra.mxu0 0.0
        %2298 = vmatprep.subr.mxu0 0.0
        %2299 = vmatpush1.msra.mxu0 0.0
        %2300 = vmatprep.subr.mxu0 0.0
        %2301 = vmatpush1.msra.mxu0 0.0
        %2302 = vmatprep.subr.mxu0 0.0
        %2303 = vmatpush1.msra.mxu0 0.0
        %2304 = vmatprep.subr.mxu0 0.0
        %2305 = vmatpush1.msra.mxu0 0.0
        %2306 = vmatprep.subr.mxu0 0.0
        %2307 = vmatpush1.msra.mxu0 0.0
        %2308 = vmatprep.subr.mxu0 0.0
        %2309 = vmatpush1.msra.mxu0 0.0
        %2310 = vmatprep.subr.mxu0 0.0
        %2311 = vmatpush1.msra.mxu0 0.0
        %2312 = vmatprep.subr.mxu0 0.0
        %2313 = vmatpush1.msra.mxu0 0.0
        %2314 = vmatprep.subr.mxu0 0.0
        %2315 = vmatpush1.msra.mxu0 0.0
        %2316 = vmatprep.subr.mxu0 0.0
        %2317 = vmatpush1.msra.mxu0 0.0
        %2318 = vmatprep.subr.mxu0 0.0
        %2319 = vmatpush1.msra.mxu0 0.0
        %2320 = vmatprep.subr.mxu0 0.0
        %2321 = vmatpush1.msra.mxu0 0.0
        %2322 = vmatprep.subr.mxu0 0.0
        %2323 = vmatpush1.msra.mxu0 0.0
        %2324 = vmatprep.mubr.f32.mxu0 0.0
        %2325 = vmatmul.mubr.f32.gmra.mrb[0].mxu0 %v2068
        %v2326 = vpop.f32.mrb[0].mxu0
        %v2327 = vadd.f32 0.0, %v2326
        %v2328 = vpop.f32.mrb[0].mxu0
        %v2329 = vadd.f32 0.0, %v2328
        %2330 = vdwg.mxu0
        %2331 = vrot.lane.b32.xlu0 %v1982, 111
        %v2332 = vpop.permute.xlu0 %2331
        %2333 = vrot.lane.b32.xlu0 %v1983, 111
        %v2334 = vpop.permute.xlu0 %2333
        %v2335 = vsel %vm1190, %v2332, %v2334
        %v2336 = vsel %vm1190, %v2334, %v2332
        %v2337 = vmul.f32 %v2335, %v1206
        %v2338 = vmul.f32 %v2336, %v1210
        %2339 = vmatprep.subr.mxu0 %v1983
        %2340 = vmatpush1.msra.mxu0 %v1982
        %2341 = vmatprep.subr.mxu0 %v1997
        %2342 = vmatpush1.msra.mxu0 %v1996
        %2343 = vmatprep.subr.mxu0 %v2156
        %2344 = vmatpush1.msra.mxu0 %v2155
        %2345 = vmatprep.subr.mxu0 %v2011
        %2346 = vmatpush1.msra.mxu0 %v2010
        %2347 = vmatprep.subr.mxu0 %v2025
        %2348 = vmatpush1.msra.mxu0 %v2024
        %2349 = vmatprep.subr.mxu0 %v2164
        %2350 = vmatpush1.msra.mxu0 %v2163
        %2351 = vmatprep.subr.mxu0 %v2251
        %2352 = vmatpush1.msra.mxu0 %v2250
        %2353 = vmatprep.subr.mxu0 %v2259
        %2354 = vmatpush1.msra.mxu0 %v2258
        %2355 = vmatprep.subr.mxu0 %v2338
        %2356 = vmatpush1.msra.mxu0 %v2337
        %2357 = vmatprep.subr.mxu0 0.0
        %2358 = vmatpush1.msra.mxu0 0.0
        %2359 = vmatprep.subr.mxu0 0.0
        %2360 = vmatpush1.msra.mxu0 0.0
        %2361 = vmatprep.subr.mxu0 0.0
        %2362 = vmatpush1.msra.mxu0 0.0
        %2363 = vmatprep.subr.mxu0 0.0
        %2364 = vmatpush1.msra.mxu0 0.0
        %2365 = vmatprep.subr.mxu0 0.0
        %2366 = vmatpush1.msra.mxu0 0.0
        %2367 = vmatprep.subr.mxu0 0.0
        %2368 = vmatpush1.msra.mxu0 0.0
        %2369 = vmatprep.subr.mxu0 0.0
        %2370 = vmatpush1.msra.mxu0 0.0
        %2371 = vmatprep.subr.mxu0 0.0
        %2372 = vmatpush1.msra.mxu0 0.0
        %2373 = vmatprep.subr.mxu0 0.0
        %2374 = vmatpush1.msra.mxu0 0.0
        %2375 = vmatprep.subr.mxu0 0.0
        %2376 = vmatpush1.msra.mxu0 0.0
        %2377 = vmatprep.subr.mxu0 0.0
        %2378 = vmatpush1.msra.mxu0 0.0
        %2379 = vmatprep.subr.mxu0 0.0
        %2380 = vmatpush1.msra.mxu0 0.0
        %2381 = vmatprep.subr.mxu0 0.0
        %2382 = vmatpush1.msra.mxu0 0.0
        %2383 = vmatprep.subr.mxu0 0.0
        %2384 = vmatpush1.msra.mxu0 0.0
        %2385 = vmatprep.subr.mxu0 0.0
        %2386 = vmatpush1.msra.mxu0 0.0
        %2387 = vmatprep.subr.mxu0 0.0
        %2388 = vmatpush1.msra.mxu0 0.0
        %2389 = vmatprep.subr.mxu0 0.0
        %2390 = vmatpush1.msra.mxu0 0.0
        %2391 = vmatprep.subr.mxu0 0.0
        %2392 = vmatpush1.msra.mxu0 0.0
        %2393 = vmatprep.subr.mxu0 0.0
        %2394 = vmatpush1.msra.mxu0 0.0
        %2395 = vmatprep.subr.mxu0 0.0
        %2396 = vmatpush1.msra.mxu0 0.0
        %2397 = vmatprep.subr.mxu0 0.0
        %2398 = vmatpush1.msra.mxu0 0.0
        %2399 = vmatprep.subr.mxu0 0.0
        %2400 = vmatpush1.msra.mxu0 0.0
        %2401 = vmatprep.subr.mxu0 0.0
        %2402 = vmatpush1.msra.mxu0 0.0
        %2403 = vmatprep.mubr.f32.mxu0 0.0
        %2404 = vmatmul.mubr.f32.gmra.mrb[0].mxu0 %v2068
        %v2405 = vpop.f32.mrb[0].mxu0
        %v2406 = vadd.f32 0.0, %v2405
        %v2407 = vpop.f32.mrb[0].mxu0
        %v2408 = vadd.f32 0.0, %v2407
        %2409 = vdwg.mxu0
        %v2410 = vld [vmem:[#allocation16] sm:$0xff]
        %v2411 = vld [vmem:[#allocation17] sm:$0xff]
        %v2412 = vadd.f32 %v2137, %v2139
        %2413 = vadd.xlane.f32.xlu0 %v2412
        %v2414 = vpop.xlane.xlu0 %2413
        %v2415 = vadd.f32 %v2232, %v2234
        %2416 = vadd.xlane.f32.xlu0 %v2415
        %v2417 = vpop.xlane.xlu0 %2416
        %v2418 = vadd.f32 %v2414, %v2417
        %v2419 = vadd.f32 %v2327, %v2329
        %2420 = vadd.xlane.f32.xlu0 %v2419
        %v2421 = vpop.xlane.xlu0 %2420
        %v2422 = vadd.f32 %v2418, %v2421
        %v2423 = vadd.f32 %v2406, %v2408
        %2424 = vadd.xlane.f32.xlu0 %v2423
        %v2425 = vpop.xlane.xlu0 %2424
        %v2426 = vadd.f32 %v2422, %v2425
        %2427 = vmatprep.subr.mxu0 0.0
        %2428 = vmatpush1.msra.mxu0 %v2426
        %2429 = vmatprep.subr.mxu0 0.0
        %2430 = vmatpush1.msra.mxu0 0.0
        %2431 = vmatprep.subr.mxu0 0.0
        %2432 = vmatpush1.msra.mxu0 0.0
        %2433 = vmatprep.subr.mxu0 0.0
        %2434 = vmatpush1.msra.mxu0 0.0
        %2435 = vmatprep.subr.mxu0 0.0
        %2436 = vmatpush1.msra.mxu0 0.0
        %2437 = vmatprep.subr.mxu0 0.0
        %2438 = vmatpush1.msra.mxu0 0.0
        %2439 = vmatprep.subr.mxu0 0.0
        %2440 = vmatpush1.msra.mxu0 0.0
        %2441 = vmatprep.subr.mxu0 0.0
        %2442 = vmatpush1.msra.mxu0 0.0
        %2443 = vmatprep.subr.mxu0 0.0
        %2444 = vmatpush1.msra.mxu0 0.0
        %2445 = vmatprep.subr.mxu0 0.0
        %2446 = vmatpush1.msra.mxu0 0.0
        %2447 = vmatprep.subr.mxu0 0.0
        %2448 = vmatpush1.msra.mxu0 0.0
        %2449 = vmatprep.subr.mxu0 0.0
        %2450 = vmatpush1.msra.mxu0 0.0
        %2451 = vmatprep.subr.mxu0 0.0
        %2452 = vmatpush1.msra.mxu0 0.0
        %2453 = vmatprep.subr.mxu0 0.0
        %2454 = vmatpush1.msra.mxu0 0.0
        %2455 = vmatprep.subr.mxu0 0.0
        %2456 = vmatpush1.msra.mxu0 0.0
        %2457 = vmatprep.subr.mxu0 0.0
        %2458 = vmatpush1.msra.mxu0 0.0
        %2459 = vmatprep.subr.mxu0 0.0
        %2460 = vmatpush1.msra.mxu0 0.0
        %2461 = vmatprep.subr.mxu0 0.0
        %2462 = vmatpush1.msra.mxu0 0.0
        %2463 = vmatprep.subr.mxu0 0.0
        %2464 = vmatpush1.msra.mxu0 0.0
        %2465 = vmatprep.subr.mxu0 0.0
        %2466 = vmatpush1.msra.mxu0 0.0
        %2467 = vmatprep.subr.mxu0 0.0
        %2468 = vmatpush1.msra.mxu0 0.0
        %2469 = vmatprep.subr.mxu0 0.0
        %2470 = vmatpush1.msra.mxu0 0.0
        %2471 = vmatprep.subr.mxu0 0.0
        %2472 = vmatpush1.msra.mxu0 0.0
        %2473 = vmatprep.subr.mxu0 0.0
        %2474 = vmatpush1.msra.mxu0 0.0
        %2475 = vmatprep.subr.mxu0 0.0
        %2476 = vmatpush1.msra.mxu0 0.0
        %2477 = vmatprep.subr.mxu0 0.0
        %2478 = vmatpush1.msra.mxu0 0.0
        %2479 = vmatprep.subr.mxu0 0.0
        %2480 = vmatpush1.msra.mxu0 0.0
        %2481 = vmatprep.subr.mxu0 0.0
        %2482 = vmatpush1.msra.mxu0 0.0
        %2483 = vmatprep.subr.mxu0 0.0
        %2484 = vmatpush1.msra.mxu0 0.0
        %2485 = vmatprep.subr.mxu0 0.0
        %2486 = vmatpush1.msra.mxu0 0.0
        %2487 = vmatprep.subr.mxu0 0.0
        %2488 = vmatpush1.msra.mxu0 0.0
        %2489 = vmatprep.subr.mxu0 0.0
        %2490 = vmatpush1.msra.mxu0 0.0
        %2491 = vmatprep.mubr.f32.mxu0 0.0
        %2492 = vmatmul.mubr.f32.gmra.mrb[0].mxu0 %v1764
        %v2493 = vpop.f32.mrb[0].mxu0
        %v2494 = vadd.f32 0.0, %v2493
        %v2495 = vpop.f32.mrb[0].mxu0
        %2496 = vdwg.mxu0
        %2498 = vset.pattern.permute.xlu0 0
        %2499 = vperm.xlu0 %2498, %v2494
        %v2500 = vpop.permute.xlu0 %2499
        %v2502 = vsub.f32 %v2137, %v2500
        %v2503 = vsub.f32 %v2139, %v2500
        %v2504 = vsub.f32 %v2232, %v2500
        %v2505 = vsub.f32 %v2234, %v2500
        %v2506 = vsub.f32 %v2327, %v2500
        %v2507 = vsub.f32 %v2329, %v2500
        %v2508 = vsub.f32 %v2406, %v2500
        %v2509 = vsub.f32 %v2408, %v2500
        %v2510 = vmul.f32 %v2502, %v2502
        %v2511 = vmul.f32 %v2503, %v2503
        %v2512 = vadd.f32 %v2510, %v2511
        %2513 = vadd.xlane.f32.xlu0 %v2512
        %v2514 = vpop.xlane.xlu0 %2513
        %v2515 = vmul.f32 %v2504, %v2504
        %v2516 = vmul.f32 %v2505, %v2505
        %v2517 = vadd.f32 %v2515, %v2516
        %2518 = vadd.xlane.f32.xlu0 %v2517
        %v2519 = vpop.xlane.xlu0 %2518
        %v2520 = vadd.f32 %v2514, %v2519
        %v2521 = vmul.f32 %v2506, %v2506
        %v2522 = vmul.f32 %v2507, %v2507
        %v2523 = vadd.f32 %v2521, %v2522
        %2524 = vadd.xlane.f32.xlu0 %v2523
        %v2525 = vpop.xlane.xlu0 %2524
        %v2526 = vadd.f32 %v2520, %v2525
        %v2527 = vmul.f32 %v2508, %v2508
        %v2528 = vmul.f32 %v2509, %v2509
        %v2529 = vadd.f32 %v2527, %v2528
        %2530 = vadd.xlane.f32.xlu0 %v2529
        %v2531 = vpop.xlane.xlu0 %2530
        %v2532 = vadd.f32 %v2526, %v2531
        %2533 = vmatprep.subr.mxu0 0.0
        %2534 = vmatpush1.msra.mxu0 %v2532
        %2535 = vmatprep.subr.mxu0 0.0
        %2536 = vmatpush1.msra.mxu0 0.0
        %2537 = vmatprep.subr.mxu0 0.0
        %2538 = vmatpush1.msra.mxu0 0.0
        %2539 = vmatprep.subr.mxu0 0.0
        %2540 = vmatpush1.msra.mxu0 0.0
        %2541 = vmatprep.subr.mxu0 0.0
        %2542 = vmatpush1.msra.mxu0 0.0
        %2543 = vmatprep.subr.mxu0 0.0
        %2544 = vmatpush1.msra.mxu0 0.0
        %2545 = vmatprep.subr.mxu0 0.0
        %2546 = vmatpush1.msra.mxu0 0.0
        %2547 = vmatprep.subr.mxu0 0.0
        %2548 = vmatpush1.msra.mxu0 0.0
        %2549 = vmatprep.subr.mxu0 0.0
        %2550 = vmatpush1.msra.mxu0 0.0
        %2551 = vmatprep.subr.mxu0 0.0
        %2552 = vmatpush1.msra.mxu0 0.0
        %2553 = vmatprep.subr.mxu0 0.0
        %2554 = vmatpush1.msra.mxu0 0.0
        %2555 = vmatprep.subr.mxu0 0.0
        %2556 = vmatpush1.msra.mxu0 0.0
        %2557 = vmatprep.subr.mxu0 0.0
        %2558 = vmatpush1.msra.mxu0 0.0
        %2559 = vmatprep.subr.mxu0 0.0
        %2560 = vmatpush1.msra.mxu0 0.0
        %2561 = vmatprep.subr.mxu0 0.0
        %2562 = vmatpush1.msra.mxu0 0.0
        %2563 = vmatprep.subr.mxu0 0.0
        %2564 = vmatpush1.msra.mxu0 0.0
        %2565 = vmatprep.subr.mxu0 0.0
        %2566 = vmatpush1.msra.mxu0 0.0
        %2567 = vmatprep.subr.mxu0 0.0
        %2568 = vmatpush1.msra.mxu0 0.0
        %2569 = vmatprep.subr.mxu0 0.0
        %2570 = vmatpush1.msra.mxu0 0.0
        %2571 = vmatprep.subr.mxu0 0.0
        %2572 = vmatpush1.msra.mxu0 0.0
        %2573 = vmatprep.subr.mxu0 0.0
        %2574 = vmatpush1.msra.mxu0 0.0
        %2575 = vmatprep.subr.mxu0 0.0
        %2576 = vmatpush1.msra.mxu0 0.0
        %2577 = vmatprep.subr.mxu0 0.0
        %2578 = vmatpush1.msra.mxu0 0.0
        %2579 = vmatprep.subr.mxu0 0.0
        %2580 = vmatpush1.msra.mxu0 0.0
        %2581 = vmatprep.subr.mxu0 0.0
        %2582 = vmatpush1.msra.mxu0 0.0
        %2583 = vmatprep.subr.mxu0 0.0
        %2584 = vmatpush1.msra.mxu0 0.0
        %2585 = vmatprep.subr.mxu0 0.0
        %2586 = vmatpush1.msra.mxu0 0.0
        %2587 = vmatprep.subr.mxu0 0.0
        %2588 = vmatpush1.msra.mxu0 0.0
        %2589 = vmatprep.subr.mxu0 0.0
        %2590 = vmatpush1.msra.mxu0 0.0
        %2591 = vmatprep.subr.mxu0 0.0
        %2592 = vmatpush1.msra.mxu0 0.0
        %2593 = vmatprep.subr.mxu0 0.0
        %2594 = vmatpush1.msra.mxu0 0.0
        %2595 = vmatprep.subr.mxu0 0.0
        %2596 = vmatpush1.msra.mxu0 0.0
        %2597 = vmatprep.mubr.f32.mxu0 0.0
        %2598 = vmatmul.mubr.f32.gmra.mrb[0].mxu0 %v1764
        %v2599 = vpop.f32.mrb[0].mxu0
        %v2600 = vadd.f32 1e-05, %v2599
        %v2601 = vpop.f32.mrb[0].mxu0
        %2602 = vdwg.mxu0
        %v2603 = vrsqrt.pop %v2600
        %v2604 = vmul.f32 %v2603, %v2410
        %2606 = vset.pattern.permute.xlu0 0
        %2607 = vperm.xlu0 %2606, %v2604
        %v2608 = vpop.permute.xlu0 %2607
        %v2610 = vmul.f32 %v2502, %v2608
        %v2611 = vmul.f32 %v2503, %v2608
        %2613 = vset.pattern.permute.xlu0 0
        %2614 = vperm.xlu0 %2613, %v2411
        %v2615 = vpop.permute.xlu0 %2614
        %v2617 = vadd.f32 %v2610, %v2615
        %v2618 = vadd.f32 %v2611, %v2615
        %v2619 = vmul.f32 %v2504, %v2608
        %v2620 = vmul.f32 %v2505, %v2608
        %v2621 = vadd.f32 %v2619, %v2615
        %v2622 = vadd.f32 %v2620, %v2615
        %v2623 = vmul.f32 %v2506, %v2608
        %v2624 = vmul.f32 %v2507, %v2608
        %v2625 = vadd.f32 %v2623, %v2615
        %v2626 = vadd.f32 %v2624, %v2615
        %v2627 = vmul.f32 %v2508, %v2608
        %v2628 = vmul.f32 %v2509, %v2608
        %v2629 = vadd.f32 %v2627, %v2615
        %v2630 = vadd.f32 %v2628, %v2615
        %v2631 = vadd.f32 %v2617, %v770
        %v2632 = vadd.f32 %v2618, %v772
        %v2633 = vxor.u32 %v2631, 2147483648
        %v2634 = vxor.u32 %v2632, 2147483648
        %v2635 = vmul.f32 %v2633, 1.442695
        %v2636 = vpow.pop %v2635
        %v2637 = vmul.f32 %v2634, 1.442695
        %v2638 = vpow.pop %v2637
        %v2639 = vadd.f32 %v2636, 1.0
        %v2640 = vadd.f32 %v2638, 1.0
        %v2641 = vrcp.pop %v2639
        %v2642 = vmul.f32 1.0, %v2641
        %v2643 = vrcp.pop %v2640
        %v2644 = vmul.f32 1.0, %v2643
        %v2645 = vmul.f32 %v2631, %v2642
        %v2646 = vmul.f32 %v2632, %v2644
        %2647 = vst [vmem:[%s529] sm:$0xff] %v2645
        %2648 = vst [vmem:[%s529 + $0x8] sm:$0xff] %v2646
        %v2649 = vadd.f32 %v2621, %v976
        %v2650 = vadd.f32 %v2622, %v978
        %v2651 = vxor.u32 %v2649, 2147483648
        %v2652 = vxor.u32 %v2650, 2147483648
        %v2653 = vmul.f32 %v2651, 1.442695
        %v2654 = vpow.pop %v2653
        %v2655 = vmul.f32 %v2652, 1.442695
        %v2656 = vpow.pop %v2655
        %v2657 = vadd.f32 %v2654, 1.0
        %v2658 = vadd.f32 %v2656, 1.0
        %v2659 = vrcp.pop %v2657
        %v2660 = vmul.f32 1.0, %v2659
        %v2661 = vrcp.pop %v2658
        %v2662 = vmul.f32 1.0, %v2661
        %v2663 = vmul.f32 %v2649, %v2660
        %v2664 = vmul.f32 %v2650, %v2662
        %s2665 = scalar_lea.vmem %s529, 16 [#allocation20]
        %2666 = vst [vmem:[%s2665] sm:$0xff] %v2663
        %2667 = vst [vmem:[%s2665 + $0x8] sm:$0xff] %v2664
        %v2668 = vadd.f32 %v2625, %v1182
        %v2669 = vadd.f32 %v2626, %v1184
        %v2670 = vxor.u32 %v2668, 2147483648
        %v2671 = vxor.u32 %v2669, 2147483648
        %v2672 = vmul.f32 %v2670, 1.442695
        %v2673 = vpow.pop %v2672
        %v2674 = vmul.f32 %v2671, 1.442695
        %v2675 = vpow.pop %v2674
        %v2676 = vadd.f32 %v2673, 1.0
        %v2677 = vadd.f32 %v2675, 1.0
        %v2678 = vrcp.pop %v2676
        %v2679 = vmul.f32 1.0, %v2678
        %v2680 = vrcp.pop %v2677
        %v2681 = vmul.f32 1.0, %v2680
        %v2682 = vmul.f32 %v2668, %v2679
        %v2683 = vmul.f32 %v2669, %v2681
        %s2684 = scalar_lea.vmem %s529, 32 [#allocation20]
        %2685 = vst [vmem:[%s2684] sm:$0xff] %v2682
        %2686 = vst [vmem:[%s2684 + $0x8] sm:$0xff] %v2683
        %v2687 = vadd.f32 %v2629, %v1356
        %v2688 = vadd.f32 %v2630, %v1358
        %v2689 = vxor.u32 %v2687, 2147483648
        %v2690 = vxor.u32 %v2688, 2147483648
        %v2691 = vmul.f32 %v2689, 1.442695
        %v2692 = vpow.pop %v2691
        %v2693 = vmul.f32 %v2690, 1.442695
        %v2694 = vpow.pop %v2693
        %v2695 = vadd.f32 %v2692, 1.0
        %v2696 = vadd.f32 %v2694, 1.0
        %v2697 = vrcp.pop %v2695
        %v2698 = vmul.f32 1.0, %v2697
        %v2699 = vrcp.pop %v2696
        %v2700 = vmul.f32 1.0, %v2699
        %v2701 = vmul.f32 %v2687, %v2698
        %v2702 = vmul.f32 %v2688, %v2700
        %s2703 = scalar_lea.vmem %s529, 48 [#allocation20]
        %2704 = vst [vmem:[%s2703] sm:$0xff] %v2701
        %2705 = vst [vmem:[%s2703 + $0x8] sm:$0xff] %v2702
        %s2706 = sand.u32 %s277, 1
        %s2707 = scalar_lea.sflag [#allocation4], %s2706
        %s2708 = sand.u32 %s277, 1
        %s2709 = smul.addr %s2708, 64
        %s2710 = scalar_lea.vmem [#allocation20], %s2709
        // Predicated region
        $region109: #{tpu_custom_call.1} parent=63 // pred_check
          %p2711 = pneg %p287
        $region110: #{tpu_custom_call.1} parent=63 // pred_check_branch
          %2713 = sbr.rel (%p2711) target = $region112
        $region111: #{tpu_custom_call.1} parent=63 // pred_region
          %s2715 = ssub.s32 1024, 1024
          %2716 = vsyncadd %s2707, %s2715
          %s2717 = smul.addr %s33, 8
          %s2718 = smul.addr %s2717, 128
          %s2719 = scalar_lea.hbm %s11, %s2718
          %s2720 = sshll.u32 %s2710, 4
          %s2721 = int_to_ptr.vmem [resolvable:$true] %s2720
          %2726 = dma.vmem_to_hbm [thread:$0]  %s2721, 1024, %s2719, %s2707, 256, 256, 16
        $region112: #{tpu_custom_call.1} parent=63 // pred_fallthru
          _
      $region64: #{tpu_custom_call.1} parent=5 // pred_fallthru
        _
      %p2727 = scmp.le.s32.totalorder 2, %s28
      // Predicated region
      $region113: #{tpu_custom_call.1} parent=5 // pred_check
        %p2728 = pneg %p2727
      $region114: #{tpu_custom_call.1} parent=5 // pred_check_branch
        %2730 = sbr.rel (%p2728) target = $region116
      $region115: #{tpu_custom_call.1} parent=5 // pred_region
        %s2731 = ssub.s32 %s28, 2
        // Predicated region
        $region117: #{tpu_custom_call.1} parent=115 // pred_check
          %p2732 = pneg %p293
        $region118: #{tpu_custom_call.1} parent=115 // pred_check_branch
          %2734 = sbr.rel (%p2732) target = $region120
        $region119: #{tpu_custom_call.1} parent=115 // pred_region
          %s2735 = sand.u32 %s278, 1
          %s2736 = scalar_lea.sflag [#allocation4], %s2735
          %s2737 = sand.u32 %s278, 1
          %s2738 = smul.addr %s2737, 64
          %s2739 = scalar_lea.vmem [#allocation20], %s2738
          %2740 = dma.done %s2736, 1024
        $region120: #{tpu_custom_call.1} parent=115 // pred_fallthru
          _
      $region116: #{tpu_custom_call.1} parent=5 // pred_fallthru
        _
    $region6: #{tpu_custom_call.1} parent=1 // loop_footer
      %s32 = sadd.s32 1, %s28
    $region7: #{tpu_custom_call.1} parent=1 // loop_footer_branch
      %27 = sbr.rel target = $region3
    $region8: #{tpu_custom_call.1} parent=1 // loop_exit
      _
    %2741 = vsyncpa [#allocation3], 1
    %s2742 = scalar_lea.sflag [#allocation3], 1
    %2743 = vsyncpa %s2742, 1
    %2744 = vsyncpa [#allocation6], 1
    %2745 = vsyncpa [#allocation9], 1
    %2746 = vsyncpa [#allocation12], 1
    %2747 = vsyncpa [#allocation15], 1
    %2748 = vsyncpa [#allocation18], 1
    %2749 = vsyncpa [#allocation4], 1
    %s2750 = scalar_lea.sflag [#allocation4], 1
    %2751 = vsyncpa %s2750, 1

</llo_original>
